<compile_context>
chip_gen: v6e
topology: v6e:2x2x1
jax: 0.10.0
libtpu: 0.0.40
codegen_flags: <defaults>
</compile_context>

<pallas_src>
import functools

import jax
import jax.numpy as jnp
from jax import lax
from jax.experimental import pallas as pl
from jax.experimental.pallas import tpu as pltpu


# ----------------------------------------------------------------------------
# Fused kernel: one grid step = one batch block.
#   x_ref    : [Cin, Lx]  bf16   flat padded canvases (batch block + tail 0s)
#   w1t_ref  : [9, C1, Cin] bf16 per-tap conv1 weights (transposed)
#   b1_ref   : [C1, 1] f32
#   w2t_ref  : [9, C2, C1] bf16
#   b2_ref   : [C2, 1] f32
#   mask1_ref: [1, L1] f32       0/1 interior mask for the conv1 canvas
#   pool_ref : [L2, B_blk] f32   per-image mean-pool matrix (mask * 1/(H*W))
#   fw1_ref  : [C2, HD] f32      fb1_ref: [1, HD] f32
#   fw2_ref  : [HD, 128] f32     fb2_ref: [1, 128] f32  (position padded->128)
#   out_ref  : [B_blk, 128] f32
#   h1_ref   : VMEM scratch [C1, L1] bf16
# ----------------------------------------------------------------------------
def _dqn_fused_kernel(x_ref, w1t_ref, b1_ref, w2t_ref, b2_ref, mask1_ref,
                      pool_ref, fw1_ref, fb1_ref, fw2_ref, fb2_ref,
                      out_ref, h1_ref, *, Wc, L1, L2):
    f32 = jnp.float32

    def tap_shift(k):                       # flat offset of tap (kh, kw)
        return (k // 3) * Wc + (k % 3)

    # ---- conv1 (+bias+ReLU+ring mask): 9 per-tap accumulated GEMMs.
    acc1 = None
    for k in range(9):
        win = x_ref[:, pl.ds(tap_shift(k), L1)]                # [Cin, L1] bf16
        d = jnp.dot(w1t_ref[k], win, preferred_element_type=f32)
        acc1 = d if acc1 is None else acc1 + d                 # [C1, L1] f32
    h1 = jnp.maximum(acc1 + b1_ref[...], 0.0) * mask1_ref[...]
    h1_ref[...] = h1.astype(h1_ref.dtype)                      # bf16 scratch

    # ---- conv2 (+bias+ReLU): windows read back from the VMEM scratch ref.
    acc2 = None
    for k in range(9):
        win = h1_ref[:, pl.ds(tap_shift(k), L2)]               # [C1, L2] bf16
        d = jnp.dot(w2t_ref[k], win, preferred_element_type=f32)
        acc2 = d if acc2 is None else acc2 + d                 # [C2, L2] f32
    h2 = jnp.maximum(acc2 + b2_ref[...], 0.0)                  # [C2, L2]

    # ---- global average pool: pool matrix carries mask and 1/(H*W).
    p = jnp.dot(h2, pool_ref[...], preferred_element_type=f32)  # [C2, B_blk]

    # ---- 2-layer MLP head -> lane-dense padded position slab.
    pt = p.T                                                    # [B_blk, C2]
    z = jnp.maximum(jnp.dot(pt, fw1_ref[...], preferred_element_type=f32)
                    + fb1_ref[...], 0.0)
    out_ref[...] = (jnp.dot(z, fw2_ref[...], preferred_element_type=f32)
                    + fb2_ref[...])                             # [B_blk, 128]


# ----------------------------------------------------------------------------
# Wrapper: one cheap pad/transpose/reshape; everything else runs inside one
# fused Pallas kernel, gridded over batch blocks.
# ----------------------------------------------------------------------------
def dqn_forward(x_nchw, params, *, batch_block=None):
    x = x_nchw.astype(jnp.float32)
    B, Cin, H, W = x.shape

    if batch_block is None:
        # >=2 grid steps when B >= 2 (v7x megacore); cap keeps per-step VMEM
        # small on v5e/v6e/v7x.
        batch_block = max(1, min(32, (B + 1) // 2))
    nb = pl.cdiv(B, batch_block)
    Bp = nb * batch_block

    Hc, Wc = H + 6, W + 4        # per-image canvas (2 top/left pad + slack)
    S = Hc * Wc                  # flat canvas length per image
    Lb = batch_block * S         # flat canvas length per batch block
    L1 = Lb + 3 * Wc             # conv1 output positions per block
    Lx = Lb + 6 * Wc             # conv1 input length per block (tail zeros)
    L2 = Lb                      # conv2 output positions per block

    # ---- pack the input once: [B,C,H,W] -> [nb, Cin, Lx] bf16
    xp = jnp.pad(x, ((0, Bp - B), (0, 0), (2, 4), (2, 2)))      # [Bp,Cin,Hc,Wc]
    xp = xp.reshape(nb, batch_block, Cin, Hc, Wc).transpose(0, 2, 1, 3, 4)
    xp = xp.reshape(nb, Cin, Lb)
    xp = jnp.pad(xp, ((0, 0), (0, 0), (0, Lx - Lb))).astype(jnp.bfloat16)

    # ---- per-tap weights, [C, spatial]-oriented biases
    w1t = jnp.transpose(params["w1"], (0, 2, 1)).astype(jnp.bfloat16)  # [9,C1,Cin]
    w2t = jnp.transpose(params["w2"], (0, 2, 1)).astype(jnp.bfloat16)  # [9,C2,C1]
    b1c = params["b1"].reshape(-1, 1).astype(jnp.float32)              # [C1,1]
    b2c = params["b2"].reshape(-1, 1).astype(jnp.float32)              # [C2,1]
    C1, C2 = w1t.shape[1], w2t.shape[1]
    HD, OUT = params["fw1"].shape[-1], params["fw2"].shape[-1]
    OUTP = 128
    fw1 = params["fw1"].astype(jnp.float32)
    fb1 = params["fb1"].astype(jnp.float32)
    fw2p = jnp.pad(params["fw2"], ((0, 0), (0, OUTP - OUT))).astype(jnp.float32)
    fb2p = jnp.pad(params["fb2"], ((0, 0), (0, OUTP - OUT))).astype(jnp.float32)

    # ---- shape-only constants: conv1 interior mask, mean-pool matrix.
    q1 = jnp.arange(L1)
    r1, c1 = (q1 % S) // Wc, q1 % Wc
    mask1 = ((q1 < Lb) & (r1 >= 1) & (r1 <= H) & (c1 >= 1) & (c1 <= W))
    mask1 = mask1.astype(jnp.float32)[None, :]                  # [1, L1]

    q2 = jnp.arange(L2)
    r2, c2 = (q2 % S) // Wc, q2 % Wc
    valid2 = (r2 < H) & (c2 < W)
    pool = (valid2[:, None] &
            ((q2 // S)[:, None] == jnp.arange(batch_block)[None, :]))
    pool = pool.astype(jnp.float32) / float(H * W)              # [L2, B_blk]

    flops = Bp * (2 * S * 9 * Cin * C1 + 2 * S * 9 * C1 * C2
                  + 2 * S * C2 + 2 * C2 * HD + 2 * HD * OUTP)
    bytes_accessed = (2 * (xp.size + w1t.size + w2t.size)
                      + 4 * (b1c.size + b2c.size + mask1.size + pool.size
                             + fw1.size + fb1.size + fw2p.size + fb2p.size
                             + Bp * OUTP))

    def full(a):
        return pl.BlockSpec(a.shape, lambda i, nd=a.ndim: (0,) * nd)

    grid_spec = pltpu.PrefetchScalarGridSpec(
        num_scalar_prefetch=0,
        grid=(nb,),
        in_specs=[
            pl.BlockSpec((None, Cin, Lx), lambda i: (i, 0, 0)),
            full(w1t), full(b1c), full(w2t), full(b2c),
            full(mask1), full(pool),
            full(fw1), full(fb1), full(fw2p), full(fb2p),
        ],
        out_specs=pl.BlockSpec((None, batch_block, OUTP), lambda i: (i, 0, 0)),
        scratch_shapes=[pltpu.VMEM((C1, L1), jnp.bfloat16)],
    )

    out3 = pl.pallas_call(
        functools.partial(_dqn_fused_kernel, Wc=Wc, L1=L1, L2=L2),
        out_shape=jax.ShapeDtypeStruct((nb, batch_block, OUTP), jnp.float32),
        grid_spec=grid_spec,
        compiler_params=pltpu.CompilerParams(
            dimension_semantics=("parallel",),        # shard blocks across TCs
            vmem_limit_bytes=32 * 1024 * 1024),       # safe on v5e/v6e/v7x
        cost_estimate=pl.CostEstimate(flops=int(flops), transcendentals=0,
                                      bytes_accessed=int(bytes_accessed)),
    )(xp, w1t, b1c, w2t, b2c, mask1, pool, fw1, fb1, fw2p, fb2p)

    return out3.reshape(Bp, OUTP)[:B, :OUT]


# Pure-JAX reference for the correctness check.
def reference_forward(x_nchw, params):
    x = jnp.transpose(x_nchw, (0, 2, 3, 1)).astype(jnp.float32)

    def conv(x, w, b):
        w4 = w.reshape(3, 3, w.shape[1], w.shape[2])              # HWIO
        y = lax.conv_general_dilated(
            x, w4, window_strides=(1, 1), padding="SAME",
            dimension_numbers=("NHWC", "HWIO", "NHWC"))
        return jnp.maximum(y + b.reshape(1, 1, 1, -1), 0.0)

    h = conv(x, params["w1"], params["b1"])
    h = conv(h, params["w2"], params["b2"])
    p = jnp.mean(h, axis=(1, 2))
    p = jnp.maximum(p @ params["fw1"] + params["fb1"], 0.0)
    return p @ params["fw2"] + params["fb2"]


def init_params(key):
    ks = jax.random.split(key, 8)
    s = 0.1
    return {
        "w1": s * jax.random.normal(ks[0], (9, 4, 16), jnp.float32),
        "b1": s * jax.random.normal(ks[1], (1, 16), jnp.float32),
        "w2": s * jax.random.normal(ks[2], (9, 16, 32), jnp.float32),
        "b2": s * jax.random.normal(ks[3], (1, 32), jnp.float32),
        "fw1": s * jax.random.normal(ks[4], (32, 32), jnp.float32),
        "fb1": s * jax.random.normal(ks[5], (1, 32), jnp.float32),
        "fw2": s * jax.random.normal(ks[6], (32, 2), jnp.float32),
        "fb2": s * jax.random.normal(ks[7], (1, 2), jnp.float32),
    }


if __name__ == "__main__":
    key = jax.random.PRNGKey(0)
    kx, kp = jax.random.split(key)
    x = jax.random.normal(kx, (2, 4, 16, 16), jnp.float32)        # NCHW, like torch
    params = init_params(kp)

    fwd = jax.jit(dqn_forward)
    position = fwd(x, params)
    jax.block_until_ready(position)

    ref = reference_forward(x, params)
    assert position.shape == (2, 2)
    # bf16 MXU inputs for the conv GEMMs -> compare against the f32 reference
    # with a correspondingly relaxed (but still bug-catching) tolerance.
    assert jnp.allclose(position, ref, rtol=2e-2, atol=1e-2), (
        f"mismatch: {position} vs {ref}")
    print("KERNEL_OK")
</pallas_src>

<mosaic_0001>
module attributes {stable_mosaic.version = 11 : i64} {
  func.func @_dqn_fused_kernel(%arg0: i32, %arg1: memref<1x4x560xbf16, #tpu.memory_space<vmem>>, %arg2: memref<9x16x4xbf16, #tpu.memory_space<vmem>>, %arg3: memref<16x1xf32, #tpu.memory_space<vmem>>, %arg4: memref<9x32x16xbf16, #tpu.memory_space<vmem>>, %arg5: memref<32x1xf32, #tpu.memory_space<vmem>>, %arg6: memref<1x500xf32, #tpu.memory_space<vmem>>, %arg7: memref<440x1xf32, #tpu.memory_space<vmem>>, %arg8: memref<32x32xf32, #tpu.memory_space<vmem>>, %arg9: memref<1x32xf32, #tpu.memory_space<vmem>>, %arg10: memref<32x128xf32, #tpu.memory_space<vmem>>, %arg11: memref<1x128xf32, #tpu.memory_space<vmem>>, %arg12: memref<1x1x128xf32, #tpu.memory_space<vmem>>, %arg13: memref<16x500xbf16, #tpu.memory_space<vmem>>) attributes {dimension_semantics = [#tpu.dimension_semantics<parallel>], iteration_bounds = array<i64: 2>, scalar_prefetch = 0 : i64, scratch_operands = 1 : i64, tpu.core_type = #tpu.core_type<tc>, window_params = [{transform_indices = @transform_0, window_bounds = array<i64: 1, 4, 560>}, {pipeline_mode = #tpu.pipeline_mode<synchronous>, transform_indices = @transform_1, window_bounds = array<i64: 9, 16, 4>}, {pipeline_mode = #tpu.pipeline_mode<synchronous>, transform_indices = @transform_2, window_bounds = array<i64: 16, 1>}, {pipeline_mode = #tpu.pipeline_mode<synchronous>, transform_indices = @transform_3, window_bounds = array<i64: 9, 32, 16>}, {pipeline_mode = #tpu.pipeline_mode<synchronous>, transform_indices = @transform_4, window_bounds = array<i64: 32, 1>}, {pipeline_mode = #tpu.pipeline_mode<synchronous>, transform_indices = @transform_5, window_bounds = array<i64: 1, 500>}, {pipeline_mode = #tpu.pipeline_mode<synchronous>, transform_indices = @transform_6, window_bounds = array<i64: 440, 1>}, {pipeline_mode = #tpu.pipeline_mode<synchronous>, transform_indices = @transform_7, window_bounds = array<i64: 32, 32>}, {pipeline_mode = #tpu.pipeline_mode<synchronous>, transform_indices = @transform_8, window_bounds = array<i64: 1, 32>}, {pipeline_mode = #tpu.pipeline_mode<synchronous>, transform_indices = @transform_9, window_bounds = array<i64: 32, 128>}, {pipeline_mode = #tpu.pipeline_mode<synchronous>, transform_indices = @transform_10, window_bounds = array<i64: 1, 128>}, {transform_indices = @transform_11, window_bounds = array<i64: 1, 1, 128>}]} {
    %c0 = arith.constant 0 : index
    %c0_0 = arith.constant 0 : index
    %c0_1 = arith.constant 0 : index
    %0 = vector.load %arg1[%c0, %c0_0, %c0_1] : memref<1x4x560xbf16, #tpu.memory_space<vmem>>, vector<1x4x500xbf16>
    %1 = vector.shape_cast %0 : vector<1x4x500xbf16> to vector<4x500xbf16>
    %c0_2 = arith.constant 0 : index
    %c0_3 = arith.constant 0 : index
    %c0_4 = arith.constant 0 : index
    %2 = vector.load %arg2[%c0_2, %c0_3, %c0_4] : memref<9x16x4xbf16, #tpu.memory_space<vmem>>, vector<1x16x4xbf16>
    %3 = vector.shape_cast %2 : vector<1x16x4xbf16> to vector<16x4xbf16>
    %cst = arith.constant dense<0.000000e+00> : vector<16x500xf32>
    %4 = tpu.matmul %3, %1, %cst {dimension_numbers = #tpu.dot_dimension_numbers<[1], [0], [0], [1], [0, 0, 1, 1], [], []>} : vector<16x4xbf16>, vector<4x500xbf16>, vector<16x500xf32> -> vector<16x500xf32>
    %c0_5 = arith.constant 0 : index
    %c0_6 = arith.constant 0 : index
    %c1 = arith.constant 1 : index
    %5 = vector.load %arg1[%c0_5, %c0_6, %c1] : memref<1x4x560xbf16, #tpu.memory_space<vmem>>, vector<1x4x500xbf16>
    %6 = vector.shape_cast %5 : vector<1x4x500xbf16> to vector<4x500xbf16>
    %c1_7 = arith.constant 1 : index
    %c0_8 = arith.constant 0 : index
    %c0_9 = arith.constant 0 : index
    %7 = vector.load %arg2[%c1_7, %c0_8, %c0_9] : memref<9x16x4xbf16, #tpu.memory_space<vmem>>, vector<1x16x4xbf16>
    %8 = vector.shape_cast %7 : vector<1x16x4xbf16> to vector<16x4xbf16>
    %cst_10 = arith.constant dense<0.000000e+00> : vector<16x500xf32>
    %9 = tpu.matmul %8, %6, %cst_10 {dimension_numbers = #tpu.dot_dimension_numbers<[1], [0], [0], [1], [0, 0, 1, 1], [], []>} : vector<16x4xbf16>, vector<4x500xbf16>, vector<16x500xf32> -> vector<16x500xf32>
    %10 = arith.addf %4, %9 : vector<16x500xf32>
    %c0_11 = arith.constant 0 : index
    %c0_12 = arith.constant 0 : index
    %c2 = arith.constant 2 : index
    %11 = vector.load %arg1[%c0_11, %c0_12, %c2] : memref<1x4x560xbf16, #tpu.memory_space<vmem>>, vector<1x4x500xbf16>
    %12 = vector.shape_cast %11 : vector<1x4x500xbf16> to vector<4x500xbf16>
    %c2_13 = arith.constant 2 : index
    %c0_14 = arith.constant 0 : index
    %c0_15 = arith.constant 0 : index
    %13 = vector.load %arg2[%c2_13, %c0_14, %c0_15] : memref<9x16x4xbf16, #tpu.memory_space<vmem>>, vector<1x16x4xbf16>
    %14 = vector.shape_cast %13 : vector<1x16x4xbf16> to vector<16x4xbf16>
    %cst_16 = arith.constant dense<0.000000e+00> : vector<16x500xf32>
    %15 = tpu.matmul %14, %12, %cst_16 {dimension_numbers = #tpu.dot_dimension_numbers<[1], [0], [0], [1], [0, 0, 1, 1], [], []>} : vector<16x4xbf16>, vector<4x500xbf16>, vector<16x500xf32> -> vector<16x500xf32>
    %16 = arith.addf %10, %15 : vector<16x500xf32>
    %c0_17 = arith.constant 0 : index
    %c0_18 = arith.constant 0 : index
    %c20 = arith.constant 20 : index
    %17 = vector.load %arg1[%c0_17, %c0_18, %c20] : memref<1x4x560xbf16, #tpu.memory_space<vmem>>, vector<1x4x500xbf16>
    %18 = vector.shape_cast %17 : vector<1x4x500xbf16> to vector<4x500xbf16>
    %c3 = arith.constant 3 : index
    %c0_19 = arith.constant 0 : index
    %c0_20 = arith.constant 0 : index
    %19 = vector.load %arg2[%c3, %c0_19, %c0_20] : memref<9x16x4xbf16, #tpu.memory_space<vmem>>, vector<1x16x4xbf16>
    %20 = vector.shape_cast %19 : vector<1x16x4xbf16> to vector<16x4xbf16>
    %cst_21 = arith.constant dense<0.000000e+00> : vector<16x500xf32>
    %21 = tpu.matmul %20, %18, %cst_21 {dimension_numbers = #tpu.dot_dimension_numbers<[1], [0], [0], [1], [0, 0, 1, 1], [], []>} : vector<16x4xbf16>, vector<4x500xbf16>, vector<16x500xf32> -> vector<16x500xf32>
    %22 = arith.addf %16, %21 : vector<16x500xf32>
    %c0_22 = arith.constant 0 : index
    %c0_23 = arith.constant 0 : index
    %c21 = arith.constant 21 : index
    %23 = vector.load %arg1[%c0_22, %c0_23, %c21] : memref<1x4x560xbf16, #tpu.memory_space<vmem>>, vector<1x4x500xbf16>
    %24 = vector.shape_cast %23 : vector<1x4x500xbf16> to vector<4x500xbf16>
    %c4 = arith.constant 4 : index
    %c0_24 = arith.constant 0 : index
    %c0_25 = arith.constant 0 : index
    %25 = vector.load %arg2[%c4, %c0_24, %c0_25] : memref<9x16x4xbf16, #tpu.memory_space<vmem>>, vector<1x16x4xbf16>
    %26 = vector.shape_cast %25 : vector<1x16x4xbf16> to vector<16x4xbf16>
    %cst_26 = arith.constant dense<0.000000e+00> : vector<16x500xf32>
    %27 = tpu.matmul %26, %24, %cst_26 {dimension_numbers = #tpu.dot_dimension_numbers<[1], [0], [0], [1], [0, 0, 1, 1], [], []>} : vector<16x4xbf16>, vector<4x500xbf16>, vector<16x500xf32> -> vector<16x500xf32>
    %28 = arith.addf %22, %27 : vector<16x500xf32>
    %c0_27 = arith.constant 0 : index
    %c0_28 = arith.constant 0 : index
    %c22 = arith.constant 22 : index
    %29 = vector.load %arg1[%c0_27, %c0_28, %c22] : memref<1x4x560xbf16, #tpu.memory_space<vmem>>, vector<1x4x500xbf16>
    %30 = vector.shape_cast %29 : vector<1x4x500xbf16> to vector<4x500xbf16>
    %c5 = arith.constant 5 : index
    %c0_29 = arith.constant 0 : index
    %c0_30 = arith.constant 0 : index
    %31 = vector.load %arg2[%c5, %c0_29, %c0_30] : memref<9x16x4xbf16, #tpu.memory_space<vmem>>, vector<1x16x4xbf16>
    %32 = vector.shape_cast %31 : vector<1x16x4xbf16> to vector<16x4xbf16>
    %cst_31 = arith.constant dense<0.000000e+00> : vector<16x500xf32>
    %33 = tpu.matmul %32, %30, %cst_31 {dimension_numbers = #tpu.dot_dimension_numbers<[1], [0], [0], [1], [0, 0, 1, 1], [], []>} : vector<16x4xbf16>, vector<4x500xbf16>, vector<16x500xf32> -> vector<16x500xf32>
    %34 = arith.addf %28, %33 : vector<16x500xf32>
    %c0_32 = arith.constant 0 : index
    %c0_33 = arith.constant 0 : index
    %c40 = arith.constant 40 : index
    %35 = vector.load %arg1[%c0_32, %c0_33, %c40] : memref<1x4x560xbf16, #tpu.memory_space<vmem>>, vector<1x4x500xbf16>
    %36 = vector.shape_cast %35 : vector<1x4x500xbf16> to vector<4x500xbf16>
    %c6 = arith.constant 6 : index
    %c0_34 = arith.constant 0 : index
    %c0_35 = arith.constant 0 : index
    %37 = vector.load %arg2[%c6, %c0_34, %c0_35] : memref<9x16x4xbf16, #tpu.memory_space<vmem>>, vector<1x16x4xbf16>
    %38 = vector.shape_cast %37 : vector<1x16x4xbf16> to vector<16x4xbf16>
    %cst_36 = arith.constant dense<0.000000e+00> : vector<16x500xf32>
    %39 = tpu.matmul %38, %36, %cst_36 {dimension_numbers = #tpu.dot_dimension_numbers<[1], [0], [0], [1], [0, 0, 1, 1], [], []>} : vector<16x4xbf16>, vector<4x500xbf16>, vector<16x500xf32> -> vector<16x500xf32>
    %40 = arith.addf %34, %39 : vector<16x500xf32>
    %c0_37 = arith.constant 0 : index
    %c0_38 = arith.constant 0 : index
    %c41 = arith.constant 41 : index
    %41 = vector.load %arg1[%c0_37, %c0_38, %c41] : memref<1x4x560xbf16, #tpu.memory_space<vmem>>, vector<1x4x500xbf16>
    %42 = vector.shape_cast %41 : vector<1x4x500xbf16> to vector<4x500xbf16>
    %c7 = arith.constant 7 : index
    %c0_39 = arith.constant 0 : index
    %c0_40 = arith.constant 0 : index
    %43 = vector.load %arg2[%c7, %c0_39, %c0_40] : memref<9x16x4xbf16, #tpu.memory_space<vmem>>, vector<1x16x4xbf16>
    %44 = vector.shape_cast %43 : vector<1x16x4xbf16> to vector<16x4xbf16>
    %cst_41 = arith.constant dense<0.000000e+00> : vector<16x500xf32>
    %45 = tpu.matmul %44, %42, %cst_41 {dimension_numbers = #tpu.dot_dimension_numbers<[1], [0], [0], [1], [0, 0, 1, 1], [], []>} : vector<16x4xbf16>, vector<4x500xbf16>, vector<16x500xf32> -> vector<16x500xf32>
    %46 = arith.addf %40, %45 : vector<16x500xf32>
    %c0_42 = arith.constant 0 : index
    %c0_43 = arith.constant 0 : index
    %c42 = arith.constant 42 : index
    %47 = vector.load %arg1[%c0_42, %c0_43, %c42] : memref<1x4x560xbf16, #tpu.memory_space<vmem>>, vector<1x4x500xbf16>
    %48 = vector.shape_cast %47 : vector<1x4x500xbf16> to vector<4x500xbf16>
    %c8 = arith.constant 8 : index
    %c0_44 = arith.constant 0 : index
    %c0_45 = arith.constant 0 : index
    %49 = vector.load %arg2[%c8, %c0_44, %c0_45] : memref<9x16x4xbf16, #tpu.memory_space<vmem>>, vector<1x16x4xbf16>
    %50 = vector.shape_cast %49 : vector<1x16x4xbf16> to vector<16x4xbf16>
    %cst_46 = arith.constant dense<0.000000e+00> : vector<16x500xf32>
    %51 = tpu.matmul %50, %48, %cst_46 {dimension_numbers = #tpu.dot_dimension_numbers<[1], [0], [0], [1], [0, 0, 1, 1], [], []>} : vector<16x4xbf16>, vector<4x500xbf16>, vector<16x500xf32> -> vector<16x500xf32>
    %52 = arith.addf %46, %51 : vector<16x500xf32>
    %c0_47 = arith.constant 0 : index
    %c0_48 = arith.constant 0 : index
    %53 = vector.load %arg3[%c0_47, %c0_48] : memref<16x1xf32, #tpu.memory_space<vmem>>, vector<16x1xf32>
    %54 = vector.broadcast %53 : vector<16x1xf32> to vector<16x500xf32>
    %55 = arith.addf %52, %54 : vector<16x500xf32>
    %cst_49 = arith.constant 0.000000e+00 : f32
    %56 = vector.broadcast %cst_49 : f32 to vector<16x500xf32>
    %57 = arith.maximumf %55, %56 : vector<16x500xf32>
    %c0_50 = arith.constant 0 : index
    %c0_51 = arith.constant 0 : index
    %58 = vector.load %arg6[%c0_50, %c0_51] : memref<1x500xf32, #tpu.memory_space<vmem>>, vector<1x500xf32>
    %59 = vector.broadcast %58 : vector<1x500xf32> to vector<16x500xf32>
    %60 = arith.mulf %57, %59 : vector<16x500xf32>
    %61 = arith.truncf %60 : vector<16x500xf32> to vector<16x500xbf16>
    %c0_52 = arith.constant 0 : index
    %c0_53 = arith.constant 0 : index
    %62 = vector.load %arg13[%c0_52, %c0_53] : memref<16x500xbf16, #tpu.memory_space<vmem>>, vector<16x500xbf16>
    tpu.vector_store %arg13[%c0_52, %c0_53], %61 {strides = array<i32>} : memref<16x500xbf16, #tpu.memory_space<vmem>>, vector<16x500xbf16>,
    %c0_54 = arith.constant 0 : index
    %c0_55 = arith.constant 0 : index
    %63 = vector.load %arg13[%c0_54, %c0_55] : memref<16x500xbf16, #tpu.memory_space<vmem>>, vector<16x440xbf16>
    %c0_56 = arith.constant 0 : index
    %c0_57 = arith.constant 0 : index
    %c0_58 = arith.constant 0 : index
    %64 = vector.load %arg4[%c0_56, %c0_57, %c0_58] : memref<9x32x16xbf16, #tpu.memory_space<vmem>>, vector<1x32x16xbf16>
    %65 = vector.shape_cast %64 : vector<1x32x16xbf16> to vector<32x16xbf16>
    %cst_59 = arith.constant dense<0.000000e+00> : vector<32x440xf32>
    %66 = tpu.matmul %65, %63, %cst_59 {dimension_numbers = #tpu.dot_dimension_numbers<[1], [0], [0], [1], [0, 0, 1, 1], [], []>} : vector<32x16xbf16>, vector<16x440xbf16>, vector<32x440xf32> -> vector<32x440xf32>
    %c0_60 = arith.constant 0 : index
    %c1_61 = arith.constant 1 : index
    %67 = vector.load %arg13[%c0_60, %c1_61] : memref<16x500xbf16, #tpu.memory_space<vmem>>, vector<16x440xbf16>
    %c1_62 = arith.constant 1 : index
    %c0_63 = arith.constant 0 : index
    %c0_64 = arith.constant 0 : index
    %68 = vector.load %arg4[%c1_62, %c0_63, %c0_64] : memref<9x32x16xbf16, #tpu.memory_space<vmem>>, vector<1x32x16xbf16>
    %69 = vector.shape_cast %68 : vector<1x32x16xbf16> to vector<32x16xbf16>
    %cst_65 = arith.constant dense<0.000000e+00> : vector<32x440xf32>
    %70 = tpu.matmul %69, %67, %cst_65 {dimension_numbers = #tpu.dot_dimension_numbers<[1], [0], [0], [1], [0, 0, 1, 1], [], []>} : vector<32x16xbf16>, vector<16x440xbf16>, vector<32x440xf32> -> vector<32x440xf32>
    %71 = arith.addf %66, %70 : vector<32x440xf32>
    %c0_66 = arith.constant 0 : index
    %c2_67 = arith.constant 2 : index
    %72 = vector.load %arg13[%c0_66, %c2_67] : memref<16x500xbf16, #tpu.memory_space<vmem>>, vector<16x440xbf16>
    %c2_68 = arith.constant 2 : index
    %c0_69 = arith.constant 0 : index
    %c0_70 = arith.constant 0 : index
    %73 = vector.load %arg4[%c2_68, %c0_69, %c0_70] : memref<9x32x16xbf16, #tpu.memory_space<vmem>>, vector<1x32x16xbf16>
    %74 = vector.shape_cast %73 : vector<1x32x16xbf16> to vector<32x16xbf16>
    %cst_71 = arith.constant dense<0.000000e+00> : vector<32x440xf32>
    %75 = tpu.matmul %74, %72, %cst_71 {dimension_numbers = #tpu.dot_dimension_numbers<[1], [0], [0], [1], [0, 0, 1, 1], [], []>} : vector<32x16xbf16>, vector<16x440xbf16>, vector<32x440xf32> -> vector<32x440xf32>
    %76 = arith.addf %71, %75 : vector<32x440xf32>
    %c0_72 = arith.constant 0 : index
    %c20_73 = arith.constant 20 : index
    %77 = vector.load %arg13[%c0_72, %c20_73] : memref<16x500xbf16, #tpu.memory_space<vmem>>, vector<16x440xbf16>
    %c3_74 = arith.constant 3 : index
    %c0_75 = arith.constant 0 : index
    %c0_76 = arith.constant 0 : index
    %78 = vector.load %arg4[%c3_74, %c0_75, %c0_76] : memref<9x32x16xbf16, #tpu.memory_space<vmem>>, vector<1x32x16xbf16>
    %79 = vector.shape_cast %78 : vector<1x32x16xbf16> to vector<32x16xbf16>
    %cst_77 = arith.constant dense<0.000000e+00> : vector<32x440xf32>
    %80 = tpu.matmul %79, %77, %cst_77 {dimension_numbers = #tpu.dot_dimension_numbers<[1], [0], [0], [1], [0, 0, 1, 1], [], []>} : vector<32x16xbf16>, vector<16x440xbf16>, vector<32x440xf32> -> vector<32x440xf32>
    %81 = arith.addf %76, %80 : vector<32x440xf32>
    %c0_78 = arith.constant 0 : index
    %c21_79 = arith.constant 21 : index
    %82 = vector.load %arg13[%c0_78, %c21_79] : memref<16x500xbf16, #tpu.memory_space<vmem>>, vector<16x440xbf16>
    %c4_80 = arith.constant 4 : index
    %c0_81 = arith.constant 0 : index
    %c0_82 = arith.constant 0 : index
    %83 = vector.load %arg4[%c4_80, %c0_81, %c0_82] : memref<9x32x16xbf16, #tpu.memory_space<vmem>>, vector<1x32x16xbf16>
    %84 = vector.shape_cast %83 : vector<1x32x16xbf16> to vector<32x16xbf16>
    %cst_83 = arith.constant dense<0.000000e+00> : vector<32x440xf32>
    %85 = tpu.matmul %84, %82, %cst_83 {dimension_numbers = #tpu.dot_dimension_numbers<[1], [0], [0], [1], [0, 0, 1, 1], [], []>} : vector<32x16xbf16>, vector<16x440xbf16>, vector<32x440xf32> -> vector<32x440xf32>
    %86 = arith.addf %81, %85 : vector<32x440xf32>
    %c0_84 = arith.constant 0 : index
    %c22_85 = arith.constant 22 : index
    %87 = vector.load %arg13[%c0_84, %c22_85] : memref<16x500xbf16, #tpu.memory_space<vmem>>, vector<16x440xbf16>
    %c5_86 = arith.constant 5 : index
    %c0_87 = arith.constant 0 : index
    %c0_88 = arith.constant 0 : index
    %88 = vector.load %arg4[%c5_86, %c0_87, %c0_88] : memref<9x32x16xbf16, #tpu.memory_space<vmem>>, vector<1x32x16xbf16>
    %89 = vector.shape_cast %88 : vector<1x32x16xbf16> to vector<32x16xbf16>
    %cst_89 = arith.constant dense<0.000000e+00> : vector<32x440xf32>
    %90 = tpu.matmul %89, %87, %cst_89 {dimension_numbers = #tpu.dot_dimension_numbers<[1], [0], [0], [1], [0, 0, 1, 1], [], []>} : vector<32x16xbf16>, vector<16x440xbf16>, vector<32x440xf32> -> vector<32x440xf32>
    %91 = arith.addf %86, %90 : vector<32x440xf32>
    %c0_90 = arith.constant 0 : index
    %c40_91 = arith.constant 40 : index
    %92 = vector.load %arg13[%c0_90, %c40_91] : memref<16x500xbf16, #tpu.memory_space<vmem>>, vector<16x440xbf16>
    %c6_92 = arith.constant 6 : index
    %c0_93 = arith.constant 0 : index
    %c0_94 = arith.constant 0 : index
    %93 = vector.load %arg4[%c6_92, %c0_93, %c0_94] : memref<9x32x16xbf16, #tpu.memory_space<vmem>>, vector<1x32x16xbf16>
    %94 = vector.shape_cast %93 : vector<1x32x16xbf16> to vector<32x16xbf16>
    %cst_95 = arith.constant dense<0.000000e+00> : vector<32x440xf32>
    %95 = tpu.matmul %94, %92, %cst_95 {dimension_numbers = #tpu.dot_dimension_numbers<[1], [0], [0], [1], [0, 0, 1, 1], [], []>} : vector<32x16xbf16>, vector<16x440xbf16>, vector<32x440xf32> -> vector<32x440xf32>
    %96 = arith.addf %91, %95 : vector<32x440xf32>
    %c0_96 = arith.constant 0 : index
    %c41_97 = arith.constant 41 : index
    %97 = vector.load %arg13[%c0_96, %c41_97] : memref<16x500xbf16, #tpu.memory_space<vmem>>, vector<16x440xbf16>
    %c7_98 = arith.constant 7 : index
    %c0_99 = arith.constant 0 : index
    %c0_100 = arith.constant 0 : index
    %98 = vector.load %arg4[%c7_98, %c0_99, %c0_100] : memref<9x32x16xbf16, #tpu.memory_space<vmem>>, vector<1x32x16xbf16>
    %99 = vector.shape_cast %98 : vector<1x32x16xbf16> to vector<32x16xbf16>
    %cst_101 = arith.constant dense<0.000000e+00> : vector<32x440xf32>
    %100 = tpu.matmul %99, %97, %cst_101 {dimension_numbers = #tpu.dot_dimension_numbers<[1], [0], [0], [1], [0, 0, 1, 1], [], []>} : vector<32x16xbf16>, vector<16x440xbf16>, vector<32x440xf32> -> vector<32x440xf32>
    %101 = arith.addf %96, %100 : vector<32x440xf32>
    %c0_102 = arith.constant 0 : index
    %c42_103 = arith.constant 42 : index
    %102 = vector.load %arg13[%c0_102, %c42_103] : memref<16x500xbf16, #tpu.memory_space<vmem>>, vector<16x440xbf16>
    %c8_104 = arith.constant 8 : index
    %c0_105 = arith.constant 0 : index
    %c0_106 = arith.constant 0 : index
    %103 = vector.load %arg4[%c8_104, %c0_105, %c0_106] : memref<9x32x16xbf16, #tpu.memory_space<vmem>>, vector<1x32x16xbf16>
    %104 = vector.shape_cast %103 : vector<1x32x16xbf16> to vector<32x16xbf16>
    %cst_107 = arith.constant dense<0.000000e+00> : vector<32x440xf32>
    %105 = tpu.matmul %104, %102, %cst_107 {dimension_numbers = #tpu.dot_dimension_numbers<[1], [0], [0], [1], [0, 0, 1, 1], [], []>} : vector<32x16xbf16>, vector<16x440xbf16>, vector<32x440xf32> -> vector<32x440xf32>
    %106 = arith.addf %101, %105 : vector<32x440xf32>
    %c0_108 = arith.constant 0 : index
    %c0_109 = arith.constant 0 : index
    %107 = vector.load %arg5[%c0_108, %c0_109] : memref<32x1xf32, #tpu.memory_space<vmem>>, vector<32x1xf32>
    %108 = vector.broadcast %107 : vector<32x1xf32> to vector<32x440xf32>
    %109 = arith.addf %106, %108 : vector<32x440xf32>
    %cst_110 = arith.constant 0.000000e+00 : f32
    %110 = vector.broadcast %cst_110 : f32 to vector<32x440xf32>
    %111 = arith.maximumf %109, %110 : vector<32x440xf32>
    %c0_111 = arith.constant 0 : index
    %c0_112 = arith.constant 0 : index
    %112 = vector.load %arg7[%c0_111, %c0_112] : memref<440x1xf32, #tpu.memory_space<vmem>>, vector<440x1xf32>
    %cst_113 = arith.constant dense<0.000000e+00> : vector<32x1xf32>
    %113 = tpu.matmul %111, %112, %cst_113 {dimension_numbers = #tpu.dot_dimension_numbers<[1], [0], [0], [1], [0, 0, 1, 1], [], []>} : vector<32x440xf32>, vector<440x1xf32>, vector<32x1xf32> -> vector<32x1xf32>
    %114 = tpu.transpose %113, [1, 0] : vector<32x1xf32> -> vector<1x32xf32>
    %c0_114 = arith.constant 0 : index
    %c0_115 = arith.constant 0 : index
    %115 = vector.load %arg8[%c0_114, %c0_115] : memref<32x32xf32, #tpu.memory_space<vmem>>, vector<32x32xf32>
    %cst_116 = arith.constant dense<0.000000e+00> : vector<1x32xf32>
    %116 = tpu.matmul %114, %115, %cst_116 {dimension_numbers = #tpu.dot_dimension_numbers<[1], [0], [0], [1], [0, 0, 1, 1], [], []>} : vector<1x32xf32>, vector<32x32xf32>, vector<1x32xf32> -> vector<1x32xf32>
    %c0_117 = arith.constant 0 : index
    %c0_118 = arith.constant 0 : index
    %117 = vector.load %arg9[%c0_117, %c0_118] : memref<1x32xf32, #tpu.memory_space<vmem>>, vector<1x32xf32>
    %118 = arith.addf %116, %117 : vector<1x32xf32>
    %cst_119 = arith.constant 0.000000e+00 : f32
    %119 = vector.broadcast %cst_119 : f32 to vector<1x32xf32>
    %120 = arith.maximumf %118, %119 : vector<1x32xf32>
    %c0_120 = arith.constant 0 : index
    %c0_121 = arith.constant 0 : index
    %121 = vector.load %arg10[%c0_120, %c0_121] : memref<32x128xf32, #tpu.memory_space<vmem>>, vector<32x128xf32>
    %cst_122 = arith.constant dense<0.000000e+00> : vector<1x128xf32>
    %122 = tpu.matmul %120, %121, %cst_122 {dimension_numbers = #tpu.dot_dimension_numbers<[1], [0], [0], [1], [0, 0, 1, 1], [], []>} : vector<1x32xf32>, vector<32x128xf32>, vector<1x128xf32> -> vector<1x128xf32>
    %c0_123 = arith.constant 0 : index
    %c0_124 = arith.constant 0 : index
    %123 = vector.load %arg11[%c0_123, %c0_124] : memref<1x128xf32, #tpu.memory_space<vmem>>, vector<1x128xf32>
    %124 = arith.addf %122, %123 : vector<1x128xf32>
    %c0_125 = arith.constant 0 : index
    %c0_126 = arith.constant 0 : index
    %c0_127 = arith.constant 0 : index
    %125 = vector.load %arg12[%c0_125, %c0_126, %c0_127] : memref<1x1x128xf32, #tpu.memory_space<vmem>>, vector<1x1x128xf32>
    %126 = vector.shape_cast %125 : vector<1x1x128xf32> to vector<1x128xf32>
    %127 = vector.shape_cast %124 : vector<1x128xf32> to vector<1x1x128xf32>
    tpu.vector_store %arg12[%c0_125, %c0_126, %c0_127], %127 {strides = array<i32>} : memref<1x1x128xf32, #tpu.memory_space<vmem>>, vector<1x1x128xf32>,
    return
  }
  func.func @transform_0(%arg0: i32) -> (i32, i32, i32) {
    %c0_i32 = arith.constant 0 : i32
    %c0_i32_0 = arith.constant 0 : i32
    %c0_i32_1 = arith.constant 0 : i32
    return %arg0, %c0_i32, %c0_i32_0 : i32, i32, i32
  }
  func.func @transform_1(%arg0: i32) -> (i32, i32, i32) {
    %c0_i32 = arith.constant 0 : i32
    %c0_i32_0 = arith.constant 0 : i32
    %c0_i32_1 = arith.constant 0 : i32
    %c0_i32_2 = arith.constant 0 : i32
    return %c0_i32, %c0_i32_0, %c0_i32_1 : i32, i32, i32
  }
  func.func @transform_2(%arg0: i32) -> (i32, i32) {
    %c0_i32 = arith.constant 0 : i32
    %c0_i32_0 = arith.constant 0 : i32
    %c0_i32_1 = arith.constant 0 : i32
    return %c0_i32, %c0_i32_0 : i32, i32
  }
  func.func @transform_3(%arg0: i32) -> (i32, i32, i32) {
    %c0_i32 = arith.constant 0 : i32
    %c0_i32_0 = arith.constant 0 : i32
    %c0_i32_1 = arith.constant 0 : i32
    %c0_i32_2 = arith.constant 0 : i32
    return %c0_i32, %c0_i32_0, %c0_i32_1 : i32, i32, i32
  }
  func.func @transform_4(%arg0: i32) -> (i32, i32) {
    %c0_i32 = arith.constant 0 : i32
    %c0_i32_0 = arith.constant 0 : i32
    %c0_i32_1 = arith.constant 0 : i32
    return %c0_i32, %c0_i32_0 : i32, i32
  }
  func.func @transform_5(%arg0: i32) -> (i32, i32) {
    %c0_i32 = arith.constant 0 : i32
    %c0_i32_0 = arith.constant 0 : i32
    %c0_i32_1 = arith.constant 0 : i32
    return %c0_i32, %c0_i32_0 : i32, i32
  }
  func.func @transform_6(%arg0: i32) -> (i32, i32) {
    %c0_i32 = arith.constant 0 : i32
    %c0_i32_0 = arith.constant 0 : i32
    %c0_i32_1 = arith.constant 0 : i32
    return %c0_i32, %c0_i32_0 : i32, i32
  }
  func.func @transform_7(%arg0: i32) -> (i32, i32) {
    %c0_i32 = arith.constant 0 : i32
    %c0_i32_0 = arith.constant 0 : i32
    %c0_i32_1 = arith.constant 0 : i32
    return %c0_i32, %c0_i32_0 : i32, i32
  }
  func.func @transform_8(%arg0: i32) -> (i32, i32) {
    %c0_i32 = arith.constant 0 : i32
    %c0_i32_0 = arith.constant 0 : i32
    %c0_i32_1 = arith.constant 0 : i32
    return %c0_i32, %c0_i32_0 : i32, i32
  }
  func.func @transform_9(%arg0: i32) -> (i32, i32) {
    %c0_i32 = arith.constant 0 : i32
    %c0_i32_0 = arith.constant 0 : i32
    %c0_i32_1 = arith.constant 0 : i32
    return %c0_i32, %c0_i32_0 : i32, i32
  }
  func.func @transform_10(%arg0: i32) -> (i32, i32) {
    %c0_i32 = arith.constant 0 : i32
    %c0_i32_0 = arith.constant 0 : i32
    %c0_i32_1 = arith.constant 0 : i32
    return %c0_i32, %c0_i32_0 : i32, i32
  }
  func.func @transform_11(%arg0: i32) -> (i32, i32, i32) {
    %c0_i32 = arith.constant 0 : i32
    %c0_i32_0 = arith.constant 0 : i32
    %c0_i32_1 = arith.constant 0 : i32
    return %arg0, %c0_i32, %c0_i32_0 : i32, i32, i32
  }
}

</mosaic_0001>

<llo_original>
// kernel: dqn_forward.1
$region0: #{dqn_forward.1}
  #allocation0 [shape = 'u32[]', space=smem, size = 0x4, offset = 0x4, fixed_abs, tag = 'smem constant byte address 0x4 - core index']
  #allocation1 [shape = 'u32[144,128]{1,0:T(1,128)}', space=vmem, size = 0x12000, scoped, tag = 'internal scratch']
  #allocation2 [shape = 'bf16[16,500]{1,0:T(8,128)(2,1)}', space=vmem, size = 0x4000, scoped, tag = 'scratch operand']
  %s0 = inlined_call_operand.vmem [shape: bf16[2,4,560], index: 0, kind: input, shape index: {}]
  %s1 = inlined_call_operand.vmem [shape: bf16[9,16,4], index: 1, kind: input, shape index: {}]
  %s2 = inlined_call_operand.vmem [shape: f32[16,1], index: 2, kind: input, shape index: {}]
  %s3 = inlined_call_operand.vmem [shape: bf16[9,32,16], index: 3, kind: input, shape index: {}]
  %s4 = inlined_call_operand.vmem [shape: f32[32,1], index: 4, kind: input, shape index: {}]
  %s5 = inlined_call_operand.vmem [shape: f32[1,500], index: 5, kind: input, shape index: {}]
  %s6 = inlined_call_operand.vmem [shape: f32[440,1], index: 6, kind: input, shape index: {}]
  %s7 = inlined_call_operand.vmem [shape: f32[32,32], index: 7, kind: input, shape index: {}]
  %s8 = inlined_call_operand.vmem [shape: f32[1,32], index: 8, kind: input, shape index: {}]
  %s9 = inlined_call_operand.vmem [shape: f32[32,128], index: 9, kind: input, shape index: {}]
  %s10 = inlined_call_operand.vmem [shape: f32[1,128], index: 10, kind: input, shape index: {}]
  %s11 = inlined_call_operand.hbm [shape: f32[2,1,128], index: 11, kind: output, shape index: {}]
  %s12 = sld [smem:[#allocation0]]
  $region77: #{dqn_forward.1} parent=0
    _
  %s14 = ssub.s32 1, %s12
  %s15 = scalar_select 0, %s14, %s12
  $region1: #{dqn_forward.1} parent=0
    #allocation3 [shape = 'u8[1024]{0}', space=vmem, size = 0x400, scoped, tag = 'output window, operand 0']
    #allocation4 [shape = 's32[2]{0}', space=sflag, size = 0x8, scoped, tag = 'scoped memory for dqn_forward.1']
    %16 = vsyncpa [#allocation4], 0
    %s17 = scalar_lea.sflag [#allocation4], 1
    %18 = vsyncpa %s17, 0
    loop: start=0, step=1, limit=4
    $region2: #{dqn_forward.1} parent=1 // loop_pre_header
      _
    $region3: #{dqn_forward.1} parent=1 // loop_header
      %s20 = sphi 0, %s24
      %p21 = scmp.ge.s32.totalorder %s20, 4
      %s30 = sphi 0, %s32
      %s33 = sphi 0, %s30
      %s34 = sphi 0, %s33
      %s50 = sphi 0, %s34
      %s54 = sphi 0, %s54
      %s56 = sphi 0, %s54
      %s57 = sphi 0, %s56
      %s71 = sphi 0, %s57
      %s75 = sphi 0, %s75
      %s77 = sphi 0, %s75
      %s78 = sphi 0, %s77
      %s92 = sphi 0, %s78
      %s96 = sphi 0, %s96
      %s98 = sphi 0, %s96
      %s99 = sphi 0, %s98
      %s113 = sphi 0, %s99
      %s117 = sphi 0, %s117
      %s119 = sphi 0, %s117
      %s120 = sphi 0, %s119
      %s134 = sphi 0, %s120
      %s138 = sphi 0, %s138
      %s140 = sphi 0, %s138
      %s141 = sphi 0, %s140
      %s155 = sphi 0, %s141
      %s159 = sphi 0, %s159
      %s161 = sphi 0, %s159
      %s162 = sphi 0, %s161
      %s176 = sphi 0, %s162
      %s180 = sphi 0, %s180
      %s182 = sphi 0, %s180
      %s183 = sphi 0, %s182
      %s197 = sphi 0, %s183
      %s201 = sphi 0, %s201
      %s203 = sphi 0, %s201
      %s204 = sphi 0, %s203
      %s218 = sphi 0, %s204
      %s222 = sphi 0, %s222
      %s224 = sphi 0, %s222
      %s225 = sphi 0, %s224
      %s239 = sphi 0, %s225
      %s243 = sphi 0, %s243
      %s245 = sphi 0, %s243
      %s246 = sphi 0, %s245
      %s260 = sphi 0, %s246
      %s266 = sphi 0, %s268
      %s269 = sphi 0, %s266
      %s270 = sphi 0, %s269
      %s286 = sphi 0, %s270
    $region4: #{dqn_forward.1} parent=1 // loop_header_branch
      %23 = sbr.rel (%p21) target = $region8
    $region5: #{dqn_forward.1} parent=1 // loop_body
      %s25 = ssub.s32 %s20, 1
      %s26 = ssub.s32 %s20, 2
      %s27 = sadd.s32 %s20, 1
      %s28 = ssub.s32 %s20, %s27
      %p29 = scmp.eq.s32.totalorder %s28, 0
      %s31 = sadd.s32 %s30, 1
      %s32 = scalar_select %p29, %s30, %s31
      %p35 = pneg %p29
      %p36 = scmp.eq.s32.totalorder %s20, 1
      %p37 = por %p35, %p36
      %p38 = scmp.ne.s32.totalorder %s30, %s33
      %p39 = scmp.eq.s32.totalorder %s20, 0
      %p40 = por %p38, %p39
      %p41 = scmp.ne.s32.totalorder %s30, %s33
      %p42 = scmp.eq.s32.totalorder %s25, 1
      %p43 = por %p41, %p42
      %p44 = scmp.ne.s32.totalorder %s33, %s34
      %p45 = scmp.eq.s32.totalorder %s25, 0
      %p46 = por %p44, %p45
      %p47 = scmp.ne.s32.totalorder %s33, %s34
      %p48 = scmp.eq.s32.totalorder %s26, 1
      %p49 = por %p47, %p48
      %p51 = scmp.ne.s32.totalorder %s34, %s50
      %p52 = scmp.eq.s32.totalorder %s26, 0
      %p53 = por %p51, %p52
      %s55 = sadd.s32 %s54, 1
      %p58 = scmp.eq.s32.totalorder %s20, 1
      %p59 = scmp.ne.s32.totalorder %s54, %s56
      %p60 = scmp.eq.s32.totalorder %s20, 0
      %p61 = por %p59, %p60
      %p62 = scmp.ne.s32.totalorder %s54, %s56
      %p63 = scmp.eq.s32.totalorder %s25, 1
      %p64 = por %p62, %p63
      %p65 = scmp.ne.s32.totalorder %s56, %s57
      %p66 = scmp.eq.s32.totalorder %s25, 0
      %p67 = por %p65, %p66
      %p68 = scmp.ne.s32.totalorder %s56, %s57
      %p69 = scmp.eq.s32.totalorder %s26, 1
      %p70 = por %p68, %p69
      %p72 = scmp.ne.s32.totalorder %s57, %s71
      %p73 = scmp.eq.s32.totalorder %s26, 0
      %p74 = por %p72, %p73
      %s76 = sadd.s32 %s75, 1
      %p79 = scmp.eq.s32.totalorder %s20, 1
      %p80 = scmp.ne.s32.totalorder %s75, %s77
      %p81 = scmp.eq.s32.totalorder %s20, 0
      %p82 = por %p80, %p81
      %p83 = scmp.ne.s32.totalorder %s75, %s77
      %p84 = scmp.eq.s32.totalorder %s25, 1
      %p85 = por %p83, %p84
      %p86 = scmp.ne.s32.totalorder %s77, %s78
      %p87 = scmp.eq.s32.totalorder %s25, 0
      %p88 = por %p86, %p87
      %p89 = scmp.ne.s32.totalorder %s77, %s78
      %p90 = scmp.eq.s32.totalorder %s26, 1
      %p91 = por %p89, %p90
      %p93 = scmp.ne.s32.totalorder %s78, %s92
      %p94 = scmp.eq.s32.totalorder %s26, 0
      %p95 = por %p93, %p94
      %s97 = sadd.s32 %s96, 1
      %p100 = scmp.eq.s32.totalorder %s20, 1
      %p101 = scmp.ne.s32.totalorder %s96, %s98
      %p102 = scmp.eq.s32.totalorder %s20, 0
      %p103 = por %p101, %p102
      %p104 = scmp.ne.s32.totalorder %s96, %s98
      %p105 = scmp.eq.s32.totalorder %s25, 1
      %p106 = por %p104, %p105
      %p107 = scmp.ne.s32.totalorder %s98, %s99
      %p108 = scmp.eq.s32.totalorder %s25, 0
      %p109 = por %p107, %p108
      %p110 = scmp.ne.s32.totalorder %s98, %s99
      %p111 = scmp.eq.s32.totalorder %s26, 1
      %p112 = por %p110, %p111
      %p114 = scmp.ne.s32.totalorder %s99, %s113
      %p115 = scmp.eq.s32.totalorder %s26, 0
      %p116 = por %p114, %p115
      %s118 = sadd.s32 %s117, 1
      %p121 = scmp.eq.s32.totalorder %s20, 1
      %p122 = scmp.ne.s32.totalorder %s117, %s119
      %p123 = scmp.eq.s32.totalorder %s20, 0
      %p124 = por %p122, %p123
      %p125 = scmp.ne.s32.totalorder %s117, %s119
      %p126 = scmp.eq.s32.totalorder %s25, 1
      %p127 = por %p125, %p126
      %p128 = scmp.ne.s32.totalorder %s119, %s120
      %p129 = scmp.eq.s32.totalorder %s25, 0
      %p130 = por %p128, %p129
      %p131 = scmp.ne.s32.totalorder %s119, %s120
      %p132 = scmp.eq.s32.totalorder %s26, 1
      %p133 = por %p131, %p132
      %p135 = scmp.ne.s32.totalorder %s120, %s134
      %p136 = scmp.eq.s32.totalorder %s26, 0
      %p137 = por %p135, %p136
      %s139 = sadd.s32 %s138, 1
      %p142 = scmp.eq.s32.totalorder %s20, 1
      %p143 = scmp.ne.s32.totalorder %s138, %s140
      %p144 = scmp.eq.s32.totalorder %s20, 0
      %p145 = por %p143, %p144
      %p146 = scmp.ne.s32.totalorder %s138, %s140
      %p147 = scmp.eq.s32.totalorder %s25, 1
      %p148 = por %p146, %p147
      %p149 = scmp.ne.s32.totalorder %s140, %s141
      %p150 = scmp.eq.s32.totalorder %s25, 0
      %p151 = por %p149, %p150
      %p152 = scmp.ne.s32.totalorder %s140, %s141
      %p153 = scmp.eq.s32.totalorder %s26, 1
      %p154 = por %p152, %p153
      %p156 = scmp.ne.s32.totalorder %s141, %s155
      %p157 = scmp.eq.s32.totalorder %s26, 0
      %p158 = por %p156, %p157
      %s160 = sadd.s32 %s159, 1
      %p163 = scmp.eq.s32.totalorder %s20, 1
      %p164 = scmp.ne.s32.totalorder %s159, %s161
      %p165 = scmp.eq.s32.totalorder %s20, 0
      %p166 = por %p164, %p165
      %p167 = scmp.ne.s32.totalorder %s159, %s161
      %p168 = scmp.eq.s32.totalorder %s25, 1
      %p169 = por %p167, %p168
      %p170 = scmp.ne.s32.totalorder %s161, %s162
      %p171 = scmp.eq.s32.totalorder %s25, 0
      %p172 = por %p170, %p171
      %p173 = scmp.ne.s32.totalorder %s161, %s162
      %p174 = scmp.eq.s32.totalorder %s26, 1
      %p175 = por %p173, %p174
      %p177 = scmp.ne.s32.totalorder %s162, %s176
      %p178 = scmp.eq.s32.totalorder %s26, 0
      %p179 = por %p177, %p178
      %s181 = sadd.s32 %s180, 1
      %p184 = scmp.eq.s32.totalorder %s20, 1
      %p185 = scmp.ne.s32.totalorder %s180, %s182
      %p186 = scmp.eq.s32.totalorder %s20, 0
      %p187 = por %p185, %p186
      %p188 = scmp.ne.s32.totalorder %s180, %s182
      %p189 = scmp.eq.s32.totalorder %s25, 1
      %p190 = por %p188, %p189
      %p191 = scmp.ne.s32.totalorder %s182, %s183
      %p192 = scmp.eq.s32.totalorder %s25, 0
      %p193 = por %p191, %p192
      %p194 = scmp.ne.s32.totalorder %s182, %s183
      %p195 = scmp.eq.s32.totalorder %s26, 1
      %p196 = por %p194, %p195
      %p198 = scmp.ne.s32.totalorder %s183, %s197
      %p199 = scmp.eq.s32.totalorder %s26, 0
      %p200 = por %p198, %p199
      %s202 = sadd.s32 %s201, 1
      %p205 = scmp.eq.s32.totalorder %s20, 1
      %p206 = scmp.ne.s32.totalorder %s201, %s203
      %p207 = scmp.eq.s32.totalorder %s20, 0
      %p208 = por %p206, %p207
      %p209 = scmp.ne.s32.totalorder %s201, %s203
      %p210 = scmp.eq.s32.totalorder %s25, 1
      %p211 = por %p209, %p210
      %p212 = scmp.ne.s32.totalorder %s203, %s204
      %p213 = scmp.eq.s32.totalorder %s25, 0
      %p214 = por %p212, %p213
      %p215 = scmp.ne.s32.totalorder %s203, %s204
      %p216 = scmp.eq.s32.totalorder %s26, 1
      %p217 = por %p215, %p216
      %p219 = scmp.ne.s32.totalorder %s204, %s218
      %p220 = scmp.eq.s32.totalorder %s26, 0
      %p221 = por %p219, %p220
      %s223 = sadd.s32 %s222, 1
      %p226 = scmp.eq.s32.totalorder %s20, 1
      %p227 = scmp.ne.s32.totalorder %s222, %s224
      %p228 = scmp.eq.s32.totalorder %s20, 0
      %p229 = por %p227, %p228
      %p230 = scmp.ne.s32.totalorder %s222, %s224
      %p231 = scmp.eq.s32.totalorder %s25, 1
      %p232 = por %p230, %p231
      %p233 = scmp.ne.s32.totalorder %s224, %s225
      %p234 = scmp.eq.s32.totalorder %s25, 0
      %p235 = por %p233, %p234
      %p236 = scmp.ne.s32.totalorder %s224, %s225
      %p237 = scmp.eq.s32.totalorder %s26, 1
      %p238 = por %p236, %p237
      %p240 = scmp.ne.s32.totalorder %s225, %s239
      %p241 = scmp.eq.s32.totalorder %s26, 0
      %p242 = por %p240, %p241
      %s244 = sadd.s32 %s243, 1
      %p247 = scmp.eq.s32.totalorder %s20, 1
      %p248 = scmp.ne.s32.totalorder %s243, %s245
      %p249 = scmp.eq.s32.totalorder %s20, 0
      %p250 = por %p248, %p249
      %p251 = scmp.ne.s32.totalorder %s243, %s245
      %p252 = scmp.eq.s32.totalorder %s25, 1
      %p253 = por %p251, %p252
      %p254 = scmp.ne.s32.totalorder %s245, %s246
      %p255 = scmp.eq.s32.totalorder %s25, 0
      %p256 = por %p254, %p255
      %p257 = scmp.ne.s32.totalorder %s245, %s246
      %p258 = scmp.eq.s32.totalorder %s26, 1
      %p259 = por %p257, %p258
      %p261 = scmp.ne.s32.totalorder %s246, %s260
      %p262 = scmp.eq.s32.totalorder %s26, 0
      %p263 = por %p261, %p262
      %s264 = ssub.s32 %s20, %s27
      %p265 = scmp.eq.s32.totalorder %s264, 0
      %s267 = sadd.s32 %s266, 1
      %s268 = scalar_select %p265, %s266, %s267
      %p271 = pneg %p265
      %p272 = scmp.eq.s32.totalorder %s20, 1
      %p273 = por %p271, %p272
      %p274 = scmp.ne.s32.totalorder %s266, %s269
      %p275 = scmp.eq.s32.totalorder %s20, 0
      %p276 = por %p274, %p275
      %p277 = scmp.ne.s32.totalorder %s266, %s269
      %p278 = scmp.eq.s32.totalorder %s25, 1
      %p279 = por %p277, %p278
      %p280 = scmp.ne.s32.totalorder %s269, %s270
      %p281 = scmp.eq.s32.totalorder %s25, 0
      %p282 = por %p280, %p281
      %p283 = scmp.ne.s32.totalorder %s269, %s270
      %p284 = scmp.eq.s32.totalorder %s26, 1
      %p285 = por %p283, %p284
      %p287 = scmp.ne.s32.totalorder %s270, %s286
      %p288 = scmp.eq.s32.totalorder %s26, 0
      %p289 = por %p287, %p288
      %p290 = scmp.le.s32.totalorder 1, %s20
      %p291 = scmp.lt.s32.totalorder %s20, 3
      %p292 = pnand %p290, %p291
      %p293 = pneg %p292
      // Predicated region
      $region9: #{dqn_forward.1} parent=5 // pred_check
        _
      $region10: #{dqn_forward.1} parent=5 // pred_check_branch
        %295 = sbr.rel (%p292) target = $region12
      $region11: #{dqn_forward.1} parent=5 // pred_region
        %s296 = ssub.s32 %s20, 1
        // Predicated region
        $region13: #{dqn_forward.1} parent=11 // pred_check
          %p297 = pneg %p67
        $region14: #{dqn_forward.1} parent=11 // pred_check_branch
          %299 = sbr.rel (%p297) target = $region16
        $region15: #{dqn_forward.1} parent=11 // pred_region
          _
        $region16: #{dqn_forward.1} parent=11 // pred_fallthru
          _
        // Predicated region
        $region17: #{dqn_forward.1} parent=11 // pred_check
          %p300 = pneg %p88
        $region18: #{dqn_forward.1} parent=11 // pred_check_branch
          %302 = sbr.rel (%p300) target = $region20
        $region19: #{dqn_forward.1} parent=11 // pred_region
          _
        $region20: #{dqn_forward.1} parent=11 // pred_fallthru
          _
        // Predicated region
        $region21: #{dqn_forward.1} parent=11 // pred_check
          %p303 = pneg %p109
        $region22: #{dqn_forward.1} parent=11 // pred_check_branch
          %305 = sbr.rel (%p303) target = $region24
        $region23: #{dqn_forward.1} parent=11 // pred_region
          _
        $region24: #{dqn_forward.1} parent=11 // pred_fallthru
          _
        // Predicated region
        $region25: #{dqn_forward.1} parent=11 // pred_check
          %p306 = pneg %p130
        $region26: #{dqn_forward.1} parent=11 // pred_check_branch
          %308 = sbr.rel (%p306) target = $region28
        $region27: #{dqn_forward.1} parent=11 // pred_region
          _
        $region28: #{dqn_forward.1} parent=11 // pred_fallthru
          _
        // Predicated region
        $region29: #{dqn_forward.1} parent=11 // pred_check
          %p309 = pneg %p151
        $region30: #{dqn_forward.1} parent=11 // pred_check_branch
          %311 = sbr.rel (%p309) target = $region32
        $region31: #{dqn_forward.1} parent=11 // pred_region
          _
        $region32: #{dqn_forward.1} parent=11 // pred_fallthru
          _
        // Predicated region
        $region33: #{dqn_forward.1} parent=11 // pred_check
          %p312 = pneg %p172
        $region34: #{dqn_forward.1} parent=11 // pred_check_branch
          %314 = sbr.rel (%p312) target = $region36
        $region35: #{dqn_forward.1} parent=11 // pred_region
          _
        $region36: #{dqn_forward.1} parent=11 // pred_fallthru
          _
        // Predicated region
        $region37: #{dqn_forward.1} parent=11 // pred_check
          %p315 = pneg %p193
        $region38: #{dqn_forward.1} parent=11 // pred_check_branch
          %317 = sbr.rel (%p315) target = $region40
        $region39: #{dqn_forward.1} parent=11 // pred_region
          _
        $region40: #{dqn_forward.1} parent=11 // pred_fallthru
          _
        // Predicated region
        $region41: #{dqn_forward.1} parent=11 // pred_check
          %p318 = pneg %p214
        $region42: #{dqn_forward.1} parent=11 // pred_check_branch
          %320 = sbr.rel (%p318) target = $region44
        $region43: #{dqn_forward.1} parent=11 // pred_region
          _
        $region44: #{dqn_forward.1} parent=11 // pred_fallthru
          _
        // Predicated region
        $region45: #{dqn_forward.1} parent=11 // pred_check
          %p321 = pneg %p235
        $region46: #{dqn_forward.1} parent=11 // pred_check_branch
          %323 = sbr.rel (%p321) target = $region48
        $region47: #{dqn_forward.1} parent=11 // pred_region
          _
        $region48: #{dqn_forward.1} parent=11 // pred_fallthru
          _
        // Predicated region
        $region49: #{dqn_forward.1} parent=11 // pred_check
          %p324 = pneg %p256
        $region50: #{dqn_forward.1} parent=11 // pred_check_branch
          %326 = sbr.rel (%p324) target = $region52
        $region51: #{dqn_forward.1} parent=11 // pred_region
          _
        $region52: #{dqn_forward.1} parent=11 // pred_fallthru
          _
      $region12: #{dqn_forward.1} parent=5 // pred_fallthru
        _
      %p327 = scmp.lt.s32.totalorder %s20, 2
      // Predicated region
      $region53: #{dqn_forward.1} parent=5 // pred_check
        %p328 = pneg %p327
      $region54: #{dqn_forward.1} parent=5 // pred_check_branch
        %330 = sbr.rel (%p328) target = $region56
      $region55: #{dqn_forward.1} parent=5 // pred_region
        // Predicated region
        $region57: #{dqn_forward.1} parent=55 // pred_check
          %p331 = pneg %p40
        $region58: #{dqn_forward.1} parent=55 // pred_check_branch
          %333 = sbr.rel (%p331) target = $region60
        $region59: #{dqn_forward.1} parent=55 // pred_region
          %p334 = scmp.lt.s32.totalorder %s20, 1
          %s335 = scalar_select %p334, %s20, 1
          %s336 = smul.addr %s335, 5
          %s337 = smul.addr %s336, 2
          %s338 = scalar_lea.vmem %s0, %s337
        $region60: #{dqn_forward.1} parent=55 // pred_fallthru
          _
      $region56: #{dqn_forward.1} parent=5 // pred_fallthru
        _
      %p339 = scmp.le.s32.totalorder 1, %s20
      %p340 = scmp.lt.s32.totalorder %s20, 3
      %p341 = pnand %p339, %p340
      %p342 = pneg %p341
      // Predicated region
      $region61: #{dqn_forward.1} parent=5 // pred_check
        _
      $region62: #{dqn_forward.1} parent=5 // pred_check_branch
        %344 = sbr.rel (%p341) target = $region64
      $region63: #{dqn_forward.1} parent=5 // pred_region
        %s345 = ssub.s32 %s20, 1
        %p346 = scmp.lt.s32.totalorder %s25, 1
        %s347 = scalar_select %p346, %s25, 1
        %s348 = smul.addr %s347, 5
        %s349 = smul.addr %s348, 2
        %s350 = scalar_lea.vmem %s0, %s349
        %p351 = pneg %p46
        %p352 = pneg %p43
        %p353 = pneg %p67
        %p354 = pneg %p64
        %p355 = pneg %p88
        %p356 = pneg %p85
        %p357 = pneg %p109
        %p358 = pneg %p106
        %p359 = pneg %p130
        %p360 = pneg %p127
        %p361 = pneg %p151
        %p362 = pneg %p148
        %p363 = pneg %p172
        %p364 = pneg %p169
        %p365 = pneg %p193
        %p366 = pneg %p190
        %p367 = pneg %p214
        %p368 = pneg %p211
        %p369 = pneg %p235
        %p370 = pneg %p232
        %p371 = pneg %p256
        %p372 = pneg %p253
        %p373 = pneg %p282
        %p374 = pneg %p279
        %s375 = sand.u32 %s269, 1
        %s376 = scalar_lea.sflag [#allocation4], %s375
        %s377 = sand.u32 %s269, 1
        %s378 = scalar_lea.vmem [#allocation3], %s377
        %p379 = scmp.lt.s32.totalorder %s25, 1
        %s380 = scalar_select %p379, %s25, 1
        %s381 = smul.addr %s380, 5
        %s382 = smul.addr %s381, 2
        %s383 = scalar_lea.vmem %s0, %s382
        %v385 = vld [vmem:[%s383] sm:$0xff]
        %v386 = vld [vmem:[%s1] sm:$0xf]
        %v387 = vld [vmem:[%s1 + $0x4] sm:$0xf]
        %s388 = scalar_lea.vmem %s1, 8
        %v389 = vld [vmem:[%s388] sm:$0xf]
        %v390 = vld [vmem:[%s388 + $0x4] sm:$0xf]
        %v393 = vunpack.c.l.b16 %v389
        %v394 = vunpack.c.l.b16 %v390
        %v395 = vpack.c.b16 %v394, %v393
        %v397 = vcombine.high %v385, %v385
        %v399 = vunpack.c.l.s4 1983009808
        %v400 = vunpack.c.0.s8 %v399
        %v401 = vlaneseq
        %v402 = vshrl.u32 %v401, 7
        %v403 = vsub.s32 %v400, %v402
        %v404 = vrot.slane %v385, %v403
        %v406 = vunpack.c.l.s4 1983009808
        %v407 = vunpack.c.0.s8 %v406
        %v408 = vlaneseq
        %v409 = vshrl.u32 %v408, 7
        %v410 = vsub.s32 %v407, %v409
        %v411 = vrot.slane %v397, %v410
        %v412 = vcombine.high %v404, %v404
        %v413 = vcombine.high %v411, %v411
        %414 = vrot.lane.b32.xlu0 %v404, 127
        %v415 = vpop.permute.xlu0 %414
        %416 = vrot.lane.b32.xlu0 %v412, 127
        %v417 = vpop.permute.xlu0 %416
        %418 = vrot.lane.b32.xlu0 %v411, 127
        %v419 = vpop.permute.xlu0 %418
        %420 = vrot.lane.b32.xlu0 %v413, 127
        %v421 = vpop.permute.xlu0 %420
        %vm422 = vcmask 1039360
        %v423 = vsel %vm422, %v415, %v417
        %v424 = vsel %vm422, %v417, %v419
        %v425 = vsel %vm422, %v419, %v421
        %vm426 = vcmask 31744
        %v428 = vsel %vm426, %v395, 0
        %vm430 = vcmask 1041408
        %v432 = vsel %vm430, %v423, 0
        %v435 = vsel %vm430, %v424, 0
        %v438 = vsel %vm430, %v425, 0
        %v441 = vsel %vm430, %v421, 0
        %443 = vmatprep.subr.bf16.mxu0 0
        %444 = vmatpush1.bf16.msra.mxu0 0
        %445 = vmatprep.subr.bf16.mxu0 0
        %446 = vmatpush1.bf16.msra.mxu0 0
        %447 = vmatprep.subr.bf16.mxu0 0
        %448 = vmatpush1.bf16.msra.mxu0 0
        %449 = vmatprep.subr.bf16.mxu0 0
        %450 = vmatpush1.bf16.msra.mxu0 0
        %451 = vmatprep.subr.bf16.mxu0 0
        %452 = vmatpush1.bf16.msra.mxu0 0
        %453 = vmatprep.subr.bf16.mxu0 0
        %454 = vmatpush1.bf16.msra.mxu0 0
        %455 = vmatprep.subr.bf16.mxu0 0
        %456 = vmatpush1.bf16.msra.mxu0 0
        %457 = vmatprep.subr.bf16.mxu0 %v435
        %458 = vmatpush1.bf16.msra.mxu0 %v432
        %459 = vmatprep.subr.bf16.mxu0 0
        %460 = vmatpush2.bf16.msra.mxu0 0
        %461 = vmatprep.subr.bf16.mxu0 0
        %462 = vmatpush2.bf16.msra.mxu0 0
        %463 = vmatprep.subr.bf16.mxu0 0
        %464 = vmatpush2.bf16.msra.mxu0 0
        %465 = vmatprep.subr.bf16.mxu0 0
        %466 = vmatpush2.bf16.msra.mxu0 0
        %467 = vmatprep.subr.bf16.mxu0 0
        %468 = vmatpush2.bf16.msra.mxu0 0
        %469 = vmatprep.subr.bf16.mxu0 0
        %470 = vmatpush2.bf16.msra.mxu0 0
        %471 = vmatprep.subr.bf16.mxu0 0
        %472 = vmatpush2.bf16.msra.mxu0 0
        %473 = vmatprep.subr.bf16.mxu0 0
        %474 = vmatpush2.bf16.msra.mxu0 0
        %475 = vmatprep.mubr.bf16.mxu0 0
        %476 = vmatmul.mubr.bf16.gmra.mxu0 %v428
        %v477 = vpop.f32.mrf.mxu0
        %v478 = vadd.f32 0.0, %v477
        %v479 = vpop.f32.mrf.mxu0
        %v480 = vadd.f32 0.0, %v479
        %v481 = vpop.f32.mrf.mxu0
        %v482 = vadd.f32 0.0, %v481
        %v483 = vpop.f32.mrf.mxu0
        %v484 = vadd.f32 0.0, %v483
        %485 = vdwg.mxu0
        %486 = vmatprep.subr.bf16.mxu0 0
        %487 = vmatpush1.bf16.msra.mxu0 0
        %488 = vmatprep.subr.bf16.mxu0 0
        %489 = vmatpush1.bf16.msra.mxu0 0
        %490 = vmatprep.subr.bf16.mxu0 0
        %491 = vmatpush1.bf16.msra.mxu0 0
        %492 = vmatprep.subr.bf16.mxu0 0
        %493 = vmatpush1.bf16.msra.mxu0 0
        %494 = vmatprep.subr.bf16.mxu0 0
        %495 = vmatpush1.bf16.msra.mxu0 0
        %496 = vmatprep.subr.bf16.mxu0 0
        %497 = vmatpush1.bf16.msra.mxu0 0
        %498 = vmatprep.subr.bf16.mxu0 0
        %499 = vmatpush1.bf16.msra.mxu0 0
        %500 = vmatprep.subr.bf16.mxu0 %v441
        %501 = vmatpush1.bf16.msra.mxu0 %v438
        %502 = vmatprep.subr.bf16.mxu0 0
        %503 = vmatpush2.bf16.msra.mxu0 0
        %504 = vmatprep.subr.bf16.mxu0 0
        %505 = vmatpush2.bf16.msra.mxu0 0
        %506 = vmatprep.subr.bf16.mxu0 0
        %507 = vmatpush2.bf16.msra.mxu0 0
        %508 = vmatprep.subr.bf16.mxu0 0
        %509 = vmatpush2.bf16.msra.mxu0 0
        %510 = vmatprep.subr.bf16.mxu0 0
        %511 = vmatpush2.bf16.msra.mxu0 0
        %512 = vmatprep.subr.bf16.mxu0 0
        %513 = vmatpush2.bf16.msra.mxu0 0
        %514 = vmatprep.subr.bf16.mxu0 0
        %515 = vmatpush2.bf16.msra.mxu0 0
        %516 = vmatprep.subr.bf16.mxu0 0
        %517 = vmatpush2.bf16.msra.mxu0 0
        %518 = vmatprep.mubr.bf16.mxu0 0
        %519 = vmatmul.mubr.bf16.gmra.mxu0 %v428
        %v520 = vpop.f32.mrf.mxu0
        %v521 = vadd.f32 0.0, %v520
        %v522 = vpop.f32.mrf.mxu0
        %v523 = vadd.f32 0.0, %v522
        %v524 = vpop.f32.mrf.mxu0
        %v525 = vadd.f32 0.0, %v524
        %v526 = vpop.f32.mrf.mxu0
        %v527 = vadd.f32 0.0, %v526
        %528 = vdwg.mxu0
        %v531 = vunpack.c.l.b16 %v386
        %v532 = vunpack.c.l.b16 %v387
        %v533 = vpack.c.b16 %v532, %v531
        %v535 = vsel %vm426, %v533, 0
        %v538 = vsel %vm430, %v404, 0
        %v541 = vsel %vm430, %v412, 0
        %v544 = vsel %vm430, %v411, 0
        %v547 = vsel %vm430, %v413, 0
        %549 = vmatprep.subr.bf16.mxu0 0
        %550 = vmatpush1.bf16.msra.mxu0 0
        %551 = vmatprep.subr.bf16.mxu0 0
        %552 = vmatpush1.bf16.msra.mxu0 0
        %553 = vmatprep.subr.bf16.mxu0 0
        %554 = vmatpush1.bf16.msra.mxu0 0
        %555 = vmatprep.subr.bf16.mxu0 0
        %556 = vmatpush1.bf16.msra.mxu0 0
        %557 = vmatprep.subr.bf16.mxu0 0
        %558 = vmatpush1.bf16.msra.mxu0 0
        %559 = vmatprep.subr.bf16.mxu0 0
        %560 = vmatpush1.bf16.msra.mxu0 0
        %561 = vmatprep.subr.bf16.mxu0 0
        %562 = vmatpush1.bf16.msra.mxu0 0
        %563 = vmatprep.subr.bf16.mxu0 %v541
        %564 = vmatpush1.bf16.msra.mxu0 %v538
        %565 = vmatprep.subr.bf16.mxu0 0
        %566 = vmatpush2.bf16.msra.mxu0 0
        %567 = vmatprep.subr.bf16.mxu0 0
        %568 = vmatpush2.bf16.msra.mxu0 0
        %569 = vmatprep.subr.bf16.mxu0 0
        %570 = vmatpush2.bf16.msra.mxu0 0
        %571 = vmatprep.subr.bf16.mxu0 0
        %572 = vmatpush2.bf16.msra.mxu0 0
        %573 = vmatprep.subr.bf16.mxu0 0
        %574 = vmatpush2.bf16.msra.mxu0 0
        %575 = vmatprep.subr.bf16.mxu0 0
        %576 = vmatpush2.bf16.msra.mxu0 0
        %577 = vmatprep.subr.bf16.mxu0 0
        %578 = vmatpush2.bf16.msra.mxu0 0
        %579 = vmatprep.subr.bf16.mxu0 0
        %580 = vmatpush2.bf16.msra.mxu0 0
        %581 = vmatprep.mubr.bf16.mxu0 0
        %582 = vmatmul.mubr.bf16.gmra.mxu0 %v535
        %v583 = vpop.f32.mrf.mxu0
        %v584 = vadd.f32 %v478, %v583
        %v585 = vpop.f32.mrf.mxu0
        %v586 = vadd.f32 %v480, %v585
        %v587 = vpop.f32.mrf.mxu0
        %v588 = vadd.f32 %v482, %v587
        %v589 = vpop.f32.mrf.mxu0
        %v590 = vadd.f32 %v484, %v589
        %591 = vdwg.mxu0
        %592 = vmatprep.subr.bf16.mxu0 0
        %593 = vmatpush1.bf16.msra.mxu0 0
        %594 = vmatprep.subr.bf16.mxu0 0
        %595 = vmatpush1.bf16.msra.mxu0 0
        %596 = vmatprep.subr.bf16.mxu0 0
        %597 = vmatpush1.bf16.msra.mxu0 0
        %598 = vmatprep.subr.bf16.mxu0 0
        %599 = vmatpush1.bf16.msra.mxu0 0
        %600 = vmatprep.subr.bf16.mxu0 0
        %601 = vmatpush1.bf16.msra.mxu0 0
        %602 = vmatprep.subr.bf16.mxu0 0
        %603 = vmatpush1.bf16.msra.mxu0 0
        %604 = vmatprep.subr.bf16.mxu0 0
        %605 = vmatpush1.bf16.msra.mxu0 0
        %606 = vmatprep.subr.bf16.mxu0 %v547
        %607 = vmatpush1.bf16.msra.mxu0 %v544
        %608 = vmatprep.subr.bf16.mxu0 0
        %609 = vmatpush2.bf16.msra.mxu0 0
        %610 = vmatprep.subr.bf16.mxu0 0
        %611 = vmatpush2.bf16.msra.mxu0 0
        %612 = vmatprep.subr.bf16.mxu0 0
        %613 = vmatpush2.bf16.msra.mxu0 0
        %614 = vmatprep.subr.bf16.mxu0 0
        %615 = vmatpush2.bf16.msra.mxu0 0
        %616 = vmatprep.subr.bf16.mxu0 0
        %617 = vmatpush2.bf16.msra.mxu0 0
        %618 = vmatprep.subr.bf16.mxu0 0
        %619 = vmatpush2.bf16.msra.mxu0 0
        %620 = vmatprep.subr.bf16.mxu0 0
        %621 = vmatpush2.bf16.msra.mxu0 0
        %622 = vmatprep.subr.bf16.mxu0 0
        %623 = vmatpush2.bf16.msra.mxu0 0
        %624 = vmatprep.mubr.bf16.mxu0 0
        %625 = vmatmul.mubr.bf16.gmra.mxu0 %v535
        %v626 = vpop.f32.mrf.mxu0
        %v627 = vadd.f32 %v521, %v626
        %v628 = vpop.f32.mrf.mxu0
        %v629 = vadd.f32 %v523, %v628
        %v630 = vpop.f32.mrf.mxu0
        %v631 = vadd.f32 %v525, %v630
        %v632 = vpop.f32.mrf.mxu0
        %v633 = vadd.f32 %v527, %v632
        %634 = vdwg.mxu0
        %v635 = vld [vmem:[%s383] sm:$0xff]
        %s636 = scalar_lea.vmem %s1, 16
        %v637 = vld [vmem:[%s636] sm:$0xf]
        %v638 = vld [vmem:[%s636 + $0x4] sm:$0xf]
        %v641 = vunpack.c.l.b16 %v637
        %v642 = vunpack.c.l.b16 %v638
        %v643 = vpack.c.b16 %v642, %v641
        %v645 = vcombine.high %v635, %v635
        %v647 = vunpack.c.l.s4 1983009808
        %v648 = vunpack.c.0.s8 %v647
        %v649 = vlaneseq
        %v650 = vshrl.u32 %v649, 7
        %v651 = vsub.s32 %v648, %v650
        %v652 = vrot.slane %v635, %v651
        %v654 = vunpack.c.l.s4 1983009808
        %v655 = vunpack.c.0.s8 %v654
        %v656 = vlaneseq
        %v657 = vshrl.u32 %v656, 7
        %v658 = vsub.s32 %v655, %v657
        %v659 = vrot.slane %v645, %v658
        %v660 = vcombine.high %v652, %v652
        %v661 = vcombine.high %v659, %v659
        %662 = vrot.lane.b32.xlu0 %v652, 126
        %v663 = vpop.permute.xlu0 %662
        %664 = vrot.lane.b32.xlu0 %v660, 126
        %v665 = vpop.permute.xlu0 %664
        %666 = vrot.lane.b32.xlu0 %v659, 126
        %v667 = vpop.permute.xlu0 %666
        %668 = vrot.lane.b32.xlu0 %v661, 126
        %v669 = vpop.permute.xlu0 %668
        %vm670 = vcmask 1031168
        %v671 = vsel %vm670, %v663, %v665
        %v672 = vsel %vm670, %v665, %v667
        %v673 = vsel %vm670, %v667, %v669
        %v675 = vsel %vm426, %v643, 0
        %v678 = vsel %vm430, %v671, 0
        %v681 = vsel %vm430, %v672, 0
        %v684 = vsel %vm430, %v673, 0
        %v687 = vsel %vm430, %v669, 0
        %689 = vmatprep.subr.bf16.mxu0 0
        %690 = vmatpush1.bf16.msra.mxu0 0
        %691 = vmatprep.subr.bf16.mxu0 0
        %692 = vmatpush1.bf16.msra.mxu0 0
        %693 = vmatprep.subr.bf16.mxu0 0
        %694 = vmatpush1.bf16.msra.mxu0 0
        %695 = vmatprep.subr.bf16.mxu0 0
        %696 = vmatpush1.bf16.msra.mxu0 0
        %697 = vmatprep.subr.bf16.mxu0 0
        %698 = vmatpush1.bf16.msra.mxu0 0
        %699 = vmatprep.subr.bf16.mxu0 0
        %700 = vmatpush1.bf16.msra.mxu0 0
        %701 = vmatprep.subr.bf16.mxu0 0
        %702 = vmatpush1.bf16.msra.mxu0 0
        %703 = vmatprep.subr.bf16.mxu0 %v681
        %704 = vmatpush1.bf16.msra.mxu0 %v678
        %705 = vmatprep.subr.bf16.mxu0 0
        %706 = vmatpush2.bf16.msra.mxu0 0
        %707 = vmatprep.subr.bf16.mxu0 0
        %708 = vmatpush2.bf16.msra.mxu0 0
        %709 = vmatprep.subr.bf16.mxu0 0
        %710 = vmatpush2.bf16.msra.mxu0 0
        %711 = vmatprep.subr.bf16.mxu0 0
        %712 = vmatpush2.bf16.msra.mxu0 0
        %713 = vmatprep.subr.bf16.mxu0 0
        %714 = vmatpush2.bf16.msra.mxu0 0
        %715 = vmatprep.subr.bf16.mxu0 0
        %716 = vmatpush2.bf16.msra.mxu0 0
        %717 = vmatprep.subr.bf16.mxu0 0
        %718 = vmatpush2.bf16.msra.mxu0 0
        %719 = vmatprep.subr.bf16.mxu0 0
        %720 = vmatpush2.bf16.msra.mxu0 0
        %721 = vmatprep.mubr.bf16.mxu0 0
        %722 = vmatmul.mubr.bf16.gmra.mxu0 %v675
        %v723 = vpop.f32.mrf.mxu0
        %v724 = vadd.f32 0.0, %v723
        %v725 = vpop.f32.mrf.mxu0
        %v726 = vadd.f32 0.0, %v725
        %v727 = vpop.f32.mrf.mxu0
        %v728 = vadd.f32 0.0, %v727
        %v729 = vpop.f32.mrf.mxu0
        %v730 = vadd.f32 0.0, %v729
        %731 = vdwg.mxu0
        %732 = vmatprep.subr.bf16.mxu0 0
        %733 = vmatpush1.bf16.msra.mxu0 0
        %734 = vmatprep.subr.bf16.mxu0 0
        %735 = vmatpush1.bf16.msra.mxu0 0
        %736 = vmatprep.subr.bf16.mxu0 0
        %737 = vmatpush1.bf16.msra.mxu0 0
        %738 = vmatprep.subr.bf16.mxu0 0
        %739 = vmatpush1.bf16.msra.mxu0 0
        %740 = vmatprep.subr.bf16.mxu0 0
        %741 = vmatpush1.bf16.msra.mxu0 0
        %742 = vmatprep.subr.bf16.mxu0 0
        %743 = vmatpush1.bf16.msra.mxu0 0
        %744 = vmatprep.subr.bf16.mxu0 0
        %745 = vmatpush1.bf16.msra.mxu0 0
        %746 = vmatprep.subr.bf16.mxu0 %v687
        %747 = vmatpush1.bf16.msra.mxu0 %v684
        %748 = vmatprep.subr.bf16.mxu0 0
        %749 = vmatpush2.bf16.msra.mxu0 0
        %750 = vmatprep.subr.bf16.mxu0 0
        %751 = vmatpush2.bf16.msra.mxu0 0
        %752 = vmatprep.subr.bf16.mxu0 0
        %753 = vmatpush2.bf16.msra.mxu0 0
        %754 = vmatprep.subr.bf16.mxu0 0
        %755 = vmatpush2.bf16.msra.mxu0 0
        %756 = vmatprep.subr.bf16.mxu0 0
        %757 = vmatpush2.bf16.msra.mxu0 0
        %758 = vmatprep.subr.bf16.mxu0 0
        %759 = vmatpush2.bf16.msra.mxu0 0
        %760 = vmatprep.subr.bf16.mxu0 0
        %761 = vmatpush2.bf16.msra.mxu0 0
        %762 = vmatprep.subr.bf16.mxu0 0
        %763 = vmatpush2.bf16.msra.mxu0 0
        %764 = vmatprep.mubr.bf16.mxu0 0
        %765 = vmatmul.mubr.bf16.gmra.mxu0 %v675
        %v766 = vpop.f32.mrf.mxu0
        %v767 = vadd.f32 0.0, %v766
        %v768 = vpop.f32.mrf.mxu0
        %v769 = vadd.f32 0.0, %v768
        %v770 = vpop.f32.mrf.mxu0
        %v771 = vadd.f32 0.0, %v770
        %v772 = vpop.f32.mrf.mxu0
        %v773 = vadd.f32 0.0, %v772
        %774 = vdwg.mxu0
        %v775 = vadd.f32 %v584, %v724
        %v776 = vadd.f32 %v586, %v726
        %v777 = vadd.f32 %v627, %v767
        %v778 = vadd.f32 %v629, %v769
        %v779 = vadd.f32 %v588, %v728
        %v780 = vadd.f32 %v590, %v730
        %v781 = vadd.f32 %v631, %v771
        %v782 = vadd.f32 %v633, %v773
        %v783 = vld [vmem:[%s383] sm:$0xff]
        %v784 = vld [vmem:[%s383 + $0x8] sm:$0x3]
        %s785 = scalar_lea.vmem %s1, 24
        %v786 = vld [vmem:[%s785] sm:$0xf]
        %v787 = vld [vmem:[%s785 + $0x4] sm:$0xf]
        %v790 = vunpack.c.l.b16 %v786
        %v791 = vunpack.c.l.b16 %v787
        %v792 = vpack.c.b16 %v791, %v790
        %v795 = vcombine.high %v783, %v783
        %v797 = vunpack.c.l.s4 1983009808
        %v798 = vunpack.c.0.s8 %v797
        %v799 = vlaneseq
        %v800 = vshrl.u32 %v799, 7
        %v801 = vsub.s32 %v798, %v800
        %v802 = vrot.slane %v783, %v801
        %v804 = vunpack.c.l.s4 1983009808
        %v805 = vunpack.c.0.s8 %v804
        %v806 = vlaneseq
        %v807 = vshrl.u32 %v806, 7
        %v808 = vsub.s32 %v805, %v807
        %v809 = vrot.slane %v795, %v808
        %v810 = vcombine.high %v802, %v802
        %v811 = vcombine.high %v809, %v809
        %v813 = vunpack.c.l.s4 1983009808
        %v814 = vunpack.c.0.s8 %v813
        %v815 = vlaneseq
        %v816 = vshrl.u32 %v815, 7
        %v817 = vsub.s32 %v814, %v816
        %v818 = vrot.slane %v784, %v817
        %819 = vrot.lane.b32.xlu0 %v802, 108
        %v820 = vpop.permute.xlu0 %819
        %821 = vrot.lane.b32.xlu0 %v810, 108
        %v822 = vpop.permute.xlu0 %821
        %823 = vrot.lane.b32.xlu0 %v809, 108
        %v824 = vpop.permute.xlu0 %823
        %825 = vrot.lane.b32.xlu0 %v811, 108
        %v826 = vpop.permute.xlu0 %825
        %827 = vrot.lane.b32.xlu0 %v818, 108
        %v828 = vpop.permute.xlu0 %827
        %vm829 = vcmask 883712
        %v830 = vsel %vm829, %v820, %v822
        %v831 = vsel %vm829, %v822, %v824
        %v832 = vsel %vm829, %v824, %v826
        %v833 = vsel %vm829, %v826, %v828
        %v835 = vsel %vm426, %v792, 0
        %v838 = vsel %vm430, %v830, 0
        %v841 = vsel %vm430, %v831, 0
        %v844 = vsel %vm430, %v832, 0
        %v847 = vsel %vm430, %v833, 0
        %849 = vmatprep.subr.bf16.mxu0 0
        %850 = vmatpush1.bf16.msra.mxu0 0
        %851 = vmatprep.subr.bf16.mxu0 0
        %852 = vmatpush1.bf16.msra.mxu0 0
        %853 = vmatprep.subr.bf16.mxu0 0
        %854 = vmatpush1.bf16.msra.mxu0 0
        %855 = vmatprep.subr.bf16.mxu0 0
        %856 = vmatpush1.bf16.msra.mxu0 0
        %857 = vmatprep.subr.bf16.mxu0 0
        %858 = vmatpush1.bf16.msra.mxu0 0
        %859 = vmatprep.subr.bf16.mxu0 0
        %860 = vmatpush1.bf16.msra.mxu0 0
        %861 = vmatprep.subr.bf16.mxu0 0
        %862 = vmatpush1.bf16.msra.mxu0 0
        %863 = vmatprep.subr.bf16.mxu0 %v841
        %864 = vmatpush1.bf16.msra.mxu0 %v838
        %865 = vmatprep.subr.bf16.mxu0 0
        %866 = vmatpush2.bf16.msra.mxu0 0
        %867 = vmatprep.subr.bf16.mxu0 0
        %868 = vmatpush2.bf16.msra.mxu0 0
        %869 = vmatprep.subr.bf16.mxu0 0
        %870 = vmatpush2.bf16.msra.mxu0 0
        %871 = vmatprep.subr.bf16.mxu0 0
        %872 = vmatpush2.bf16.msra.mxu0 0
        %873 = vmatprep.subr.bf16.mxu0 0
        %874 = vmatpush2.bf16.msra.mxu0 0
        %875 = vmatprep.subr.bf16.mxu0 0
        %876 = vmatpush2.bf16.msra.mxu0 0
        %877 = vmatprep.subr.bf16.mxu0 0
        %878 = vmatpush2.bf16.msra.mxu0 0
        %879 = vmatprep.subr.bf16.mxu0 0
        %880 = vmatpush2.bf16.msra.mxu0 0
        %881 = vmatprep.mubr.bf16.mxu0 0
        %882 = vmatmul.mubr.bf16.gmra.mxu0 %v835
        %v883 = vpop.f32.mrf.mxu0
        %v884 = vadd.f32 0.0, %v883
        %v885 = vpop.f32.mrf.mxu0
        %v886 = vadd.f32 0.0, %v885
        %v887 = vpop.f32.mrf.mxu0
        %v888 = vadd.f32 0.0, %v887
        %v889 = vpop.f32.mrf.mxu0
        %v890 = vadd.f32 0.0, %v889
        %891 = vdwg.mxu0
        %892 = vmatprep.subr.bf16.mxu0 0
        %893 = vmatpush1.bf16.msra.mxu0 0
        %894 = vmatprep.subr.bf16.mxu0 0
        %895 = vmatpush1.bf16.msra.mxu0 0
        %896 = vmatprep.subr.bf16.mxu0 0
        %897 = vmatpush1.bf16.msra.mxu0 0
        %898 = vmatprep.subr.bf16.mxu0 0
        %899 = vmatpush1.bf16.msra.mxu0 0
        %900 = vmatprep.subr.bf16.mxu0 0
        %901 = vmatpush1.bf16.msra.mxu0 0
        %902 = vmatprep.subr.bf16.mxu0 0
        %903 = vmatpush1.bf16.msra.mxu0 0
        %904 = vmatprep.subr.bf16.mxu0 0
        %905 = vmatpush1.bf16.msra.mxu0 0
        %906 = vmatprep.subr.bf16.mxu0 %v847
        %907 = vmatpush1.bf16.msra.mxu0 %v844
        %908 = vmatprep.subr.bf16.mxu0 0
        %909 = vmatpush2.bf16.msra.mxu0 0
        %910 = vmatprep.subr.bf16.mxu0 0
        %911 = vmatpush2.bf16.msra.mxu0 0
        %912 = vmatprep.subr.bf16.mxu0 0
        %913 = vmatpush2.bf16.msra.mxu0 0
        %914 = vmatprep.subr.bf16.mxu0 0
        %915 = vmatpush2.bf16.msra.mxu0 0
        %916 = vmatprep.subr.bf16.mxu0 0
        %917 = vmatpush2.bf16.msra.mxu0 0
        %918 = vmatprep.subr.bf16.mxu0 0
        %919 = vmatpush2.bf16.msra.mxu0 0
        %920 = vmatprep.subr.bf16.mxu0 0
        %921 = vmatpush2.bf16.msra.mxu0 0
        %922 = vmatprep.subr.bf16.mxu0 0
        %923 = vmatpush2.bf16.msra.mxu0 0
        %924 = vmatprep.mubr.bf16.mxu0 0
        %925 = vmatmul.mubr.bf16.gmra.mxu0 %v835
        %v926 = vpop.f32.mrf.mxu0
        %v927 = vadd.f32 0.0, %v926
        %v928 = vpop.f32.mrf.mxu0
        %v929 = vadd.f32 0.0, %v928
        %v930 = vpop.f32.mrf.mxu0
        %v931 = vadd.f32 0.0, %v930
        %v932 = vpop.f32.mrf.mxu0
        %v933 = vadd.f32 0.0, %v932
        %934 = vdwg.mxu0
        %v935 = vadd.f32 %v775, %v884
        %v936 = vadd.f32 %v776, %v886
        %v937 = vadd.f32 %v777, %v927
        %v938 = vadd.f32 %v778, %v929
        %v939 = vadd.f32 %v779, %v888
        %v940 = vadd.f32 %v780, %v890
        %v941 = vadd.f32 %v781, %v931
        %v942 = vadd.f32 %v782, %v933
        %v943 = vld [vmem:[%s383] sm:$0xff]
        %v944 = vld [vmem:[%s383 + $0x8] sm:$0x3]
        %s945 = scalar_lea.vmem %s1, 32
        %v946 = vld [vmem:[%s945] sm:$0xf]
        %v947 = vld [vmem:[%s945 + $0x4] sm:$0xf]
        %v950 = vunpack.c.l.b16 %v946
        %v951 = vunpack.c.l.b16 %v947
        %v952 = vpack.c.b16 %v951, %v950
        %v955 = vcombine.high %v943, %v943
        %v957 = vunpack.c.l.s4 1983009808
        %v958 = vunpack.c.0.s8 %v957
        %v959 = vlaneseq
        %v960 = vshrl.u32 %v959, 7
        %v961 = vsub.s32 %v958, %v960
        %v962 = vrot.slane %v943, %v961
        %v964 = vunpack.c.l.s4 1983009808
        %v965 = vunpack.c.0.s8 %v964
        %v966 = vlaneseq
        %v967 = vshrl.u32 %v966, 7
        %v968 = vsub.s32 %v965, %v967
        %v969 = vrot.slane %v955, %v968
        %v970 = vcombine.high %v962, %v962
        %v971 = vcombine.high %v969, %v969
        %v973 = vunpack.c.l.s4 1983009808
        %v974 = vunpack.c.0.s8 %v973
        %v975 = vlaneseq
        %v976 = vshrl.u32 %v975, 7
        %v977 = vsub.s32 %v974, %v976
        %v978 = vrot.slane %v944, %v977
        %979 = vrot.lane.b32.xlu0 %v962, 107
        %v980 = vpop.permute.xlu0 %979
        %981 = vrot.lane.b32.xlu0 %v970, 107
        %v982 = vpop.permute.xlu0 %981
        %983 = vrot.lane.b32.xlu0 %v969, 107
        %v984 = vpop.permute.xlu0 %983
        %985 = vrot.lane.b32.xlu0 %v971, 107
        %v986 = vpop.permute.xlu0 %985
        %987 = vrot.lane.b32.xlu0 %v978, 107
        %v988 = vpop.permute.xlu0 %987
        %vm989 = vcmask 875520
        %v990 = vsel %vm989, %v980, %v982
        %v991 = vsel %vm989, %v982, %v984
        %v992 = vsel %vm989, %v984, %v986
        %v993 = vsel %vm989, %v986, %v988
        %v995 = vsel %vm426, %v952, 0
        %v998 = vsel %vm430, %v990, 0
        %v1001 = vsel %vm430, %v991, 0
        %v1004 = vsel %vm430, %v992, 0
        %v1007 = vsel %vm430, %v993, 0
        %1009 = vmatprep.subr.bf16.mxu0 0
        %1010 = vmatpush1.bf16.msra.mxu0 0
        %1011 = vmatprep.subr.bf16.mxu0 0
        %1012 = vmatpush1.bf16.msra.mxu0 0
        %1013 = vmatprep.subr.bf16.mxu0 0
        %1014 = vmatpush1.bf16.msra.mxu0 0
        %1015 = vmatprep.subr.bf16.mxu0 0
        %1016 = vmatpush1.bf16.msra.mxu0 0
        %1017 = vmatprep.subr.bf16.mxu0 0
        %1018 = vmatpush1.bf16.msra.mxu0 0
        %1019 = vmatprep.subr.bf16.mxu0 0
        %1020 = vmatpush1.bf16.msra.mxu0 0
        %1021 = vmatprep.subr.bf16.mxu0 0
        %1022 = vmatpush1.bf16.msra.mxu0 0
        %1023 = vmatprep.subr.bf16.mxu0 %v1001
        %1024 = vmatpush1.bf16.msra.mxu0 %v998
        %1025 = vmatprep.subr.bf16.mxu0 0
        %1026 = vmatpush2.bf16.msra.mxu0 0
        %1027 = vmatprep.subr.bf16.mxu0 0
        %1028 = vmatpush2.bf16.msra.mxu0 0
        %1029 = vmatprep.subr.bf16.mxu0 0
        %1030 = vmatpush2.bf16.msra.mxu0 0
        %1031 = vmatprep.subr.bf16.mxu0 0
        %1032 = vmatpush2.bf16.msra.mxu0 0
        %1033 = vmatprep.subr.bf16.mxu0 0
        %1034 = vmatpush2.bf16.msra.mxu0 0
        %1035 = vmatprep.subr.bf16.mxu0 0
        %1036 = vmatpush2.bf16.msra.mxu0 0
        %1037 = vmatprep.subr.bf16.mxu0 0
        %1038 = vmatpush2.bf16.msra.mxu0 0
        %1039 = vmatprep.subr.bf16.mxu0 0
        %1040 = vmatpush2.bf16.msra.mxu0 0
        %1041 = vmatprep.mubr.bf16.mxu0 0
        %1042 = vmatmul.mubr.bf16.gmra.mxu0 %v995
        %v1043 = vpop.f32.mrf.mxu0
        %v1044 = vadd.f32 0.0, %v1043
        %v1045 = vpop.f32.mrf.mxu0
        %v1046 = vadd.f32 0.0, %v1045
        %v1047 = vpop.f32.mrf.mxu0
        %v1048 = vadd.f32 0.0, %v1047
        %v1049 = vpop.f32.mrf.mxu0
        %v1050 = vadd.f32 0.0, %v1049
        %1051 = vdwg.mxu0
        %1052 = vmatprep.subr.bf16.mxu0 0
        %1053 = vmatpush1.bf16.msra.mxu0 0
        %1054 = vmatprep.subr.bf16.mxu0 0
        %1055 = vmatpush1.bf16.msra.mxu0 0
        %1056 = vmatprep.subr.bf16.mxu0 0
        %1057 = vmatpush1.bf16.msra.mxu0 0
        %1058 = vmatprep.subr.bf16.mxu0 0
        %1059 = vmatpush1.bf16.msra.mxu0 0
        %1060 = vmatprep.subr.bf16.mxu0 0
        %1061 = vmatpush1.bf16.msra.mxu0 0
        %1062 = vmatprep.subr.bf16.mxu0 0
        %1063 = vmatpush1.bf16.msra.mxu0 0
        %1064 = vmatprep.subr.bf16.mxu0 0
        %1065 = vmatpush1.bf16.msra.mxu0 0
        %1066 = vmatprep.subr.bf16.mxu0 %v1007
        %1067 = vmatpush1.bf16.msra.mxu0 %v1004
        %1068 = vmatprep.subr.bf16.mxu0 0
        %1069 = vmatpush2.bf16.msra.mxu0 0
        %1070 = vmatprep.subr.bf16.mxu0 0
        %1071 = vmatpush2.bf16.msra.mxu0 0
        %1072 = vmatprep.subr.bf16.mxu0 0
        %1073 = vmatpush2.bf16.msra.mxu0 0
        %1074 = vmatprep.subr.bf16.mxu0 0
        %1075 = vmatpush2.bf16.msra.mxu0 0
        %1076 = vmatprep.subr.bf16.mxu0 0
        %1077 = vmatpush2.bf16.msra.mxu0 0
        %1078 = vmatprep.subr.bf16.mxu0 0
        %1079 = vmatpush2.bf16.msra.mxu0 0
        %1080 = vmatprep.subr.bf16.mxu0 0
        %1081 = vmatpush2.bf16.msra.mxu0 0
        %1082 = vmatprep.subr.bf16.mxu0 0
        %1083 = vmatpush2.bf16.msra.mxu0 0
        %1084 = vmatprep.mubr.bf16.mxu0 0
        %1085 = vmatmul.mubr.bf16.gmra.mxu0 %v995
        %v1086 = vpop.f32.mrf.mxu0
        %v1087 = vadd.f32 0.0, %v1086
        %v1088 = vpop.f32.mrf.mxu0
        %v1089 = vadd.f32 0.0, %v1088
        %v1090 = vpop.f32.mrf.mxu0
        %v1091 = vadd.f32 0.0, %v1090
        %v1092 = vpop.f32.mrf.mxu0
        %v1093 = vadd.f32 0.0, %v1092
        %1094 = vdwg.mxu0
        %v1095 = vadd.f32 %v935, %v1044
        %v1096 = vadd.f32 %v936, %v1046
        %v1097 = vadd.f32 %v937, %v1087
        %v1098 = vadd.f32 %v938, %v1089
        %v1099 = vadd.f32 %v939, %v1048
        %v1100 = vadd.f32 %v940, %v1050
        %v1101 = vadd.f32 %v941, %v1091
        %v1102 = vadd.f32 %v942, %v1093
        %v1103 = vld [vmem:[%s383] sm:$0xff]
        %v1104 = vld [vmem:[%s383 + $0x8] sm:$0x3]
        %s1105 = scalar_lea.vmem %s1, 40
        %v1106 = vld [vmem:[%s1105] sm:$0xf]
        %v1107 = vld [vmem:[%s1105 + $0x4] sm:$0xf]
        %v1110 = vunpack.c.l.b16 %v1106
        %v1111 = vunpack.c.l.b16 %v1107
        %v1112 = vpack.c.b16 %v1111, %v1110
        %v1115 = vcombine.high %v1103, %v1103
        %v1117 = vunpack.c.l.s4 1983009808
        %v1118 = vunpack.c.0.s8 %v1117
        %v1119 = vlaneseq
        %v1120 = vshrl.u32 %v1119, 7
        %v1121 = vsub.s32 %v1118, %v1120
        %v1122 = vrot.slane %v1103, %v1121
        %v1124 = vunpack.c.l.s4 1983009808
        %v1125 = vunpack.c.0.s8 %v1124
        %v1126 = vlaneseq
        %v1127 = vshrl.u32 %v1126, 7
        %v1128 = vsub.s32 %v1125, %v1127
        %v1129 = vrot.slane %v1115, %v1128
        %v1130 = vcombine.high %v1122, %v1122
        %v1131 = vcombine.high %v1129, %v1129
        %v1133 = vunpack.c.l.s4 1983009808
        %v1134 = vunpack.c.0.s8 %v1133
        %v1135 = vlaneseq
        %v1136 = vshrl.u32 %v1135, 7
        %v1137 = vsub.s32 %v1134, %v1136
        %v1138 = vrot.slane %v1104, %v1137
        %1139 = vrot.lane.b32.xlu0 %v1122, 106
        %v1140 = vpop.permute.xlu0 %1139
        %1141 = vrot.lane.b32.xlu0 %v1130, 106
        %v1142 = vpop.permute.xlu0 %1141
        %1143 = vrot.lane.b32.xlu0 %v1129, 106
        %v1144 = vpop.permute.xlu0 %1143
        %1145 = vrot.lane.b32.xlu0 %v1131, 106
        %v1146 = vpop.permute.xlu0 %1145
        %1147 = vrot.lane.b32.xlu0 %v1138, 106
        %v1148 = vpop.permute.xlu0 %1147
        %vm1149 = vcmask 867328
        %v1150 = vsel %vm1149, %v1140, %v1142
        %v1151 = vsel %vm1149, %v1142, %v1144
        %v1152 = vsel %vm1149, %v1144, %v1146
        %v1153 = vsel %vm1149, %v1146, %v1148
        %v1155 = vsel %vm426, %v1112, 0
        %v1158 = vsel %vm430, %v1150, 0
        %v1161 = vsel %vm430, %v1151, 0
        %v1164 = vsel %vm430, %v1152, 0
        %v1167 = vsel %vm430, %v1153, 0
        %1169 = vmatprep.subr.bf16.mxu0 0
        %1170 = vmatpush1.bf16.msra.mxu0 0
        %1171 = vmatprep.subr.bf16.mxu0 0
        %1172 = vmatpush1.bf16.msra.mxu0 0
        %1173 = vmatprep.subr.bf16.mxu0 0
        %1174 = vmatpush1.bf16.msra.mxu0 0
        %1175 = vmatprep.subr.bf16.mxu0 0
        %1176 = vmatpush1.bf16.msra.mxu0 0
        %1177 = vmatprep.subr.bf16.mxu0 0
        %1178 = vmatpush1.bf16.msra.mxu0 0
        %1179 = vmatprep.subr.bf16.mxu0 0
        %1180 = vmatpush1.bf16.msra.mxu0 0
        %1181 = vmatprep.subr.bf16.mxu0 0
        %1182 = vmatpush1.bf16.msra.mxu0 0
        %1183 = vmatprep.subr.bf16.mxu0 %v1161
        %1184 = vmatpush1.bf16.msra.mxu0 %v1158
        %1185 = vmatprep.subr.bf16.mxu0 0
        %1186 = vmatpush2.bf16.msra.mxu0 0
        %1187 = vmatprep.subr.bf16.mxu0 0
        %1188 = vmatpush2.bf16.msra.mxu0 0
        %1189 = vmatprep.subr.bf16.mxu0 0
        %1190 = vmatpush2.bf16.msra.mxu0 0
        %1191 = vmatprep.subr.bf16.mxu0 0
        %1192 = vmatpush2.bf16.msra.mxu0 0
        %1193 = vmatprep.subr.bf16.mxu0 0
        %1194 = vmatpush2.bf16.msra.mxu0 0
        %1195 = vmatprep.subr.bf16.mxu0 0
        %1196 = vmatpush2.bf16.msra.mxu0 0
        %1197 = vmatprep.subr.bf16.mxu0 0
        %1198 = vmatpush2.bf16.msra.mxu0 0
        %1199 = vmatprep.subr.bf16.mxu0 0
        %1200 = vmatpush2.bf16.msra.mxu0 0
        %1201 = vmatprep.mubr.bf16.mxu0 0
        %1202 = vmatmul.mubr.bf16.gmra.mxu0 %v1155
        %v1203 = vpop.f32.mrf.mxu0
        %v1204 = vadd.f32 0.0, %v1203
        %v1205 = vpop.f32.mrf.mxu0
        %v1206 = vadd.f32 0.0, %v1205
        %v1207 = vpop.f32.mrf.mxu0
        %v1208 = vadd.f32 0.0, %v1207
        %v1209 = vpop.f32.mrf.mxu0
        %v1210 = vadd.f32 0.0, %v1209
        %1211 = vdwg.mxu0
        %1212 = vmatprep.subr.bf16.mxu0 0
        %1213 = vmatpush1.bf16.msra.mxu0 0
        %1214 = vmatprep.subr.bf16.mxu0 0
        %1215 = vmatpush1.bf16.msra.mxu0 0
        %1216 = vmatprep.subr.bf16.mxu0 0
        %1217 = vmatpush1.bf16.msra.mxu0 0
        %1218 = vmatprep.subr.bf16.mxu0 0
        %1219 = vmatpush1.bf16.msra.mxu0 0
        %1220 = vmatprep.subr.bf16.mxu0 0
        %1221 = vmatpush1.bf16.msra.mxu0 0
        %1222 = vmatprep.subr.bf16.mxu0 0
        %1223 = vmatpush1.bf16.msra.mxu0 0
        %1224 = vmatprep.subr.bf16.mxu0 0
        %1225 = vmatpush1.bf16.msra.mxu0 0
        %1226 = vmatprep.subr.bf16.mxu0 %v1167
        %1227 = vmatpush1.bf16.msra.mxu0 %v1164
        %1228 = vmatprep.subr.bf16.mxu0 0
        %1229 = vmatpush2.bf16.msra.mxu0 0
        %1230 = vmatprep.subr.bf16.mxu0 0
        %1231 = vmatpush2.bf16.msra.mxu0 0
        %1232 = vmatprep.subr.bf16.mxu0 0
        %1233 = vmatpush2.bf16.msra.mxu0 0
        %1234 = vmatprep.subr.bf16.mxu0 0
        %1235 = vmatpush2.bf16.msra.mxu0 0
        %1236 = vmatprep.subr.bf16.mxu0 0
        %1237 = vmatpush2.bf16.msra.mxu0 0
        %1238 = vmatprep.subr.bf16.mxu0 0
        %1239 = vmatpush2.bf16.msra.mxu0 0
        %1240 = vmatprep.subr.bf16.mxu0 0
        %1241 = vmatpush2.bf16.msra.mxu0 0
        %1242 = vmatprep.subr.bf16.mxu0 0
        %1243 = vmatpush2.bf16.msra.mxu0 0
        %1244 = vmatprep.mubr.bf16.mxu0 0
        %1245 = vmatmul.mubr.bf16.gmra.mxu0 %v1155
        %v1246 = vpop.f32.mrf.mxu0
        %v1247 = vadd.f32 0.0, %v1246
        %v1248 = vpop.f32.mrf.mxu0
        %v1249 = vadd.f32 0.0, %v1248
        %v1250 = vpop.f32.mrf.mxu0
        %v1251 = vadd.f32 0.0, %v1250
        %v1252 = vpop.f32.mrf.mxu0
        %v1253 = vadd.f32 0.0, %v1252
        %1254 = vdwg.mxu0
        %v1255 = vadd.f32 %v1095, %v1204
        %v1256 = vadd.f32 %v1096, %v1206
        %v1257 = vadd.f32 %v1097, %v1247
        %v1258 = vadd.f32 %v1098, %v1249
        %v1259 = vadd.f32 %v1099, %v1208
        %v1260 = vadd.f32 %v1100, %v1210
        %v1261 = vadd.f32 %v1101, %v1251
        %v1262 = vadd.f32 %v1102, %v1253
        %v1263 = vld [vmem:[%s383] sm:$0xff]
        %v1264 = vld [vmem:[%s383 + $0x8] sm:$0x3]
        %s1265 = scalar_lea.vmem %s1, 48
        %v1266 = vld [vmem:[%s1265] sm:$0xf]
        %v1267 = vld [vmem:[%s1265 + $0x4] sm:$0xf]
        %v1270 = vunpack.c.l.b16 %v1266
        %v1271 = vunpack.c.l.b16 %v1267
        %v1272 = vpack.c.b16 %v1271, %v1270
        %v1275 = vcombine.high %v1263, %v1263
        %v1277 = vunpack.c.l.s4 1983009808
        %v1278 = vunpack.c.0.s8 %v1277
        %v1279 = vlaneseq
        %v1280 = vshrl.u32 %v1279, 7
        %v1281 = vsub.s32 %v1278, %v1280
        %v1282 = vrot.slane %v1263, %v1281
        %v1284 = vunpack.c.l.s4 1983009808
        %v1285 = vunpack.c.0.s8 %v1284
        %v1286 = vlaneseq
        %v1287 = vshrl.u32 %v1286, 7
        %v1288 = vsub.s32 %v1285, %v1287
        %v1289 = vrot.slane %v1275, %v1288
        %v1290 = vcombine.high %v1282, %v1282
        %v1291 = vcombine.high %v1289, %v1289
        %v1293 = vunpack.c.l.s4 1983009808
        %v1294 = vunpack.c.0.s8 %v1293
        %v1295 = vlaneseq
        %v1296 = vshrl.u32 %v1295, 7
        %v1297 = vsub.s32 %v1294, %v1296
        %v1298 = vrot.slane %v1264, %v1297
        %1299 = vrot.lane.b32.xlu0 %v1282, 88
        %v1300 = vpop.permute.xlu0 %1299
        %1301 = vrot.lane.b32.xlu0 %v1290, 88
        %v1302 = vpop.permute.xlu0 %1301
        %1303 = vrot.lane.b32.xlu0 %v1289, 88
        %v1304 = vpop.permute.xlu0 %1303
        %1305 = vrot.lane.b32.xlu0 %v1291, 88
        %v1306 = vpop.permute.xlu0 %1305
        %1307 = vrot.lane.b32.xlu0 %v1298, 88
        %v1308 = vpop.permute.xlu0 %1307
        %vm1309 = vcmask 719872
        %v1310 = vsel %vm1309, %v1300, %v1302
        %v1311 = vsel %vm1309, %v1302, %v1304
        %v1312 = vsel %vm1309, %v1304, %v1306
        %v1313 = vsel %vm1309, %v1306, %v1308
        %v1315 = vsel %vm426, %v1272, 0
        %v1318 = vsel %vm430, %v1310, 0
        %v1321 = vsel %vm430, %v1311, 0
        %v1324 = vsel %vm430, %v1312, 0
        %v1327 = vsel %vm430, %v1313, 0
        %1329 = vmatprep.subr.bf16.mxu0 0
        %1330 = vmatpush1.bf16.msra.mxu0 0
        %1331 = vmatprep.subr.bf16.mxu0 0
        %1332 = vmatpush1.bf16.msra.mxu0 0
        %1333 = vmatprep.subr.bf16.mxu0 0
        %1334 = vmatpush1.bf16.msra.mxu0 0
        %1335 = vmatprep.subr.bf16.mxu0 0
        %1336 = vmatpush1.bf16.msra.mxu0 0
        %1337 = vmatprep.subr.bf16.mxu0 0
        %1338 = vmatpush1.bf16.msra.mxu0 0
        %1339 = vmatprep.subr.bf16.mxu0 0
        %1340 = vmatpush1.bf16.msra.mxu0 0
        %1341 = vmatprep.subr.bf16.mxu0 0
        %1342 = vmatpush1.bf16.msra.mxu0 0
        %1343 = vmatprep.subr.bf16.mxu0 %v1321
        %1344 = vmatpush1.bf16.msra.mxu0 %v1318
        %1345 = vmatprep.subr.bf16.mxu0 0
        %1346 = vmatpush2.bf16.msra.mxu0 0
        %1347 = vmatprep.subr.bf16.mxu0 0
        %1348 = vmatpush2.bf16.msra.mxu0 0
        %1349 = vmatprep.subr.bf16.mxu0 0
        %1350 = vmatpush2.bf16.msra.mxu0 0
        %1351 = vmatprep.subr.bf16.mxu0 0
        %1352 = vmatpush2.bf16.msra.mxu0 0
        %1353 = vmatprep.subr.bf16.mxu0 0
        %1354 = vmatpush2.bf16.msra.mxu0 0
        %1355 = vmatprep.subr.bf16.mxu0 0
        %1356 = vmatpush2.bf16.msra.mxu0 0
        %1357 = vmatprep.subr.bf16.mxu0 0
        %1358 = vmatpush2.bf16.msra.mxu0 0
        %1359 = vmatprep.subr.bf16.mxu0 0
        %1360 = vmatpush2.bf16.msra.mxu0 0
        %1361 = vmatprep.mubr.bf16.mxu0 0
        %1362 = vmatmul.mubr.bf16.gmra.mxu0 %v1315
        %v1363 = vpop.f32.mrf.mxu0
        %v1364 = vadd.f32 0.0, %v1363
        %v1365 = vpop.f32.mrf.mxu0
        %v1366 = vadd.f32 0.0, %v1365
        %v1367 = vpop.f32.mrf.mxu0
        %v1368 = vadd.f32 0.0, %v1367
        %v1369 = vpop.f32.mrf.mxu0
        %v1370 = vadd.f32 0.0, %v1369
        %1371 = vdwg.mxu0
        %1372 = vmatprep.subr.bf16.mxu0 0
        %1373 = vmatpush1.bf16.msra.mxu0 0
        %1374 = vmatprep.subr.bf16.mxu0 0
        %1375 = vmatpush1.bf16.msra.mxu0 0
        %1376 = vmatprep.subr.bf16.mxu0 0
        %1377 = vmatpush1.bf16.msra.mxu0 0
        %1378 = vmatprep.subr.bf16.mxu0 0
        %1379 = vmatpush1.bf16.msra.mxu0 0
        %1380 = vmatprep.subr.bf16.mxu0 0
        %1381 = vmatpush1.bf16.msra.mxu0 0
        %1382 = vmatprep.subr.bf16.mxu0 0
        %1383 = vmatpush1.bf16.msra.mxu0 0
        %1384 = vmatprep.subr.bf16.mxu0 0
        %1385 = vmatpush1.bf16.msra.mxu0 0
        %1386 = vmatprep.subr.bf16.mxu0 %v1327
        %1387 = vmatpush1.bf16.msra.mxu0 %v1324
        %1388 = vmatprep.subr.bf16.mxu0 0
        %1389 = vmatpush2.bf16.msra.mxu0 0
        %1390 = vmatprep.subr.bf16.mxu0 0
        %1391 = vmatpush2.bf16.msra.mxu0 0
        %1392 = vmatprep.subr.bf16.mxu0 0
        %1393 = vmatpush2.bf16.msra.mxu0 0
        %1394 = vmatprep.subr.bf16.mxu0 0
        %1395 = vmatpush2.bf16.msra.mxu0 0
        %1396 = vmatprep.subr.bf16.mxu0 0
        %1397 = vmatpush2.bf16.msra.mxu0 0
        %1398 = vmatprep.subr.bf16.mxu0 0
        %1399 = vmatpush2.bf16.msra.mxu0 0
        %1400 = vmatprep.subr.bf16.mxu0 0
        %1401 = vmatpush2.bf16.msra.mxu0 0
        %1402 = vmatprep.subr.bf16.mxu0 0
        %1403 = vmatpush2.bf16.msra.mxu0 0
        %1404 = vmatprep.mubr.bf16.mxu0 0
        %1405 = vmatmul.mubr.bf16.gmra.mxu0 %v1315
        %v1406 = vpop.f32.mrf.mxu0
        %v1407 = vadd.f32 0.0, %v1406
        %v1408 = vpop.f32.mrf.mxu0
        %v1409 = vadd.f32 0.0, %v1408
        %v1410 = vpop.f32.mrf.mxu0
        %v1411 = vadd.f32 0.0, %v1410
        %v1412 = vpop.f32.mrf.mxu0
        %v1413 = vadd.f32 0.0, %v1412
        %1414 = vdwg.mxu0
        %v1415 = vadd.f32 %v1255, %v1364
        %v1416 = vadd.f32 %v1256, %v1366
        %v1417 = vadd.f32 %v1257, %v1407
        %v1418 = vadd.f32 %v1258, %v1409
        %v1419 = vadd.f32 %v1259, %v1368
        %v1420 = vadd.f32 %v1260, %v1370
        %v1421 = vadd.f32 %v1261, %v1411
        %v1422 = vadd.f32 %v1262, %v1413
        %v1423 = vld [vmem:[%s383] sm:$0xff]
        %v1424 = vld [vmem:[%s383 + $0x8] sm:$0x3]
        %s1425 = scalar_lea.vmem %s1, 56
        %v1426 = vld [vmem:[%s1425] sm:$0xf]
        %v1427 = vld [vmem:[%s1425 + $0x4] sm:$0xf]
        %v1430 = vunpack.c.l.b16 %v1426
        %v1431 = vunpack.c.l.b16 %v1427
        %v1432 = vpack.c.b16 %v1431, %v1430
        %v1435 = vcombine.high %v1423, %v1423
        %v1437 = vunpack.c.l.s4 1983009808
        %v1438 = vunpack.c.0.s8 %v1437
        %v1439 = vlaneseq
        %v1440 = vshrl.u32 %v1439, 7
        %v1441 = vsub.s32 %v1438, %v1440
        %v1442 = vrot.slane %v1423, %v1441
        %v1444 = vunpack.c.l.s4 1983009808
        %v1445 = vunpack.c.0.s8 %v1444
        %v1446 = vlaneseq
        %v1447 = vshrl.u32 %v1446, 7
        %v1448 = vsub.s32 %v1445, %v1447
        %v1449 = vrot.slane %v1435, %v1448
        %v1450 = vcombine.high %v1442, %v1442
        %v1451 = vcombine.high %v1449, %v1449
        %v1453 = vunpack.c.l.s4 1983009808
        %v1454 = vunpack.c.0.s8 %v1453
        %v1455 = vlaneseq
        %v1456 = vshrl.u32 %v1455, 7
        %v1457 = vsub.s32 %v1454, %v1456
        %v1458 = vrot.slane %v1424, %v1457
        %1459 = vrot.lane.b32.xlu0 %v1442, 87
        %v1460 = vpop.permute.xlu0 %1459
        %1461 = vrot.lane.b32.xlu0 %v1450, 87
        %v1462 = vpop.permute.xlu0 %1461
        %1463 = vrot.lane.b32.xlu0 %v1449, 87
        %v1464 = vpop.permute.xlu0 %1463
        %1465 = vrot.lane.b32.xlu0 %v1451, 87
        %v1466 = vpop.permute.xlu0 %1465
        %1467 = vrot.lane.b32.xlu0 %v1458, 87
        %v1468 = vpop.permute.xlu0 %1467
        %vm1469 = vcmask 711680
        %v1470 = vsel %vm1469, %v1460, %v1462
        %v1471 = vsel %vm1469, %v1462, %v1464
        %v1472 = vsel %vm1469, %v1464, %v1466
        %v1473 = vsel %vm1469, %v1466, %v1468
        %v1475 = vsel %vm426, %v1432, 0
        %v1478 = vsel %vm430, %v1470, 0
        %v1481 = vsel %vm430, %v1471, 0
        %v1484 = vsel %vm430, %v1472, 0
        %v1487 = vsel %vm430, %v1473, 0
        %1489 = vmatprep.subr.bf16.mxu0 0
        %1490 = vmatpush1.bf16.msra.mxu0 0
        %1491 = vmatprep.subr.bf16.mxu0 0
        %1492 = vmatpush1.bf16.msra.mxu0 0
        %1493 = vmatprep.subr.bf16.mxu0 0
        %1494 = vmatpush1.bf16.msra.mxu0 0
        %1495 = vmatprep.subr.bf16.mxu0 0
        %1496 = vmatpush1.bf16.msra.mxu0 0
        %1497 = vmatprep.subr.bf16.mxu0 0
        %1498 = vmatpush1.bf16.msra.mxu0 0
        %1499 = vmatprep.subr.bf16.mxu0 0
        %1500 = vmatpush1.bf16.msra.mxu0 0
        %1501 = vmatprep.subr.bf16.mxu0 0
        %1502 = vmatpush1.bf16.msra.mxu0 0
        %1503 = vmatprep.subr.bf16.mxu0 %v1481
        %1504 = vmatpush1.bf16.msra.mxu0 %v1478
        %1505 = vmatprep.subr.bf16.mxu0 0
        %1506 = vmatpush2.bf16.msra.mxu0 0
        %1507 = vmatprep.subr.bf16.mxu0 0
        %1508 = vmatpush2.bf16.msra.mxu0 0
        %1509 = vmatprep.subr.bf16.mxu0 0
        %1510 = vmatpush2.bf16.msra.mxu0 0
        %1511 = vmatprep.subr.bf16.mxu0 0
        %1512 = vmatpush2.bf16.msra.mxu0 0
        %1513 = vmatprep.subr.bf16.mxu0 0
        %1514 = vmatpush2.bf16.msra.mxu0 0
        %1515 = vmatprep.subr.bf16.mxu0 0
        %1516 = vmatpush2.bf16.msra.mxu0 0
        %1517 = vmatprep.subr.bf16.mxu0 0
        %1518 = vmatpush2.bf16.msra.mxu0 0
        %1519 = vmatprep.subr.bf16.mxu0 0
        %1520 = vmatpush2.bf16.msra.mxu0 0
        %1521 = vmatprep.mubr.bf16.mxu0 0
        %1522 = vmatmul.mubr.bf16.gmra.mxu0 %v1475
        %v1523 = vpop.f32.mrf.mxu0
        %v1524 = vadd.f32 0.0, %v1523
        %v1525 = vpop.f32.mrf.mxu0
        %v1526 = vadd.f32 0.0, %v1525
        %v1527 = vpop.f32.mrf.mxu0
        %v1528 = vadd.f32 0.0, %v1527
        %v1529 = vpop.f32.mrf.mxu0
        %v1530 = vadd.f32 0.0, %v1529
        %1531 = vdwg.mxu0
        %1532 = vmatprep.subr.bf16.mxu0 0
        %1533 = vmatpush1.bf16.msra.mxu0 0
        %1534 = vmatprep.subr.bf16.mxu0 0
        %1535 = vmatpush1.bf16.msra.mxu0 0
        %1536 = vmatprep.subr.bf16.mxu0 0
        %1537 = vmatpush1.bf16.msra.mxu0 0
        %1538 = vmatprep.subr.bf16.mxu0 0
        %1539 = vmatpush1.bf16.msra.mxu0 0
        %1540 = vmatprep.subr.bf16.mxu0 0
        %1541 = vmatpush1.bf16.msra.mxu0 0
        %1542 = vmatprep.subr.bf16.mxu0 0
        %1543 = vmatpush1.bf16.msra.mxu0 0
        %1544 = vmatprep.subr.bf16.mxu0 0
        %1545 = vmatpush1.bf16.msra.mxu0 0
        %1546 = vmatprep.subr.bf16.mxu0 %v1487
        %1547 = vmatpush1.bf16.msra.mxu0 %v1484
        %1548 = vmatprep.subr.bf16.mxu0 0
        %1549 = vmatpush2.bf16.msra.mxu0 0
        %1550 = vmatprep.subr.bf16.mxu0 0
        %1551 = vmatpush2.bf16.msra.mxu0 0
        %1552 = vmatprep.subr.bf16.mxu0 0
        %1553 = vmatpush2.bf16.msra.mxu0 0
        %1554 = vmatprep.subr.bf16.mxu0 0
        %1555 = vmatpush2.bf16.msra.mxu0 0
        %1556 = vmatprep.subr.bf16.mxu0 0
        %1557 = vmatpush2.bf16.msra.mxu0 0
        %1558 = vmatprep.subr.bf16.mxu0 0
        %1559 = vmatpush2.bf16.msra.mxu0 0
        %1560 = vmatprep.subr.bf16.mxu0 0
        %1561 = vmatpush2.bf16.msra.mxu0 0
        %1562 = vmatprep.subr.bf16.mxu0 0
        %1563 = vmatpush2.bf16.msra.mxu0 0
        %1564 = vmatprep.mubr.bf16.mxu0 0
        %1565 = vmatmul.mubr.bf16.gmra.mxu0 %v1475
        %v1566 = vpop.f32.mrf.mxu0
        %v1567 = vadd.f32 0.0, %v1566
        %v1568 = vpop.f32.mrf.mxu0
        %v1569 = vadd.f32 0.0, %v1568
        %v1570 = vpop.f32.mrf.mxu0
        %v1571 = vadd.f32 0.0, %v1570
        %v1572 = vpop.f32.mrf.mxu0
        %v1573 = vadd.f32 0.0, %v1572
        %1574 = vdwg.mxu0
        %v1575 = vadd.f32 %v1415, %v1524
        %v1576 = vadd.f32 %v1416, %v1526
        %v1577 = vadd.f32 %v1417, %v1567
        %v1578 = vadd.f32 %v1418, %v1569
        %v1579 = vadd.f32 %v1419, %v1528
        %v1580 = vadd.f32 %v1420, %v1530
        %v1581 = vadd.f32 %v1421, %v1571
        %v1582 = vadd.f32 %v1422, %v1573
        %v1583 = vld [vmem:[%s383] sm:$0xff]
        %v1584 = vld [vmem:[%s383 + $0x8] sm:$0x3]
        %s1585 = scalar_lea.vmem %s1, 64
        %v1586 = vld [vmem:[%s1585] sm:$0xf]
        %v1587 = vld [vmem:[%s1585 + $0x4] sm:$0xf]
        %v1590 = vunpack.c.l.b16 %v1586
        %v1591 = vunpack.c.l.b16 %v1587
        %v1592 = vpack.c.b16 %v1591, %v1590
        %v1595 = vcombine.high %v1583, %v1583
        %v1597 = vunpack.c.l.s4 1983009808
        %v1598 = vunpack.c.0.s8 %v1597
        %v1599 = vlaneseq
        %v1600 = vshrl.u32 %v1599, 7
        %v1601 = vsub.s32 %v1598, %v1600
        %v1602 = vrot.slane %v1583, %v1601
        %v1604 = vunpack.c.l.s4 1983009808
        %v1605 = vunpack.c.0.s8 %v1604
        %v1606 = vlaneseq
        %v1607 = vshrl.u32 %v1606, 7
        %v1608 = vsub.s32 %v1605, %v1607
        %v1609 = vrot.slane %v1595, %v1608
        %v1610 = vcombine.high %v1602, %v1602
        %v1611 = vcombine.high %v1609, %v1609
        %v1613 = vunpack.c.l.s4 1983009808
        %v1614 = vunpack.c.0.s8 %v1613
        %v1615 = vlaneseq
        %v1616 = vshrl.u32 %v1615, 7
        %v1617 = vsub.s32 %v1614, %v1616
        %v1618 = vrot.slane %v1584, %v1617
        %1619 = vrot.lane.b32.xlu0 %v1602, 86
        %v1620 = vpop.permute.xlu0 %1619
        %1621 = vrot.lane.b32.xlu0 %v1610, 86
        %v1622 = vpop.permute.xlu0 %1621
        %1623 = vrot.lane.b32.xlu0 %v1609, 86
        %v1624 = vpop.permute.xlu0 %1623
        %1625 = vrot.lane.b32.xlu0 %v1611, 86
        %v1626 = vpop.permute.xlu0 %1625
        %1627 = vrot.lane.b32.xlu0 %v1618, 86
        %v1628 = vpop.permute.xlu0 %1627
        %vm1629 = vcmask 703488
        %v1630 = vsel %vm1629, %v1620, %v1622
        %v1631 = vsel %vm1629, %v1622, %v1624
        %v1632 = vsel %vm1629, %v1624, %v1626
        %v1633 = vsel %vm1629, %v1626, %v1628
        %v1635 = vsel %vm426, %v1592, 0
        %v1638 = vsel %vm430, %v1630, 0
        %v1641 = vsel %vm430, %v1631, 0
        %v1644 = vsel %vm430, %v1632, 0
        %v1647 = vsel %vm430, %v1633, 0
        %1649 = vmatprep.subr.bf16.mxu0 0
        %1650 = vmatpush1.bf16.msra.mxu0 0
        %1651 = vmatprep.subr.bf16.mxu0 0
        %1652 = vmatpush1.bf16.msra.mxu0 0
        %1653 = vmatprep.subr.bf16.mxu0 0
        %1654 = vmatpush1.bf16.msra.mxu0 0
        %1655 = vmatprep.subr.bf16.mxu0 0
        %1656 = vmatpush1.bf16.msra.mxu0 0
        %1657 = vmatprep.subr.bf16.mxu0 0
        %1658 = vmatpush1.bf16.msra.mxu0 0
        %1659 = vmatprep.subr.bf16.mxu0 0
        %1660 = vmatpush1.bf16.msra.mxu0 0
        %1661 = vmatprep.subr.bf16.mxu0 0
        %1662 = vmatpush1.bf16.msra.mxu0 0
        %1663 = vmatprep.subr.bf16.mxu0 %v1641
        %1664 = vmatpush1.bf16.msra.mxu0 %v1638
        %1665 = vmatprep.subr.bf16.mxu0 0
        %1666 = vmatpush2.bf16.msra.mxu0 0
        %1667 = vmatprep.subr.bf16.mxu0 0
        %1668 = vmatpush2.bf16.msra.mxu0 0
        %1669 = vmatprep.subr.bf16.mxu0 0
        %1670 = vmatpush2.bf16.msra.mxu0 0
        %1671 = vmatprep.subr.bf16.mxu0 0
        %1672 = vmatpush2.bf16.msra.mxu0 0
        %1673 = vmatprep.subr.bf16.mxu0 0
        %1674 = vmatpush2.bf16.msra.mxu0 0
        %1675 = vmatprep.subr.bf16.mxu0 0
        %1676 = vmatpush2.bf16.msra.mxu0 0
        %1677 = vmatprep.subr.bf16.mxu0 0
        %1678 = vmatpush2.bf16.msra.mxu0 0
        %1679 = vmatprep.subr.bf16.mxu0 0
        %1680 = vmatpush2.bf16.msra.mxu0 0
        %1681 = vmatprep.mubr.bf16.mxu0 0
        %1682 = vmatmul.mubr.bf16.gmra.mxu0 %v1635
        %v1683 = vpop.f32.mrf.mxu0
        %v1684 = vadd.f32 0.0, %v1683
        %v1685 = vpop.f32.mrf.mxu0
        %v1686 = vadd.f32 0.0, %v1685
        %v1687 = vpop.f32.mrf.mxu0
        %v1688 = vadd.f32 0.0, %v1687
        %v1689 = vpop.f32.mrf.mxu0
        %v1690 = vadd.f32 0.0, %v1689
        %1691 = vdwg.mxu0
        %1692 = vmatprep.subr.bf16.mxu0 0
        %1693 = vmatpush1.bf16.msra.mxu0 0
        %1694 = vmatprep.subr.bf16.mxu0 0
        %1695 = vmatpush1.bf16.msra.mxu0 0
        %1696 = vmatprep.subr.bf16.mxu0 0
        %1697 = vmatpush1.bf16.msra.mxu0 0
        %1698 = vmatprep.subr.bf16.mxu0 0
        %1699 = vmatpush1.bf16.msra.mxu0 0
        %1700 = vmatprep.subr.bf16.mxu0 0
        %1701 = vmatpush1.bf16.msra.mxu0 0
        %1702 = vmatprep.subr.bf16.mxu0 0
        %1703 = vmatpush1.bf16.msra.mxu0 0
        %1704 = vmatprep.subr.bf16.mxu0 0
        %1705 = vmatpush1.bf16.msra.mxu0 0
        %1706 = vmatprep.subr.bf16.mxu0 %v1647
        %1707 = vmatpush1.bf16.msra.mxu0 %v1644
        %1708 = vmatprep.subr.bf16.mxu0 0
        %1709 = vmatpush2.bf16.msra.mxu0 0
        %1710 = vmatprep.subr.bf16.mxu0 0
        %1711 = vmatpush2.bf16.msra.mxu0 0
        %1712 = vmatprep.subr.bf16.mxu0 0
        %1713 = vmatpush2.bf16.msra.mxu0 0
        %1714 = vmatprep.subr.bf16.mxu0 0
        %1715 = vmatpush2.bf16.msra.mxu0 0
        %1716 = vmatprep.subr.bf16.mxu0 0
        %1717 = vmatpush2.bf16.msra.mxu0 0
        %1718 = vmatprep.subr.bf16.mxu0 0
        %1719 = vmatpush2.bf16.msra.mxu0 0
        %1720 = vmatprep.subr.bf16.mxu0 0
        %1721 = vmatpush2.bf16.msra.mxu0 0
        %1722 = vmatprep.subr.bf16.mxu0 0
        %1723 = vmatpush2.bf16.msra.mxu0 0
        %1724 = vmatprep.mubr.bf16.mxu0 0
        %1725 = vmatmul.mubr.bf16.gmra.mxu0 %v1635
        %v1726 = vpop.f32.mrf.mxu0
        %v1727 = vadd.f32 0.0, %v1726
        %v1728 = vpop.f32.mrf.mxu0
        %v1729 = vadd.f32 0.0, %v1728
        %v1730 = vpop.f32.mrf.mxu0
        %v1731 = vadd.f32 0.0, %v1730
        %v1732 = vpop.f32.mrf.mxu0
        %v1733 = vadd.f32 0.0, %v1732
        %1734 = vdwg.mxu0
        %v1735 = vadd.f32 %v1575, %v1684
        %v1736 = vadd.f32 %v1576, %v1686
        %v1737 = vadd.f32 %v1577, %v1727
        %v1738 = vadd.f32 %v1578, %v1729
        %v1739 = vadd.f32 %v1579, %v1688
        %v1740 = vadd.f32 %v1580, %v1690
        %v1741 = vadd.f32 %v1581, %v1731
        %v1742 = vadd.f32 %v1582, %v1733
        %v1743 = vld [vmem:[%s2] sm:$0xff]
        %v1744 = vld [vmem:[%s2 + $0x8] sm:$0xff]
        %1746 = vset.pattern.permute.xlu0 0
        %1747 = vperm.xlu0 %1746, %v1743
        %v1748 = vpop.permute.xlu0 %1747
        %1751 = vset.pattern.permute.xlu0 0
        %1752 = vperm.xlu0 %1751, %v1744
        %v1753 = vpop.permute.xlu0 %1752
        %v1755 = vadd.f32 %v1735, %v1748
        %v1756 = vadd.f32 %v1736, %v1748
        %v1757 = vadd.f32 %v1737, %v1748
        %v1758 = vadd.f32 %v1738, %v1748
        %v1759 = vadd.f32 %v1739, %v1753
        %v1760 = vadd.f32 %v1740, %v1753
        %v1761 = vadd.f32 %v1741, %v1753
        %v1762 = vadd.f32 %v1742, %v1753
        %v1763 = vmax.f32 %v1755, 0.0
        %v1764 = vmax.f32 %v1756, 0.0
        %v1765 = vmax.f32 %v1757, 0.0
        %v1766 = vmax.f32 %v1758, 0.0
        %v1767 = vmax.f32 %v1759, 0.0
        %v1768 = vmax.f32 %v1760, 0.0
        %v1769 = vmax.f32 %v1761, 0.0
        %v1770 = vmax.f32 %v1762, 0.0
        %v1771 = vld [vmem:[%s5] sm:$0xf]
        %v1773 = vlaneseq
        %v1774 = vshrl.u32 %v1773, 7
        %v1775 = vsub.s32 0, %v1774
        %v1776 = vrot.slane %v1771, %v1775
        %v1777 = vlaneseq
        %v1778 = vshrl.u32 %v1777, 7
        %v1779 = vsub.s32 1, %v1778
        %v1780 = vrot.slane %v1771, %v1779
        %v1781 = vlaneseq
        %v1782 = vshrl.u32 %v1781, 7
        %v1783 = vsub.s32 2, %v1782
        %v1784 = vrot.slane %v1771, %v1783
        %v1785 = vlaneseq
        %v1786 = vshrl.u32 %v1785, 7
        %v1787 = vsub.s32 3, %v1786
        %v1788 = vrot.slane %v1771, %v1787
        %v1793 = vmul.f32 %v1763, %v1776
        %v1794 = vmul.f32 %v1764, %v1780
        %v1795 = vmul.f32 %v1765, %v1784
        %v1796 = vmul.f32 %v1766, %v1788
        %v1797 = vmul.f32 %v1767, %v1776
        %v1798 = vmul.f32 %v1768, %v1780
        %v1799 = vmul.f32 %v1769, %v1784
        %v1800 = vmul.f32 %v1770, %v1788
        %v1801 = vpack.c.bf16 %v1797, %v1793
        %v1802 = vpack.c.bf16 %v1798, %v1794
        %v1803 = vpack.c.bf16 %v1799, %v1795
        %v1804 = vpack.c.bf16 %v1800, %v1796
        %v1809 = vunpack.c.l.b16 %v1801
        %v1810 = vunpack.c.l.b16 %v1802
        %v1811 = vunpack.c.l.b16 %v1803
        %v1812 = vunpack.c.l.b16 %v1804
        %v1813 = vunpack.c.h.b16 %v1801
        %v1814 = vunpack.c.h.b16 %v1802
        %v1815 = vunpack.c.h.b16 %v1803
        %v1816 = vunpack.c.h.b16 %v1804
        %v1817 = vpack.c.b16 %v1810, %v1809
        %v1818 = vpack.c.b16 %v1812, %v1811
        %v1819 = vpack.c.b16 %v1814, %v1813
        %v1820 = vpack.c.b16 %v1816, %v1815
        %1825 = vst [vmem:[#allocation2] sm:$0xff] %v1817
        %vm1826 = vcmask 1043456
        %vm1827 = vcmask 949252
        %vm1828 = vmor %vm1827, %vm1826
        %1829 = vst.msk [vmem:[#allocation2 + $0x8] sm:$0xff] %vm1828, %v1818
        %1830 = vst [vmem:[#allocation2 + $0x10] sm:$0xff] %v1819
        %1831 = vst.msk [vmem:[#allocation2 + $0x18] sm:$0xff] %vm1828, %v1820
        %v1832 = vld [vmem:[#allocation2] sm:$0xff]
        %v1833 = vld [vmem:[#allocation2 + $0x8] sm:$0xff]
        %v1834 = vld [vmem:[#allocation2 + $0x10] sm:$0xff]
        %v1835 = vld [vmem:[#allocation2 + $0x18] sm:$0xff]
        %v1836 = vld [vmem:[%s3] sm:$0xf]
        %v1837 = vld [vmem:[%s3 + $0x4] sm:$0xf]
        %v1838 = vld [vmem:[%s3 + $0x8] sm:$0xf]
        %v1839 = vld [vmem:[%s3 + $0xc] sm:$0xf]
        %s1840 = scalar_lea.vmem %s3, 16
        %v1841 = vld [vmem:[%s1840] sm:$0xf]
        %v1842 = vld [vmem:[%s1840 + $0x4] sm:$0xf]
        %v1843 = vld [vmem:[%s1840 + $0x8] sm:$0xf]
        %v1844 = vld [vmem:[%s1840 + $0xc] sm:$0xf]
        %v1849 = vunpack.c.l.b16 %v1841
        %v1850 = vunpack.c.l.b16 %v1842
        %v1851 = vunpack.c.l.b16 %v1843
        %v1852 = vunpack.c.l.b16 %v1844
        %v1853 = vpack.c.b16 %v1850, %v1849
        %v1854 = vpack.c.b16 %v1852, %v1851
        %v1859 = vunpack.c.l.b16 %v1832
        %v1860 = vunpack.c.h.b16 %v1832
        %v1861 = vunpack.c.l.b16 %v1833
        %v1862 = vunpack.c.h.b16 %v1833
        %v1863 = vunpack.c.l.b16 %v1834
        %v1864 = vunpack.c.h.b16 %v1834
        %v1865 = vunpack.c.l.b16 %v1835
        %v1866 = vunpack.c.h.b16 %v1835
        %v1867 = vpack.c.b16 %v1863, %v1859
        %v1868 = vpack.c.b16 %v1864, %v1860
        %v1869 = vpack.c.b16 %v1865, %v1861
        %v1870 = vpack.c.b16 %v1866, %v1862
        %1871 = vrot.lane.b32.xlu0 %v1867, 127
        %v1872 = vpop.permute.xlu0 %1871
        %1873 = vrot.lane.b32.xlu0 %v1868, 127
        %v1874 = vpop.permute.xlu0 %1873
        %1875 = vrot.lane.b32.xlu0 %v1869, 127
        %v1876 = vpop.permute.xlu0 %1875
        %1877 = vrot.lane.b32.xlu0 %v1870, 127
        %v1878 = vpop.permute.xlu0 %1877
        %v1879 = vsel %vm422, %v1872, %v1874
        %v1880 = vsel %vm422, %v1874, %v1876
        %v1881 = vsel %vm422, %v1876, %v1878
        %vm1886 = vcmask 130048
        %v1888 = vsel %vm1886, %v1853, 0
        %v1891 = vsel %vm1886, %v1854, 0
        %1893 = vmatprep.subr.bf16.mxu0 0
        %1894 = vmatpush1.bf16.msra.mxu0 0
        %1895 = vmatprep.subr.bf16.mxu0 0
        %1896 = vmatpush1.bf16.msra.mxu0 0
        %1897 = vmatprep.subr.bf16.mxu0 0
        %1898 = vmatpush1.bf16.msra.mxu0 0
        %1899 = vmatprep.subr.bf16.mxu0 0
        %1900 = vmatpush1.bf16.msra.mxu0 0
        %1901 = vmatprep.subr.bf16.mxu0 0
        %1902 = vmatpush1.bf16.msra.mxu0 0
        %1903 = vmatprep.subr.bf16.mxu0 0
        %1904 = vmatpush1.bf16.msra.mxu0 0
        %1905 = vmatprep.subr.bf16.mxu0 0
        %1906 = vmatpush1.bf16.msra.mxu0 0
        %1907 = vmatprep.subr.bf16.mxu0 %v1880
        %1908 = vmatpush1.bf16.msra.mxu0 %v1879
        %1909 = vmatprep.subr.bf16.mxu0 0
        %1910 = vmatpush2.bf16.msra.mxu0 0
        %1911 = vmatprep.subr.bf16.mxu0 0
        %1912 = vmatpush2.bf16.msra.mxu0 0
        %1913 = vmatprep.subr.bf16.mxu0 0
        %1914 = vmatpush2.bf16.msra.mxu0 0
        %1915 = vmatprep.subr.bf16.mxu0 0
        %1916 = vmatpush2.bf16.msra.mxu0 0
        %1917 = vmatprep.subr.bf16.mxu0 0
        %1918 = vmatpush2.bf16.msra.mxu0 0
        %1919 = vmatprep.subr.bf16.mxu0 0
        %1920 = vmatpush2.bf16.msra.mxu0 0
        %1921 = vmatprep.subr.bf16.mxu0 0
        %1922 = vmatpush2.bf16.msra.mxu0 0
        %1923 = vmatprep.subr.bf16.mxu0 0
        %1924 = vmatpush2.bf16.msra.mxu0 0
        %1925 = vmatprep.mubr.bf16.mxu0 0
        %1926 = vmatmul.mubr.bf16.gmra.mxu0 %v1888
        %v1927 = vpop.f32.mrf.mxu0
        %v1928 = vadd.f32 0.0, %v1927
        %v1929 = vpop.f32.mrf.mxu0
        %v1930 = vadd.f32 0.0, %v1929
        %v1931 = vpop.f32.mrf.mxu0
        %v1932 = vadd.f32 0.0, %v1931
        %v1933 = vpop.f32.mrf.mxu0
        %v1934 = vadd.f32 0.0, %v1933
        %1935 = vmatprep.mubr.bf16.mxu0 0
        %1936 = vmatmul.mubr.bf16.gmra.mxu0 %v1891
        %v1937 = vpop.f32.mrf.mxu0
        %v1938 = vadd.f32 0.0, %v1937
        %v1939 = vpop.f32.mrf.mxu0
        %v1940 = vadd.f32 0.0, %v1939
        %v1941 = vpop.f32.mrf.mxu0
        %v1942 = vadd.f32 0.0, %v1941
        %v1943 = vpop.f32.mrf.mxu0
        %v1944 = vadd.f32 0.0, %v1943
        %1945 = vdwg.mxu0
        %1946 = vmatprep.subr.bf16.mxu0 0
        %1947 = vmatpush1.bf16.msra.mxu0 0
        %1948 = vmatprep.subr.bf16.mxu0 0
        %1949 = vmatpush1.bf16.msra.mxu0 0
        %1950 = vmatprep.subr.bf16.mxu0 0
        %1951 = vmatpush1.bf16.msra.mxu0 0
        %1952 = vmatprep.subr.bf16.mxu0 0
        %1953 = vmatpush1.bf16.msra.mxu0 0
        %1954 = vmatprep.subr.bf16.mxu0 0
        %1955 = vmatpush1.bf16.msra.mxu0 0
        %1956 = vmatprep.subr.bf16.mxu0 0
        %1957 = vmatpush1.bf16.msra.mxu0 0
        %1958 = vmatprep.subr.bf16.mxu0 0
        %1959 = vmatpush1.bf16.msra.mxu0 0
        %1960 = vmatprep.subr.bf16.mxu0 %v1878
        %1961 = vmatpush1.bf16.msra.mxu0 %v1881
        %1962 = vmatprep.subr.bf16.mxu0 0
        %1963 = vmatpush2.bf16.msra.mxu0 0
        %1964 = vmatprep.subr.bf16.mxu0 0
        %1965 = vmatpush2.bf16.msra.mxu0 0
        %1966 = vmatprep.subr.bf16.mxu0 0
        %1967 = vmatpush2.bf16.msra.mxu0 0
        %1968 = vmatprep.subr.bf16.mxu0 0
        %1969 = vmatpush2.bf16.msra.mxu0 0
        %1970 = vmatprep.subr.bf16.mxu0 0
        %1971 = vmatpush2.bf16.msra.mxu0 0
        %1972 = vmatprep.subr.bf16.mxu0 0
        %1973 = vmatpush2.bf16.msra.mxu0 0
        %1974 = vmatprep.subr.bf16.mxu0 0
        %1975 = vmatpush2.bf16.msra.mxu0 0
        %1976 = vmatprep.subr.bf16.mxu0 0
        %1977 = vmatpush2.bf16.msra.mxu0 0
        %1978 = vmatprep.mubr.bf16.mxu0 0
        %1979 = vmatmul.mubr.bf16.gmra.mxu0 %v1888
        %v1980 = vpop.f32.mrf.mxu0
        %v1981 = vadd.f32 0.0, %v1980
        %v1982 = vpop.f32.mrf.mxu0
        %v1983 = vadd.f32 0.0, %v1982
        %v1984 = vpop.f32.mrf.mxu0
        %v1985 = vadd.f32 0.0, %v1984
        %v1986 = vpop.f32.mrf.mxu0
        %v1987 = vadd.f32 0.0, %v1986
        %1988 = vmatprep.mubr.bf16.mxu0 0
        %1989 = vmatmul.mubr.bf16.gmra.mxu0 %v1891
        %v1990 = vpop.f32.mrf.mxu0
        %v1991 = vadd.f32 0.0, %v1990
        %v1992 = vpop.f32.mrf.mxu0
        %v1993 = vadd.f32 0.0, %v1992
        %v1994 = vpop.f32.mrf.mxu0
        %v1995 = vadd.f32 0.0, %v1994
        %v1996 = vpop.f32.mrf.mxu0
        %v1997 = vadd.f32 0.0, %v1996
        %1998 = vdwg.mxu0
        %v2003 = vunpack.c.l.b16 %v1836
        %v2004 = vunpack.c.l.b16 %v1837
        %v2005 = vunpack.c.l.b16 %v1838
        %v2006 = vunpack.c.l.b16 %v1839
        %v2007 = vpack.c.b16 %v2004, %v2003
        %v2008 = vpack.c.b16 %v2006, %v2005
        %v2014 = vsel %vm1886, %v2007, 0
        %v2017 = vsel %vm1886, %v2008, 0
        %2019 = vmatprep.subr.bf16.mxu0 0
        %2020 = vmatpush1.bf16.msra.mxu0 0
        %2021 = vmatprep.subr.bf16.mxu0 0
        %2022 = vmatpush1.bf16.msra.mxu0 0
        %2023 = vmatprep.subr.bf16.mxu0 0
        %2024 = vmatpush1.bf16.msra.mxu0 0
        %2025 = vmatprep.subr.bf16.mxu0 0
        %2026 = vmatpush1.bf16.msra.mxu0 0
        %2027 = vmatprep.subr.bf16.mxu0 0
        %2028 = vmatpush1.bf16.msra.mxu0 0
        %2029 = vmatprep.subr.bf16.mxu0 0
        %2030 = vmatpush1.bf16.msra.mxu0 0
        %2031 = vmatprep.subr.bf16.mxu0 0
        %2032 = vmatpush1.bf16.msra.mxu0 0
        %2033 = vmatprep.subr.bf16.mxu0 %v1868
        %2034 = vmatpush1.bf16.msra.mxu0 %v1867
        %2035 = vmatprep.subr.bf16.mxu0 0
        %2036 = vmatpush2.bf16.msra.mxu0 0
        %2037 = vmatprep.subr.bf16.mxu0 0
        %2038 = vmatpush2.bf16.msra.mxu0 0
        %2039 = vmatprep.subr.bf16.mxu0 0
        %2040 = vmatpush2.bf16.msra.mxu0 0
        %2041 = vmatprep.subr.bf16.mxu0 0
        %2042 = vmatpush2.bf16.msra.mxu0 0
        %2043 = vmatprep.subr.bf16.mxu0 0
        %2044 = vmatpush2.bf16.msra.mxu0 0
        %2045 = vmatprep.subr.bf16.mxu0 0
        %2046 = vmatpush2.bf16.msra.mxu0 0
        %2047 = vmatprep.subr.bf16.mxu0 0
        %2048 = vmatpush2.bf16.msra.mxu0 0
        %2049 = vmatprep.subr.bf16.mxu0 0
        %2050 = vmatpush2.bf16.msra.mxu0 0
        %2051 = vmatprep.mubr.bf16.mxu0 0
        %2052 = vmatmul.mubr.bf16.gmra.mxu0 %v2014
        %v2053 = vpop.f32.mrf.mxu0
        %v2054 = vadd.f32 %v1928, %v2053
        %v2055 = vpop.f32.mrf.mxu0
        %v2056 = vadd.f32 %v1930, %v2055
        %v2057 = vpop.f32.mrf.mxu0
        %v2058 = vadd.f32 %v1932, %v2057
        %v2059 = vpop.f32.mrf.mxu0
        %v2060 = vadd.f32 %v1934, %v2059
        %2061 = vmatprep.mubr.bf16.mxu0 0
        %2062 = vmatmul.mubr.bf16.gmra.mxu0 %v2017
        %v2063 = vpop.f32.mrf.mxu0
        %v2064 = vadd.f32 %v1938, %v2063
        %v2065 = vpop.f32.mrf.mxu0
        %v2066 = vadd.f32 %v1940, %v2065
        %v2067 = vpop.f32.mrf.mxu0
        %v2068 = vadd.f32 %v1942, %v2067
        %v2069 = vpop.f32.mrf.mxu0
        %v2070 = vadd.f32 %v1944, %v2069
        %2071 = vdwg.mxu0
        %2072 = vmatprep.subr.bf16.mxu0 0
        %2073 = vmatpush1.bf16.msra.mxu0 0
        %2074 = vmatprep.subr.bf16.mxu0 0
        %2075 = vmatpush1.bf16.msra.mxu0 0
        %2076 = vmatprep.subr.bf16.mxu0 0
        %2077 = vmatpush1.bf16.msra.mxu0 0
        %2078 = vmatprep.subr.bf16.mxu0 0
        %2079 = vmatpush1.bf16.msra.mxu0 0
        %2080 = vmatprep.subr.bf16.mxu0 0
        %2081 = vmatpush1.bf16.msra.mxu0 0
        %2082 = vmatprep.subr.bf16.mxu0 0
        %2083 = vmatpush1.bf16.msra.mxu0 0
        %2084 = vmatprep.subr.bf16.mxu0 0
        %2085 = vmatpush1.bf16.msra.mxu0 0
        %2086 = vmatprep.subr.bf16.mxu0 %v1870
        %2087 = vmatpush1.bf16.msra.mxu0 %v1869
        %2088 = vmatprep.subr.bf16.mxu0 0
        %2089 = vmatpush2.bf16.msra.mxu0 0
        %2090 = vmatprep.subr.bf16.mxu0 0
        %2091 = vmatpush2.bf16.msra.mxu0 0
        %2092 = vmatprep.subr.bf16.mxu0 0
        %2093 = vmatpush2.bf16.msra.mxu0 0
        %2094 = vmatprep.subr.bf16.mxu0 0
        %2095 = vmatpush2.bf16.msra.mxu0 0
        %2096 = vmatprep.subr.bf16.mxu0 0
        %2097 = vmatpush2.bf16.msra.mxu0 0
        %2098 = vmatprep.subr.bf16.mxu0 0
        %2099 = vmatpush2.bf16.msra.mxu0 0
        %2100 = vmatprep.subr.bf16.mxu0 0
        %2101 = vmatpush2.bf16.msra.mxu0 0
        %2102 = vmatprep.subr.bf16.mxu0 0
        %2103 = vmatpush2.bf16.msra.mxu0 0
        %2104 = vmatprep.mubr.bf16.mxu0 0
        %2105 = vmatmul.mubr.bf16.gmra.mxu0 %v2014
        %v2106 = vpop.f32.mrf.mxu0
        %v2107 = vadd.f32 %v1981, %v2106
        %v2108 = vpop.f32.mrf.mxu0
        %v2109 = vadd.f32 %v1983, %v2108
        %v2110 = vpop.f32.mrf.mxu0
        %v2111 = vadd.f32 %v1985, %v2110
        %v2112 = vpop.f32.mrf.mxu0
        %v2113 = vadd.f32 %v1987, %v2112
        %2114 = vmatprep.mubr.bf16.mxu0 0
        %2115 = vmatmul.mubr.bf16.gmra.mxu0 %v2017
        %v2116 = vpop.f32.mrf.mxu0
        %v2117 = vadd.f32 %v1991, %v2116
        %v2118 = vpop.f32.mrf.mxu0
        %v2119 = vadd.f32 %v1993, %v2118
        %v2120 = vpop.f32.mrf.mxu0
        %v2121 = vadd.f32 %v1995, %v2120
        %v2122 = vpop.f32.mrf.mxu0
        %v2123 = vadd.f32 %v1997, %v2122
        %2124 = vdwg.mxu0
        %s2125 = scalar_lea.vmem %s3, 32
        %v2126 = vld [vmem:[%s2125] sm:$0xf]
        %v2127 = vld [vmem:[%s2125 + $0x4] sm:$0xf]
        %v2128 = vld [vmem:[%s2125 + $0x8] sm:$0xf]
        %v2129 = vld [vmem:[%s2125 + $0xc] sm:$0xf]
        %v2134 = vunpack.c.l.b16 %v2126
        %v2135 = vunpack.c.l.b16 %v2127
        %v2136 = vunpack.c.l.b16 %v2128
        %v2137 = vunpack.c.l.b16 %v2129
        %v2138 = vpack.c.b16 %v2135, %v2134
        %v2139 = vpack.c.b16 %v2137, %v2136
        %2140 = vrot.lane.b32.xlu0 %v1867, 126
        %v2141 = vpop.permute.xlu0 %2140
        %2142 = vrot.lane.b32.xlu0 %v1868, 126
        %v2143 = vpop.permute.xlu0 %2142
        %2144 = vrot.lane.b32.xlu0 %v1869, 126
        %v2145 = vpop.permute.xlu0 %2144
        %2146 = vrot.lane.b32.xlu0 %v1870, 126
        %v2147 = vpop.permute.xlu0 %2146
        %v2148 = vsel %vm670, %v2141, %v2143
        %v2149 = vsel %vm670, %v2143, %v2145
        %v2150 = vsel %vm670, %v2145, %v2147
        %v2156 = vsel %vm1886, %v2138, 0
        %v2159 = vsel %vm1886, %v2139, 0
        %2161 = vmatprep.subr.bf16.mxu0 0
        %2162 = vmatpush1.bf16.msra.mxu0 0
        %2163 = vmatprep.subr.bf16.mxu0 0
        %2164 = vmatpush1.bf16.msra.mxu0 0
        %2165 = vmatprep.subr.bf16.mxu0 0
        %2166 = vmatpush1.bf16.msra.mxu0 0
        %2167 = vmatprep.subr.bf16.mxu0 0
        %2168 = vmatpush1.bf16.msra.mxu0 0
        %2169 = vmatprep.subr.bf16.mxu0 0
        %2170 = vmatpush1.bf16.msra.mxu0 0
        %2171 = vmatprep.subr.bf16.mxu0 0
        %2172 = vmatpush1.bf16.msra.mxu0 0
        %2173 = vmatprep.subr.bf16.mxu0 0
        %2174 = vmatpush1.bf16.msra.mxu0 0
        %2175 = vmatprep.subr.bf16.mxu0 %v2149
        %2176 = vmatpush1.bf16.msra.mxu0 %v2148
        %2177 = vmatprep.subr.bf16.mxu0 0
        %2178 = vmatpush2.bf16.msra.mxu0 0
        %2179 = vmatprep.subr.bf16.mxu0 0
        %2180 = vmatpush2.bf16.msra.mxu0 0
        %2181 = vmatprep.subr.bf16.mxu0 0
        %2182 = vmatpush2.bf16.msra.mxu0 0
        %2183 = vmatprep.subr.bf16.mxu0 0
        %2184 = vmatpush2.bf16.msra.mxu0 0
        %2185 = vmatprep.subr.bf16.mxu0 0
        %2186 = vmatpush2.bf16.msra.mxu0 0
        %2187 = vmatprep.subr.bf16.mxu0 0
        %2188 = vmatpush2.bf16.msra.mxu0 0
        %2189 = vmatprep.subr.bf16.mxu0 0
        %2190 = vmatpush2.bf16.msra.mxu0 0
        %2191 = vmatprep.subr.bf16.mxu0 0
        %2192 = vmatpush2.bf16.msra.mxu0 0
        %2193 = vmatprep.mubr.bf16.mxu0 0
        %2194 = vmatmul.mubr.bf16.gmra.mxu0 %v2156
        %v2195 = vpop.f32.mrf.mxu0
        %v2196 = vadd.f32 0.0, %v2195
        %v2197 = vpop.f32.mrf.mxu0
        %v2198 = vadd.f32 0.0, %v2197
        %v2199 = vpop.f32.mrf.mxu0
        %v2200 = vadd.f32 0.0, %v2199
        %v2201 = vpop.f32.mrf.mxu0
        %v2202 = vadd.f32 0.0, %v2201
        %2203 = vmatprep.mubr.bf16.mxu0 0
        %2204 = vmatmul.mubr.bf16.gmra.mxu0 %v2159
        %v2205 = vpop.f32.mrf.mxu0
        %v2206 = vadd.f32 0.0, %v2205
        %v2207 = vpop.f32.mrf.mxu0
        %v2208 = vadd.f32 0.0, %v2207
        %v2209 = vpop.f32.mrf.mxu0
        %v2210 = vadd.f32 0.0, %v2209
        %v2211 = vpop.f32.mrf.mxu0
        %v2212 = vadd.f32 0.0, %v2211
        %2213 = vdwg.mxu0
        %2214 = vmatprep.subr.bf16.mxu0 0
        %2215 = vmatpush1.bf16.msra.mxu0 0
        %2216 = vmatprep.subr.bf16.mxu0 0
        %2217 = vmatpush1.bf16.msra.mxu0 0
        %2218 = vmatprep.subr.bf16.mxu0 0
        %2219 = vmatpush1.bf16.msra.mxu0 0
        %2220 = vmatprep.subr.bf16.mxu0 0
        %2221 = vmatpush1.bf16.msra.mxu0 0
        %2222 = vmatprep.subr.bf16.mxu0 0
        %2223 = vmatpush1.bf16.msra.mxu0 0
        %2224 = vmatprep.subr.bf16.mxu0 0
        %2225 = vmatpush1.bf16.msra.mxu0 0
        %2226 = vmatprep.subr.bf16.mxu0 0
        %2227 = vmatpush1.bf16.msra.mxu0 0
        %2228 = vmatprep.subr.bf16.mxu0 %v2147
        %2229 = vmatpush1.bf16.msra.mxu0 %v2150
        %2230 = vmatprep.subr.bf16.mxu0 0
        %2231 = vmatpush2.bf16.msra.mxu0 0
        %2232 = vmatprep.subr.bf16.mxu0 0
        %2233 = vmatpush2.bf16.msra.mxu0 0
        %2234 = vmatprep.subr.bf16.mxu0 0
        %2235 = vmatpush2.bf16.msra.mxu0 0
        %2236 = vmatprep.subr.bf16.mxu0 0
        %2237 = vmatpush2.bf16.msra.mxu0 0
        %2238 = vmatprep.subr.bf16.mxu0 0
        %2239 = vmatpush2.bf16.msra.mxu0 0
        %2240 = vmatprep.subr.bf16.mxu0 0
        %2241 = vmatpush2.bf16.msra.mxu0 0
        %2242 = vmatprep.subr.bf16.mxu0 0
        %2243 = vmatpush2.bf16.msra.mxu0 0
        %2244 = vmatprep.subr.bf16.mxu0 0
        %2245 = vmatpush2.bf16.msra.mxu0 0
        %2246 = vmatprep.mubr.bf16.mxu0 0
        %2247 = vmatmul.mubr.bf16.gmra.mxu0 %v2156
        %v2248 = vpop.f32.mrf.mxu0
        %v2249 = vadd.f32 0.0, %v2248
        %v2250 = vpop.f32.mrf.mxu0
        %v2251 = vadd.f32 0.0, %v2250
        %v2252 = vpop.f32.mrf.mxu0
        %v2253 = vadd.f32 0.0, %v2252
        %v2254 = vpop.f32.mrf.mxu0
        %v2255 = vadd.f32 0.0, %v2254
        %2256 = vmatprep.mubr.bf16.mxu0 0
        %2257 = vmatmul.mubr.bf16.gmra.mxu0 %v2159
        %v2258 = vpop.f32.mrf.mxu0
        %v2259 = vadd.f32 0.0, %v2258
        %v2260 = vpop.f32.mrf.mxu0
        %v2261 = vadd.f32 0.0, %v2260
        %v2262 = vpop.f32.mrf.mxu0
        %v2263 = vadd.f32 0.0, %v2262
        %v2264 = vpop.f32.mrf.mxu0
        %v2265 = vadd.f32 0.0, %v2264
        %2266 = vdwg.mxu0
        %v2267 = vadd.f32 %v2054, %v2196
        %v2268 = vadd.f32 %v2056, %v2198
        %v2269 = vadd.f32 %v2107, %v2249
        %v2270 = vadd.f32 %v2109, %v2251
        %v2271 = vadd.f32 %v2058, %v2200
        %v2272 = vadd.f32 %v2060, %v2202
        %v2273 = vadd.f32 %v2111, %v2253
        %v2274 = vadd.f32 %v2113, %v2255
        %v2275 = vadd.f32 %v2064, %v2206
        %v2276 = vadd.f32 %v2066, %v2208
        %v2277 = vadd.f32 %v2117, %v2259
        %v2278 = vadd.f32 %v2119, %v2261
        %v2279 = vadd.f32 %v2068, %v2210
        %v2280 = vadd.f32 %v2070, %v2212
        %v2281 = vadd.f32 %v2121, %v2263
        %v2282 = vadd.f32 %v2123, %v2265
        %s2283 = scalar_lea.vmem %s3, 48
        %v2284 = vld [vmem:[%s2283] sm:$0xf]
        %v2285 = vld [vmem:[%s2283 + $0x4] sm:$0xf]
        %v2286 = vld [vmem:[%s2283 + $0x8] sm:$0xf]
        %v2287 = vld [vmem:[%s2283 + $0xc] sm:$0xf]
        %v2292 = vunpack.c.l.b16 %v2284
        %v2293 = vunpack.c.l.b16 %v2285
        %v2294 = vunpack.c.l.b16 %v2286
        %v2295 = vunpack.c.l.b16 %v2287
        %v2296 = vpack.c.b16 %v2293, %v2292
        %v2297 = vpack.c.b16 %v2295, %v2294
        %2298 = vrot.lane.b32.xlu0 %v1867, 108
        %v2299 = vpop.permute.xlu0 %2298
        %2300 = vrot.lane.b32.xlu0 %v1868, 108
        %v2301 = vpop.permute.xlu0 %2300
        %2302 = vrot.lane.b32.xlu0 %v1869, 108
        %v2303 = vpop.permute.xlu0 %2302
        %2304 = vrot.lane.b32.xlu0 %v1870, 108
        %v2305 = vpop.permute.xlu0 %2304
        %v2306 = vsel %vm829, %v2299, %v2301
        %v2307 = vsel %vm829, %v2301, %v2303
        %v2308 = vsel %vm829, %v2303, %v2305
        %v2314 = vsel %vm1886, %v2296, 0
        %v2317 = vsel %vm1886, %v2297, 0
        %2319 = vmatprep.subr.bf16.mxu0 0
        %2320 = vmatpush1.bf16.msra.mxu0 0
        %2321 = vmatprep.subr.bf16.mxu0 0
        %2322 = vmatpush1.bf16.msra.mxu0 0
        %2323 = vmatprep.subr.bf16.mxu0 0
        %2324 = vmatpush1.bf16.msra.mxu0 0
        %2325 = vmatprep.subr.bf16.mxu0 0
        %2326 = vmatpush1.bf16.msra.mxu0 0
        %2327 = vmatprep.subr.bf16.mxu0 0
        %2328 = vmatpush1.bf16.msra.mxu0 0
        %2329 = vmatprep.subr.bf16.mxu0 0
        %2330 = vmatpush1.bf16.msra.mxu0 0
        %2331 = vmatprep.subr.bf16.mxu0 0
        %2332 = vmatpush1.bf16.msra.mxu0 0
        %2333 = vmatprep.subr.bf16.mxu0 %v2307
        %2334 = vmatpush1.bf16.msra.mxu0 %v2306
        %2335 = vmatprep.subr.bf16.mxu0 0
        %2336 = vmatpush2.bf16.msra.mxu0 0
        %2337 = vmatprep.subr.bf16.mxu0 0
        %2338 = vmatpush2.bf16.msra.mxu0 0
        %2339 = vmatprep.subr.bf16.mxu0 0
        %2340 = vmatpush2.bf16.msra.mxu0 0
        %2341 = vmatprep.subr.bf16.mxu0 0
        %2342 = vmatpush2.bf16.msra.mxu0 0
        %2343 = vmatprep.subr.bf16.mxu0 0
        %2344 = vmatpush2.bf16.msra.mxu0 0
        %2345 = vmatprep.subr.bf16.mxu0 0
        %2346 = vmatpush2.bf16.msra.mxu0 0
        %2347 = vmatprep.subr.bf16.mxu0 0
        %2348 = vmatpush2.bf16.msra.mxu0 0
        %2349 = vmatprep.subr.bf16.mxu0 0
        %2350 = vmatpush2.bf16.msra.mxu0 0
        %2351 = vmatprep.mubr.bf16.mxu0 0
        %2352 = vmatmul.mubr.bf16.gmra.mxu0 %v2314
        %v2353 = vpop.f32.mrf.mxu0
        %v2354 = vadd.f32 0.0, %v2353
        %v2355 = vpop.f32.mrf.mxu0
        %v2356 = vadd.f32 0.0, %v2355
        %v2357 = vpop.f32.mrf.mxu0
        %v2358 = vadd.f32 0.0, %v2357
        %v2359 = vpop.f32.mrf.mxu0
        %v2360 = vadd.f32 0.0, %v2359
        %2361 = vmatprep.mubr.bf16.mxu0 0
        %2362 = vmatmul.mubr.bf16.gmra.mxu0 %v2317
        %v2363 = vpop.f32.mrf.mxu0
        %v2364 = vadd.f32 0.0, %v2363
        %v2365 = vpop.f32.mrf.mxu0
        %v2366 = vadd.f32 0.0, %v2365
        %v2367 = vpop.f32.mrf.mxu0
        %v2368 = vadd.f32 0.0, %v2367
        %v2369 = vpop.f32.mrf.mxu0
        %v2370 = vadd.f32 0.0, %v2369
        %2371 = vdwg.mxu0
        %2372 = vmatprep.subr.bf16.mxu0 0
        %2373 = vmatpush1.bf16.msra.mxu0 0
        %2374 = vmatprep.subr.bf16.mxu0 0
        %2375 = vmatpush1.bf16.msra.mxu0 0
        %2376 = vmatprep.subr.bf16.mxu0 0
        %2377 = vmatpush1.bf16.msra.mxu0 0
        %2378 = vmatprep.subr.bf16.mxu0 0
        %2379 = vmatpush1.bf16.msra.mxu0 0
        %2380 = vmatprep.subr.bf16.mxu0 0
        %2381 = vmatpush1.bf16.msra.mxu0 0
        %2382 = vmatprep.subr.bf16.mxu0 0
        %2383 = vmatpush1.bf16.msra.mxu0 0
        %2384 = vmatprep.subr.bf16.mxu0 0
        %2385 = vmatpush1.bf16.msra.mxu0 0
        %2386 = vmatprep.subr.bf16.mxu0 %v2305
        %2387 = vmatpush1.bf16.msra.mxu0 %v2308
        %2388 = vmatprep.subr.bf16.mxu0 0
        %2389 = vmatpush2.bf16.msra.mxu0 0
        %2390 = vmatprep.subr.bf16.mxu0 0
        %2391 = vmatpush2.bf16.msra.mxu0 0
        %2392 = vmatprep.subr.bf16.mxu0 0
        %2393 = vmatpush2.bf16.msra.mxu0 0
        %2394 = vmatprep.subr.bf16.mxu0 0
        %2395 = vmatpush2.bf16.msra.mxu0 0
        %2396 = vmatprep.subr.bf16.mxu0 0
        %2397 = vmatpush2.bf16.msra.mxu0 0
        %2398 = vmatprep.subr.bf16.mxu0 0
        %2399 = vmatpush2.bf16.msra.mxu0 0
        %2400 = vmatprep.subr.bf16.mxu0 0
        %2401 = vmatpush2.bf16.msra.mxu0 0
        %2402 = vmatprep.subr.bf16.mxu0 0
        %2403 = vmatpush2.bf16.msra.mxu0 0
        %2404 = vmatprep.mubr.bf16.mxu0 0
        %2405 = vmatmul.mubr.bf16.gmra.mxu0 %v2314
        %v2406 = vpop.f32.mrf.mxu0
        %v2407 = vadd.f32 0.0, %v2406
        %v2408 = vpop.f32.mrf.mxu0
        %v2409 = vadd.f32 0.0, %v2408
        %v2410 = vpop.f32.mrf.mxu0
        %v2411 = vadd.f32 0.0, %v2410
        %v2412 = vpop.f32.mrf.mxu0
        %v2413 = vadd.f32 0.0, %v2412
        %2414 = vmatprep.mubr.bf16.mxu0 0
        %2415 = vmatmul.mubr.bf16.gmra.mxu0 %v2317
        %v2416 = vpop.f32.mrf.mxu0
        %v2417 = vadd.f32 0.0, %v2416
        %v2418 = vpop.f32.mrf.mxu0
        %v2419 = vadd.f32 0.0, %v2418
        %v2420 = vpop.f32.mrf.mxu0
        %v2421 = vadd.f32 0.0, %v2420
        %v2422 = vpop.f32.mrf.mxu0
        %v2423 = vadd.f32 0.0, %v2422
        %2424 = vdwg.mxu0
        %v2425 = vadd.f32 %v2267, %v2354
        %v2426 = vadd.f32 %v2268, %v2356
        %v2427 = vadd.f32 %v2269, %v2407
        %v2428 = vadd.f32 %v2270, %v2409
        %v2429 = vadd.f32 %v2271, %v2358
        %v2430 = vadd.f32 %v2272, %v2360
        %v2431 = vadd.f32 %v2273, %v2411
        %v2432 = vadd.f32 %v2274, %v2413
        %v2433 = vadd.f32 %v2275, %v2364
        %v2434 = vadd.f32 %v2276, %v2366
        %v2435 = vadd.f32 %v2277, %v2417
        %v2436 = vadd.f32 %v2278, %v2419
        %v2437 = vadd.f32 %v2279, %v2368
        %v2438 = vadd.f32 %v2280, %v2370
        %v2439 = vadd.f32 %v2281, %v2421
        %v2440 = vadd.f32 %v2282, %v2423
        %s2441 = scalar_lea.vmem %s3, 64
        %v2442 = vld [vmem:[%s2441] sm:$0xf]
        %v2443 = vld [vmem:[%s2441 + $0x4] sm:$0xf]
        %v2444 = vld [vmem:[%s2441 + $0x8] sm:$0xf]
        %v2445 = vld [vmem:[%s2441 + $0xc] sm:$0xf]
        %v2450 = vunpack.c.l.b16 %v2442
        %v2451 = vunpack.c.l.b16 %v2443
        %v2452 = vunpack.c.l.b16 %v2444
        %v2453 = vunpack.c.l.b16 %v2445
        %v2454 = vpack.c.b16 %v2451, %v2450
        %v2455 = vpack.c.b16 %v2453, %v2452
        %2456 = vrot.lane.b32.xlu0 %v1867, 107
        %v2457 = vpop.permute.xlu0 %2456
        %2458 = vrot.lane.b32.xlu0 %v1868, 107
        %v2459 = vpop.permute.xlu0 %2458
        %2460 = vrot.lane.b32.xlu0 %v1869, 107
        %v2461 = vpop.permute.xlu0 %2460
        %2462 = vrot.lane.b32.xlu0 %v1870, 107
        %v2463 = vpop.permute.xlu0 %2462
        %v2464 = vsel %vm989, %v2457, %v2459
        %v2465 = vsel %vm989, %v2459, %v2461
        %v2466 = vsel %vm989, %v2461, %v2463
        %v2472 = vsel %vm1886, %v2454, 0
        %v2475 = vsel %vm1886, %v2455, 0
        %2477 = vmatprep.subr.bf16.mxu0 0
        %2478 = vmatpush1.bf16.msra.mxu0 0
        %2479 = vmatprep.subr.bf16.mxu0 0
        %2480 = vmatpush1.bf16.msra.mxu0 0
        %2481 = vmatprep.subr.bf16.mxu0 0
        %2482 = vmatpush1.bf16.msra.mxu0 0
        %2483 = vmatprep.subr.bf16.mxu0 0
        %2484 = vmatpush1.bf16.msra.mxu0 0
        %2485 = vmatprep.subr.bf16.mxu0 0
        %2486 = vmatpush1.bf16.msra.mxu0 0
        %2487 = vmatprep.subr.bf16.mxu0 0
        %2488 = vmatpush1.bf16.msra.mxu0 0
        %2489 = vmatprep.subr.bf16.mxu0 0
        %2490 = vmatpush1.bf16.msra.mxu0 0
        %2491 = vmatprep.subr.bf16.mxu0 %v2465
        %2492 = vmatpush1.bf16.msra.mxu0 %v2464
        %2493 = vmatprep.subr.bf16.mxu0 0
        %2494 = vmatpush2.bf16.msra.mxu0 0
        %2495 = vmatprep.subr.bf16.mxu0 0
        %2496 = vmatpush2.bf16.msra.mxu0 0
        %2497 = vmatprep.subr.bf16.mxu0 0
        %2498 = vmatpush2.bf16.msra.mxu0 0
        %2499 = vmatprep.subr.bf16.mxu0 0
        %2500 = vmatpush2.bf16.msra.mxu0 0
        %2501 = vmatprep.subr.bf16.mxu0 0
        %2502 = vmatpush2.bf16.msra.mxu0 0
        %2503 = vmatprep.subr.bf16.mxu0 0
        %2504 = vmatpush2.bf16.msra.mxu0 0
        %2505 = vmatprep.subr.bf16.mxu0 0
        %2506 = vmatpush2.bf16.msra.mxu0 0
        %2507 = vmatprep.subr.bf16.mxu0 0
        %2508 = vmatpush2.bf16.msra.mxu0 0
        %2509 = vmatprep.mubr.bf16.mxu0 0
        %2510 = vmatmul.mubr.bf16.gmra.mxu0 %v2472
        %v2511 = vpop.f32.mrf.mxu0
        %v2512 = vadd.f32 0.0, %v2511
        %v2513 = vpop.f32.mrf.mxu0
        %v2514 = vadd.f32 0.0, %v2513
        %v2515 = vpop.f32.mrf.mxu0
        %v2516 = vadd.f32 0.0, %v2515
        %v2517 = vpop.f32.mrf.mxu0
        %v2518 = vadd.f32 0.0, %v2517
        %2519 = vmatprep.mubr.bf16.mxu0 0
        %2520 = vmatmul.mubr.bf16.gmra.mxu0 %v2475
        %v2521 = vpop.f32.mrf.mxu0
        %v2522 = vadd.f32 0.0, %v2521
        %v2523 = vpop.f32.mrf.mxu0
        %v2524 = vadd.f32 0.0, %v2523
        %v2525 = vpop.f32.mrf.mxu0
        %v2526 = vadd.f32 0.0, %v2525
        %v2527 = vpop.f32.mrf.mxu0
        %v2528 = vadd.f32 0.0, %v2527
        %2529 = vdwg.mxu0
        %2530 = vmatprep.subr.bf16.mxu0 0
        %2531 = vmatpush1.bf16.msra.mxu0 0
        %2532 = vmatprep.subr.bf16.mxu0 0
        %2533 = vmatpush1.bf16.msra.mxu0 0
        %2534 = vmatprep.subr.bf16.mxu0 0
        %2535 = vmatpush1.bf16.msra.mxu0 0
        %2536 = vmatprep.subr.bf16.mxu0 0
        %2537 = vmatpush1.bf16.msra.mxu0 0
        %2538 = vmatprep.subr.bf16.mxu0 0
        %2539 = vmatpush1.bf16.msra.mxu0 0
        %2540 = vmatprep.subr.bf16.mxu0 0
        %2541 = vmatpush1.bf16.msra.mxu0 0
        %2542 = vmatprep.subr.bf16.mxu0 0
        %2543 = vmatpush1.bf16.msra.mxu0 0
        %2544 = vmatprep.subr.bf16.mxu0 %v2463
        %2545 = vmatpush1.bf16.msra.mxu0 %v2466
        %2546 = vmatprep.subr.bf16.mxu0 0
        %2547 = vmatpush2.bf16.msra.mxu0 0
        %2548 = vmatprep.subr.bf16.mxu0 0
        %2549 = vmatpush2.bf16.msra.mxu0 0
        %2550 = vmatprep.subr.bf16.mxu0 0
        %2551 = vmatpush2.bf16.msra.mxu0 0
        %2552 = vmatprep.subr.bf16.mxu0 0
        %2553 = vmatpush2.bf16.msra.mxu0 0
        %2554 = vmatprep.subr.bf16.mxu0 0
        %2555 = vmatpush2.bf16.msra.mxu0 0
        %2556 = vmatprep.subr.bf16.mxu0 0
        %2557 = vmatpush2.bf16.msra.mxu0 0
        %2558 = vmatprep.subr.bf16.mxu0 0
        %2559 = vmatpush2.bf16.msra.mxu0 0
        %2560 = vmatprep.subr.bf16.mxu0 0
        %2561 = vmatpush2.bf16.msra.mxu0 0
        %2562 = vmatprep.mubr.bf16.mxu0 0
        %2563 = vmatmul.mubr.bf16.gmra.mxu0 %v2472
        %v2564 = vpop.f32.mrf.mxu0
        %v2565 = vadd.f32 0.0, %v2564
        %v2566 = vpop.f32.mrf.mxu0
        %v2567 = vadd.f32 0.0, %v2566
        %v2568 = vpop.f32.mrf.mxu0
        %v2569 = vadd.f32 0.0, %v2568
        %v2570 = vpop.f32.mrf.mxu0
        %v2571 = vadd.f32 0.0, %v2570
        %2572 = vmatprep.mubr.bf16.mxu0 0
        %2573 = vmatmul.mubr.bf16.gmra.mxu0 %v2475
        %v2574 = vpop.f32.mrf.mxu0
        %v2575 = vadd.f32 0.0, %v2574
        %v2576 = vpop.f32.mrf.mxu0
        %v2577 = vadd.f32 0.0, %v2576
        %v2578 = vpop.f32.mrf.mxu0
        %v2579 = vadd.f32 0.0, %v2578
        %v2580 = vpop.f32.mrf.mxu0
        %v2581 = vadd.f32 0.0, %v2580
        %2582 = vdwg.mxu0
        %v2583 = vadd.f32 %v2425, %v2512
        %v2584 = vadd.f32 %v2426, %v2514
        %v2585 = vadd.f32 %v2427, %v2565
        %v2586 = vadd.f32 %v2428, %v2567
        %v2587 = vadd.f32 %v2429, %v2516
        %v2588 = vadd.f32 %v2430, %v2518
        %v2589 = vadd.f32 %v2431, %v2569
        %v2590 = vadd.f32 %v2432, %v2571
        %v2591 = vadd.f32 %v2433, %v2522
        %v2592 = vadd.f32 %v2434, %v2524
        %v2593 = vadd.f32 %v2435, %v2575
        %v2594 = vadd.f32 %v2436, %v2577
        %v2595 = vadd.f32 %v2437, %v2526
        %v2596 = vadd.f32 %v2438, %v2528
        %v2597 = vadd.f32 %v2439, %v2579
        %v2598 = vadd.f32 %v2440, %v2581
        %s2599 = scalar_lea.vmem %s3, 80
        %v2600 = vld [vmem:[%s2599] sm:$0xf]
        %v2601 = vld [vmem:[%s2599 + $0x4] sm:$0xf]
        %v2602 = vld [vmem:[%s2599 + $0x8] sm:$0xf]
        %v2603 = vld [vmem:[%s2599 + $0xc] sm:$0xf]
        %v2608 = vunpack.c.l.b16 %v2600
        %v2609 = vunpack.c.l.b16 %v2601
        %v2610 = vunpack.c.l.b16 %v2602
        %v2611 = vunpack.c.l.b16 %v2603
        %v2612 = vpack.c.b16 %v2609, %v2608
        %v2613 = vpack.c.b16 %v2611, %v2610
        %2614 = vrot.lane.b32.xlu0 %v1867, 106
        %v2615 = vpop.permute.xlu0 %2614
        %2616 = vrot.lane.b32.xlu0 %v1868, 106
        %v2617 = vpop.permute.xlu0 %2616
        %2618 = vrot.lane.b32.xlu0 %v1869, 106
        %v2619 = vpop.permute.xlu0 %2618
        %2620 = vrot.lane.b32.xlu0 %v1870, 106
        %v2621 = vpop.permute.xlu0 %2620
        %v2622 = vsel %vm1149, %v2615, %v2617
        %v2623 = vsel %vm1149, %v2617, %v2619
        %v2624 = vsel %vm1149, %v2619, %v2621
        %v2630 = vsel %vm1886, %v2612, 0
        %v2633 = vsel %vm1886, %v2613, 0
        %2635 = vmatprep.subr.bf16.mxu0 0
        %2636 = vmatpush1.bf16.msra.mxu0 0
        %2637 = vmatprep.subr.bf16.mxu0 0
        %2638 = vmatpush1.bf16.msra.mxu0 0
        %2639 = vmatprep.subr.bf16.mxu0 0
        %2640 = vmatpush1.bf16.msra.mxu0 0
        %2641 = vmatprep.subr.bf16.mxu0 0
        %2642 = vmatpush1.bf16.msra.mxu0 0
        %2643 = vmatprep.subr.bf16.mxu0 0
        %2644 = vmatpush1.bf16.msra.mxu0 0
        %2645 = vmatprep.subr.bf16.mxu0 0
        %2646 = vmatpush1.bf16.msra.mxu0 0
        %2647 = vmatprep.subr.bf16.mxu0 0
        %2648 = vmatpush1.bf16.msra.mxu0 0
        %2649 = vmatprep.subr.bf16.mxu0 %v2623
        %2650 = vmatpush1.bf16.msra.mxu0 %v2622
        %2651 = vmatprep.subr.bf16.mxu0 0
        %2652 = vmatpush2.bf16.msra.mxu0 0
        %2653 = vmatprep.subr.bf16.mxu0 0
        %2654 = vmatpush2.bf16.msra.mxu0 0
        %2655 = vmatprep.subr.bf16.mxu0 0
        %2656 = vmatpush2.bf16.msra.mxu0 0
        %2657 = vmatprep.subr.bf16.mxu0 0
        %2658 = vmatpush2.bf16.msra.mxu0 0
        %2659 = vmatprep.subr.bf16.mxu0 0
        %2660 = vmatpush2.bf16.msra.mxu0 0
        %2661 = vmatprep.subr.bf16.mxu0 0
        %2662 = vmatpush2.bf16.msra.mxu0 0
        %2663 = vmatprep.subr.bf16.mxu0 0
        %2664 = vmatpush2.bf16.msra.mxu0 0
        %2665 = vmatprep.subr.bf16.mxu0 0
        %2666 = vmatpush2.bf16.msra.mxu0 0
        %2667 = vmatprep.mubr.bf16.mxu0 0
        %2668 = vmatmul.mubr.bf16.gmra.mxu0 %v2630
        %v2669 = vpop.f32.mrf.mxu0
        %v2670 = vadd.f32 0.0, %v2669
        %v2671 = vpop.f32.mrf.mxu0
        %v2672 = vadd.f32 0.0, %v2671
        %v2673 = vpop.f32.mrf.mxu0
        %v2674 = vadd.f32 0.0, %v2673
        %v2675 = vpop.f32.mrf.mxu0
        %v2676 = vadd.f32 0.0, %v2675
        %2677 = vmatprep.mubr.bf16.mxu0 0
        %2678 = vmatmul.mubr.bf16.gmra.mxu0 %v2633
        %v2679 = vpop.f32.mrf.mxu0
        %v2680 = vadd.f32 0.0, %v2679
        %v2681 = vpop.f32.mrf.mxu0
        %v2682 = vadd.f32 0.0, %v2681
        %v2683 = vpop.f32.mrf.mxu0
        %v2684 = vadd.f32 0.0, %v2683
        %v2685 = vpop.f32.mrf.mxu0
        %v2686 = vadd.f32 0.0, %v2685
        %2687 = vdwg.mxu0
        %2688 = vmatprep.subr.bf16.mxu0 0
        %2689 = vmatpush1.bf16.msra.mxu0 0
        %2690 = vmatprep.subr.bf16.mxu0 0
        %2691 = vmatpush1.bf16.msra.mxu0 0
        %2692 = vmatprep.subr.bf16.mxu0 0
        %2693 = vmatpush1.bf16.msra.mxu0 0
        %2694 = vmatprep.subr.bf16.mxu0 0
        %2695 = vmatpush1.bf16.msra.mxu0 0
        %2696 = vmatprep.subr.bf16.mxu0 0
        %2697 = vmatpush1.bf16.msra.mxu0 0
        %2698 = vmatprep.subr.bf16.mxu0 0
        %2699 = vmatpush1.bf16.msra.mxu0 0
        %2700 = vmatprep.subr.bf16.mxu0 0
        %2701 = vmatpush1.bf16.msra.mxu0 0
        %2702 = vmatprep.subr.bf16.mxu0 %v2621
        %2703 = vmatpush1.bf16.msra.mxu0 %v2624
        %2704 = vmatprep.subr.bf16.mxu0 0
        %2705 = vmatpush2.bf16.msra.mxu0 0
        %2706 = vmatprep.subr.bf16.mxu0 0
        %2707 = vmatpush2.bf16.msra.mxu0 0
        %2708 = vmatprep.subr.bf16.mxu0 0
        %2709 = vmatpush2.bf16.msra.mxu0 0
        %2710 = vmatprep.subr.bf16.mxu0 0
        %2711 = vmatpush2.bf16.msra.mxu0 0
        %2712 = vmatprep.subr.bf16.mxu0 0
        %2713 = vmatpush2.bf16.msra.mxu0 0
        %2714 = vmatprep.subr.bf16.mxu0 0
        %2715 = vmatpush2.bf16.msra.mxu0 0
        %2716 = vmatprep.subr.bf16.mxu0 0
        %2717 = vmatpush2.bf16.msra.mxu0 0
        %2718 = vmatprep.subr.bf16.mxu0 0
        %2719 = vmatpush2.bf16.msra.mxu0 0
        %2720 = vmatprep.mubr.bf16.mxu0 0
        %2721 = vmatmul.mubr.bf16.gmra.mxu0 %v2630
        %v2722 = vpop.f32.mrf.mxu0
        %v2723 = vadd.f32 0.0, %v2722
        %v2724 = vpop.f32.mrf.mxu0
        %v2725 = vadd.f32 0.0, %v2724
        %v2726 = vpop.f32.mrf.mxu0
        %v2727 = vadd.f32 0.0, %v2726
        %v2728 = vpop.f32.mrf.mxu0
        %v2729 = vadd.f32 0.0, %v2728
        %2730 = vmatprep.mubr.bf16.mxu0 0
        %2731 = vmatmul.mubr.bf16.gmra.mxu0 %v2633
        %v2732 = vpop.f32.mrf.mxu0
        %v2733 = vadd.f32 0.0, %v2732
        %v2734 = vpop.f32.mrf.mxu0
        %v2735 = vadd.f32 0.0, %v2734
        %v2736 = vpop.f32.mrf.mxu0
        %v2737 = vadd.f32 0.0, %v2736
        %v2738 = vpop.f32.mrf.mxu0
        %v2739 = vadd.f32 0.0, %v2738
        %2740 = vdwg.mxu0
        %v2741 = vadd.f32 %v2583, %v2670
        %v2742 = vadd.f32 %v2584, %v2672
        %v2743 = vadd.f32 %v2585, %v2723
        %v2744 = vadd.f32 %v2586, %v2725
        %v2745 = vadd.f32 %v2587, %v2674
        %v2746 = vadd.f32 %v2588, %v2676
        %v2747 = vadd.f32 %v2589, %v2727
        %v2748 = vadd.f32 %v2590, %v2729
        %v2749 = vadd.f32 %v2591, %v2680
        %v2750 = vadd.f32 %v2592, %v2682
        %v2751 = vadd.f32 %v2593, %v2733
        %v2752 = vadd.f32 %v2594, %v2735
        %v2753 = vadd.f32 %v2595, %v2684
        %v2754 = vadd.f32 %v2596, %v2686
        %v2755 = vadd.f32 %v2597, %v2737
        %v2756 = vadd.f32 %v2598, %v2739
        %s2757 = scalar_lea.vmem %s3, 96
        %v2758 = vld [vmem:[%s2757] sm:$0xf]
        %v2759 = vld [vmem:[%s2757 + $0x4] sm:$0xf]
        %v2760 = vld [vmem:[%s2757 + $0x8] sm:$0xf]
        %v2761 = vld [vmem:[%s2757 + $0xc] sm:$0xf]
        %v2766 = vunpack.c.l.b16 %v2758
        %v2767 = vunpack.c.l.b16 %v2759
        %v2768 = vunpack.c.l.b16 %v2760
        %v2769 = vunpack.c.l.b16 %v2761
        %v2770 = vpack.c.b16 %v2767, %v2766
        %v2771 = vpack.c.b16 %v2769, %v2768
        %2772 = vrot.lane.b32.xlu0 %v1867, 88
        %v2773 = vpop.permute.xlu0 %2772
        %2774 = vrot.lane.b32.xlu0 %v1868, 88
        %v2775 = vpop.permute.xlu0 %2774
        %2776 = vrot.lane.b32.xlu0 %v1869, 88
        %v2777 = vpop.permute.xlu0 %2776
        %2778 = vrot.lane.b32.xlu0 %v1870, 88
        %v2779 = vpop.permute.xlu0 %2778
        %v2780 = vsel %vm1309, %v2773, %v2775
        %v2781 = vsel %vm1309, %v2775, %v2777
        %v2782 = vsel %vm1309, %v2777, %v2779
        %v2788 = vsel %vm1886, %v2770, 0
        %v2791 = vsel %vm1886, %v2771, 0
        %2793 = vmatprep.subr.bf16.mxu0 0
        %2794 = vmatpush1.bf16.msra.mxu0 0
        %2795 = vmatprep.subr.bf16.mxu0 0
        %2796 = vmatpush1.bf16.msra.mxu0 0
        %2797 = vmatprep.subr.bf16.mxu0 0
        %2798 = vmatpush1.bf16.msra.mxu0 0
        %2799 = vmatprep.subr.bf16.mxu0 0
        %2800 = vmatpush1.bf16.msra.mxu0 0
        %2801 = vmatprep.subr.bf16.mxu0 0
        %2802 = vmatpush1.bf16.msra.mxu0 0
        %2803 = vmatprep.subr.bf16.mxu0 0
        %2804 = vmatpush1.bf16.msra.mxu0 0
        %2805 = vmatprep.subr.bf16.mxu0 0
        %2806 = vmatpush1.bf16.msra.mxu0 0
        %2807 = vmatprep.subr.bf16.mxu0 %v2781
        %2808 = vmatpush1.bf16.msra.mxu0 %v2780
        %2809 = vmatprep.subr.bf16.mxu0 0
        %2810 = vmatpush2.bf16.msra.mxu0 0
        %2811 = vmatprep.subr.bf16.mxu0 0
        %2812 = vmatpush2.bf16.msra.mxu0 0
        %2813 = vmatprep.subr.bf16.mxu0 0
        %2814 = vmatpush2.bf16.msra.mxu0 0
        %2815 = vmatprep.subr.bf16.mxu0 0
        %2816 = vmatpush2.bf16.msra.mxu0 0
        %2817 = vmatprep.subr.bf16.mxu0 0
        %2818 = vmatpush2.bf16.msra.mxu0 0
        %2819 = vmatprep.subr.bf16.mxu0 0
        %2820 = vmatpush2.bf16.msra.mxu0 0
        %2821 = vmatprep.subr.bf16.mxu0 0
        %2822 = vmatpush2.bf16.msra.mxu0 0
        %2823 = vmatprep.subr.bf16.mxu0 0
        %2824 = vmatpush2.bf16.msra.mxu0 0
        %2825 = vmatprep.mubr.bf16.mxu0 0
        %2826 = vmatmul.mubr.bf16.gmra.mxu0 %v2788
        %v2827 = vpop.f32.mrf.mxu0
        %v2828 = vadd.f32 0.0, %v2827
        %v2829 = vpop.f32.mrf.mxu0
        %v2830 = vadd.f32 0.0, %v2829
        %v2831 = vpop.f32.mrf.mxu0
        %v2832 = vadd.f32 0.0, %v2831
        %v2833 = vpop.f32.mrf.mxu0
        %v2834 = vadd.f32 0.0, %v2833
        %2835 = vmatprep.mubr.bf16.mxu0 0
        %2836 = vmatmul.mubr.bf16.gmra.mxu0 %v2791
        %v2837 = vpop.f32.mrf.mxu0
        %v2838 = vadd.f32 0.0, %v2837
        %v2839 = vpop.f32.mrf.mxu0
        %v2840 = vadd.f32 0.0, %v2839
        %v2841 = vpop.f32.mrf.mxu0
        %v2842 = vadd.f32 0.0, %v2841
        %v2843 = vpop.f32.mrf.mxu0
        %v2844 = vadd.f32 0.0, %v2843
        %2845 = vdwg.mxu0
        %2846 = vmatprep.subr.bf16.mxu0 0
        %2847 = vmatpush1.bf16.msra.mxu0 0
        %2848 = vmatprep.subr.bf16.mxu0 0
        %2849 = vmatpush1.bf16.msra.mxu0 0
        %2850 = vmatprep.subr.bf16.mxu0 0
        %2851 = vmatpush1.bf16.msra.mxu0 0
        %2852 = vmatprep.subr.bf16.mxu0 0
        %2853 = vmatpush1.bf16.msra.mxu0 0
        %2854 = vmatprep.subr.bf16.mxu0 0
        %2855 = vmatpush1.bf16.msra.mxu0 0
        %2856 = vmatprep.subr.bf16.mxu0 0
        %2857 = vmatpush1.bf16.msra.mxu0 0
        %2858 = vmatprep.subr.bf16.mxu0 0
        %2859 = vmatpush1.bf16.msra.mxu0 0
        %2860 = vmatprep.subr.bf16.mxu0 %v2779
        %2861 = vmatpush1.bf16.msra.mxu0 %v2782
        %2862 = vmatprep.subr.bf16.mxu0 0
        %2863 = vmatpush2.bf16.msra.mxu0 0
        %2864 = vmatprep.subr.bf16.mxu0 0
        %2865 = vmatpush2.bf16.msra.mxu0 0
        %2866 = vmatprep.subr.bf16.mxu0 0
        %2867 = vmatpush2.bf16.msra.mxu0 0
        %2868 = vmatprep.subr.bf16.mxu0 0
        %2869 = vmatpush2.bf16.msra.mxu0 0
        %2870 = vmatprep.subr.bf16.mxu0 0
        %2871 = vmatpush2.bf16.msra.mxu0 0
        %2872 = vmatprep.subr.bf16.mxu0 0
        %2873 = vmatpush2.bf16.msra.mxu0 0
        %2874 = vmatprep.subr.bf16.mxu0 0
        %2875 = vmatpush2.bf16.msra.mxu0 0
        %2876 = vmatprep.subr.bf16.mxu0 0
        %2877 = vmatpush2.bf16.msra.mxu0 0
        %2878 = vmatprep.mubr.bf16.mxu0 0
        %2879 = vmatmul.mubr.bf16.gmra.mxu0 %v2788
        %v2880 = vpop.f32.mrf.mxu0
        %v2881 = vadd.f32 0.0, %v2880
        %v2882 = vpop.f32.mrf.mxu0
        %v2883 = vadd.f32 0.0, %v2882
        %v2884 = vpop.f32.mrf.mxu0
        %v2885 = vadd.f32 0.0, %v2884
        %v2886 = vpop.f32.mrf.mxu0
        %v2887 = vadd.f32 0.0, %v2886
        %2888 = vmatprep.mubr.bf16.mxu0 0
        %2889 = vmatmul.mubr.bf16.gmra.mxu0 %v2791
        %v2890 = vpop.f32.mrf.mxu0
        %v2891 = vadd.f32 0.0, %v2890
        %v2892 = vpop.f32.mrf.mxu0
        %v2893 = vadd.f32 0.0, %v2892
        %v2894 = vpop.f32.mrf.mxu0
        %v2895 = vadd.f32 0.0, %v2894
        %v2896 = vpop.f32.mrf.mxu0
        %v2897 = vadd.f32 0.0, %v2896
        %2898 = vdwg.mxu0
        %v2899 = vadd.f32 %v2741, %v2828
        %v2900 = vadd.f32 %v2742, %v2830
        %v2901 = vadd.f32 %v2743, %v2881
        %v2902 = vadd.f32 %v2744, %v2883
        %v2903 = vadd.f32 %v2745, %v2832
        %v2904 = vadd.f32 %v2746, %v2834
        %v2905 = vadd.f32 %v2747, %v2885
        %v2906 = vadd.f32 %v2748, %v2887
        %v2907 = vadd.f32 %v2749, %v2838
        %v2908 = vadd.f32 %v2750, %v2840
        %v2909 = vadd.f32 %v2751, %v2891
        %v2910 = vadd.f32 %v2752, %v2893
        %v2911 = vadd.f32 %v2753, %v2842
        %v2912 = vadd.f32 %v2754, %v2844
        %v2913 = vadd.f32 %v2755, %v2895
        %v2914 = vadd.f32 %v2756, %v2897
        %s2915 = scalar_lea.vmem %s3, 112
        %v2916 = vld [vmem:[%s2915] sm:$0xf]
        %v2917 = vld [vmem:[%s2915 + $0x4] sm:$0xf]
        %v2918 = vld [vmem:[%s2915 + $0x8] sm:$0xf]
        %v2919 = vld [vmem:[%s2915 + $0xc] sm:$0xf]
        %v2924 = vunpack.c.l.b16 %v2916
        %v2925 = vunpack.c.l.b16 %v2917
        %v2926 = vunpack.c.l.b16 %v2918
        %v2927 = vunpack.c.l.b16 %v2919
        %v2928 = vpack.c.b16 %v2925, %v2924
        %v2929 = vpack.c.b16 %v2927, %v2926
        %2930 = vrot.lane.b32.xlu0 %v1867, 87
        %v2931 = vpop.permute.xlu0 %2930
        %2932 = vrot.lane.b32.xlu0 %v1868, 87
        %v2933 = vpop.permute.xlu0 %2932
        %2934 = vrot.lane.b32.xlu0 %v1869, 87
        %v2935 = vpop.permute.xlu0 %2934
        %2936 = vrot.lane.b32.xlu0 %v1870, 87
        %v2937 = vpop.permute.xlu0 %2936
        %v2938 = vsel %vm1469, %v2931, %v2933
        %v2939 = vsel %vm1469, %v2933, %v2935
        %v2940 = vsel %vm1469, %v2935, %v2937
        %v2946 = vsel %vm1886, %v2928, 0
        %v2949 = vsel %vm1886, %v2929, 0
        %2951 = vmatprep.subr.bf16.mxu0 0
        %2952 = vmatpush1.bf16.msra.mxu0 0
        %2953 = vmatprep.subr.bf16.mxu0 0
        %2954 = vmatpush1.bf16.msra.mxu0 0
        %2955 = vmatprep.subr.bf16.mxu0 0
        %2956 = vmatpush1.bf16.msra.mxu0 0
        %2957 = vmatprep.subr.bf16.mxu0 0
        %2958 = vmatpush1.bf16.msra.mxu0 0
        %2959 = vmatprep.subr.bf16.mxu0 0
        %2960 = vmatpush1.bf16.msra.mxu0 0
        %2961 = vmatprep.subr.bf16.mxu0 0
        %2962 = vmatpush1.bf16.msra.mxu0 0
        %2963 = vmatprep.subr.bf16.mxu0 0
        %2964 = vmatpush1.bf16.msra.mxu0 0
        %2965 = vmatprep.subr.bf16.mxu0 %v2939
        %2966 = vmatpush1.bf16.msra.mxu0 %v2938
        %2967 = vmatprep.subr.bf16.mxu0 0
        %2968 = vmatpush2.bf16.msra.mxu0 0
        %2969 = vmatprep.subr.bf16.mxu0 0
        %2970 = vmatpush2.bf16.msra.mxu0 0
        %2971 = vmatprep.subr.bf16.mxu0 0
        %2972 = vmatpush2.bf16.msra.mxu0 0
        %2973 = vmatprep.subr.bf16.mxu0 0
        %2974 = vmatpush2.bf16.msra.mxu0 0
        %2975 = vmatprep.subr.bf16.mxu0 0
        %2976 = vmatpush2.bf16.msra.mxu0 0
        %2977 = vmatprep.subr.bf16.mxu0 0
        %2978 = vmatpush2.bf16.msra.mxu0 0
        %2979 = vmatprep.subr.bf16.mxu0 0
        %2980 = vmatpush2.bf16.msra.mxu0 0
        %2981 = vmatprep.subr.bf16.mxu0 0
        %2982 = vmatpush2.bf16.msra.mxu0 0
        %2983 = vmatprep.mubr.bf16.mxu0 0
        %2984 = vmatmul.mubr.bf16.gmra.mxu0 %v2946
        %v2985 = vpop.f32.mrf.mxu0
        %v2986 = vadd.f32 0.0, %v2985
        %v2987 = vpop.f32.mrf.mxu0
        %v2988 = vadd.f32 0.0, %v2987
        %v2989 = vpop.f32.mrf.mxu0
        %v2990 = vadd.f32 0.0, %v2989
        %v2991 = vpop.f32.mrf.mxu0
        %v2992 = vadd.f32 0.0, %v2991
        %2993 = vmatprep.mubr.bf16.mxu0 0
        %2994 = vmatmul.mubr.bf16.gmra.mxu0 %v2949
        %v2995 = vpop.f32.mrf.mxu0
        %v2996 = vadd.f32 0.0, %v2995
        %v2997 = vpop.f32.mrf.mxu0
        %v2998 = vadd.f32 0.0, %v2997
        %v2999 = vpop.f32.mrf.mxu0
        %v3000 = vadd.f32 0.0, %v2999
        %v3001 = vpop.f32.mrf.mxu0
        %v3002 = vadd.f32 0.0, %v3001
        %3003 = vdwg.mxu0
        %3004 = vmatprep.subr.bf16.mxu0 0
        %3005 = vmatpush1.bf16.msra.mxu0 0
        %3006 = vmatprep.subr.bf16.mxu0 0
        %3007 = vmatpush1.bf16.msra.mxu0 0
        %3008 = vmatprep.subr.bf16.mxu0 0
        %3009 = vmatpush1.bf16.msra.mxu0 0
        %3010 = vmatprep.subr.bf16.mxu0 0
        %3011 = vmatpush1.bf16.msra.mxu0 0
        %3012 = vmatprep.subr.bf16.mxu0 0
        %3013 = vmatpush1.bf16.msra.mxu0 0
        %3014 = vmatprep.subr.bf16.mxu0 0
        %3015 = vmatpush1.bf16.msra.mxu0 0
        %3016 = vmatprep.subr.bf16.mxu0 0
        %3017 = vmatpush1.bf16.msra.mxu0 0
        %3018 = vmatprep.subr.bf16.mxu0 %v2937
        %3019 = vmatpush1.bf16.msra.mxu0 %v2940
        %3020 = vmatprep.subr.bf16.mxu0 0
        %3021 = vmatpush2.bf16.msra.mxu0 0
        %3022 = vmatprep.subr.bf16.mxu0 0
        %3023 = vmatpush2.bf16.msra.mxu0 0
        %3024 = vmatprep.subr.bf16.mxu0 0
        %3025 = vmatpush2.bf16.msra.mxu0 0
        %3026 = vmatprep.subr.bf16.mxu0 0
        %3027 = vmatpush2.bf16.msra.mxu0 0
        %3028 = vmatprep.subr.bf16.mxu0 0
        %3029 = vmatpush2.bf16.msra.mxu0 0
        %3030 = vmatprep.subr.bf16.mxu0 0
        %3031 = vmatpush2.bf16.msra.mxu0 0
        %3032 = vmatprep.subr.bf16.mxu0 0
        %3033 = vmatpush2.bf16.msra.mxu0 0
        %3034 = vmatprep.subr.bf16.mxu0 0
        %3035 = vmatpush2.bf16.msra.mxu0 0
        %3036 = vmatprep.mubr.bf16.mxu0 0
        %3037 = vmatmul.mubr.bf16.gmra.mxu0 %v2946
        %v3038 = vpop.f32.mrf.mxu0
        %v3039 = vadd.f32 0.0, %v3038
        %v3040 = vpop.f32.mrf.mxu0
        %v3041 = vadd.f32 0.0, %v3040
        %v3042 = vpop.f32.mrf.mxu0
        %v3043 = vadd.f32 0.0, %v3042
        %v3044 = vpop.f32.mrf.mxu0
        %v3045 = vadd.f32 0.0, %v3044
        %3046 = vmatprep.mubr.bf16.mxu0 0
        %3047 = vmatmul.mubr.bf16.gmra.mxu0 %v2949
        %v3048 = vpop.f32.mrf.mxu0
        %v3049 = vadd.f32 0.0, %v3048
        %v3050 = vpop.f32.mrf.mxu0
        %v3051 = vadd.f32 0.0, %v3050
        %v3052 = vpop.f32.mrf.mxu0
        %v3053 = vadd.f32 0.0, %v3052
        %v3054 = vpop.f32.mrf.mxu0
        %v3055 = vadd.f32 0.0, %v3054
        %3056 = vdwg.mxu0
        %v3057 = vadd.f32 %v2899, %v2986
        %v3058 = vadd.f32 %v2900, %v2988
        %v3059 = vadd.f32 %v2901, %v3039
        %v3060 = vadd.f32 %v2902, %v3041
        %v3061 = vadd.f32 %v2903, %v2990
        %v3062 = vadd.f32 %v2904, %v2992
        %v3063 = vadd.f32 %v2905, %v3043
        %v3064 = vadd.f32 %v2906, %v3045
        %v3065 = vadd.f32 %v2907, %v2996
        %v3066 = vadd.f32 %v2908, %v2998
        %v3067 = vadd.f32 %v2909, %v3049
        %v3068 = vadd.f32 %v2910, %v3051
        %v3069 = vadd.f32 %v2911, %v3000
        %v3070 = vadd.f32 %v2912, %v3002
        %v3071 = vadd.f32 %v2913, %v3053
        %v3072 = vadd.f32 %v2914, %v3055
        %s3073 = scalar_lea.vmem %s3, 128
        %v3074 = vld [vmem:[%s3073] sm:$0xf]
        %v3075 = vld [vmem:[%s3073 + $0x4] sm:$0xf]
        %v3076 = vld [vmem:[%s3073 + $0x8] sm:$0xf]
        %v3077 = vld [vmem:[%s3073 + $0xc] sm:$0xf]
        %v3082 = vunpack.c.l.b16 %v3074
        %v3083 = vunpack.c.l.b16 %v3075
        %v3084 = vunpack.c.l.b16 %v3076
        %v3085 = vunpack.c.l.b16 %v3077
        %v3086 = vpack.c.b16 %v3083, %v3082
        %v3087 = vpack.c.b16 %v3085, %v3084
        %3088 = vrot.lane.b32.xlu0 %v1867, 86
        %v3089 = vpop.permute.xlu0 %3088
        %3090 = vrot.lane.b32.xlu0 %v1868, 86
        %v3091 = vpop.permute.xlu0 %3090
        %3092 = vrot.lane.b32.xlu0 %v1869, 86
        %v3093 = vpop.permute.xlu0 %3092
        %3094 = vrot.lane.b32.xlu0 %v1870, 86
        %v3095 = vpop.permute.xlu0 %3094
        %v3096 = vsel %vm1629, %v3089, %v3091
        %v3097 = vsel %vm1629, %v3091, %v3093
        %v3098 = vsel %vm1629, %v3093, %v3095
        %v3104 = vsel %vm1886, %v3086, 0
        %v3107 = vsel %vm1886, %v3087, 0
        %3109 = vmatprep.subr.bf16.mxu0 0
        %3110 = vmatpush1.bf16.msra.mxu0 0
        %3111 = vmatprep.subr.bf16.mxu0 0
        %3112 = vmatpush1.bf16.msra.mxu0 0
        %3113 = vmatprep.subr.bf16.mxu0 0
        %3114 = vmatpush1.bf16.msra.mxu0 0
        %3115 = vmatprep.subr.bf16.mxu0 0
        %3116 = vmatpush1.bf16.msra.mxu0 0
        %3117 = vmatprep.subr.bf16.mxu0 0
        %3118 = vmatpush1.bf16.msra.mxu0 0
        %3119 = vmatprep.subr.bf16.mxu0 0
        %3120 = vmatpush1.bf16.msra.mxu0 0
        %3121 = vmatprep.subr.bf16.mxu0 0
        %3122 = vmatpush1.bf16.msra.mxu0 0
        %3123 = vmatprep.subr.bf16.mxu0 %v3097
        %3124 = vmatpush1.bf16.msra.mxu0 %v3096
        %3125 = vmatprep.subr.bf16.mxu0 0
        %3126 = vmatpush2.bf16.msra.mxu0 0
        %3127 = vmatprep.subr.bf16.mxu0 0
        %3128 = vmatpush2.bf16.msra.mxu0 0
        %3129 = vmatprep.subr.bf16.mxu0 0
        %3130 = vmatpush2.bf16.msra.mxu0 0
        %3131 = vmatprep.subr.bf16.mxu0 0
        %3132 = vmatpush2.bf16.msra.mxu0 0
        %3133 = vmatprep.subr.bf16.mxu0 0
        %3134 = vmatpush2.bf16.msra.mxu0 0
        %3135 = vmatprep.subr.bf16.mxu0 0
        %3136 = vmatpush2.bf16.msra.mxu0 0
        %3137 = vmatprep.subr.bf16.mxu0 0
        %3138 = vmatpush2.bf16.msra.mxu0 0
        %3139 = vmatprep.subr.bf16.mxu0 0
        %3140 = vmatpush2.bf16.msra.mxu0 0
        %3141 = vmatprep.mubr.bf16.mxu0 0
        %3142 = vmatmul.mubr.bf16.gmra.mxu0 %v3104
        %v3143 = vpop.f32.mrf.mxu0
        %v3144 = vadd.f32 0.0, %v3143
        %v3145 = vpop.f32.mrf.mxu0
        %v3146 = vadd.f32 0.0, %v3145
        %v3147 = vpop.f32.mrf.mxu0
        %v3148 = vadd.f32 0.0, %v3147
        %v3149 = vpop.f32.mrf.mxu0
        %v3150 = vadd.f32 0.0, %v3149
        %3151 = vmatprep.mubr.bf16.mxu0 0
        %3152 = vmatmul.mubr.bf16.gmra.mxu0 %v3107
        %v3153 = vpop.f32.mrf.mxu0
        %v3154 = vadd.f32 0.0, %v3153
        %v3155 = vpop.f32.mrf.mxu0
        %v3156 = vadd.f32 0.0, %v3155
        %v3157 = vpop.f32.mrf.mxu0
        %v3158 = vadd.f32 0.0, %v3157
        %v3159 = vpop.f32.mrf.mxu0
        %v3160 = vadd.f32 0.0, %v3159
        %3161 = vdwg.mxu0
        %3162 = vmatprep.subr.bf16.mxu0 0
        %3163 = vmatpush1.bf16.msra.mxu0 0
        %3164 = vmatprep.subr.bf16.mxu0 0
        %3165 = vmatpush1.bf16.msra.mxu0 0
        %3166 = vmatprep.subr.bf16.mxu0 0
        %3167 = vmatpush1.bf16.msra.mxu0 0
        %3168 = vmatprep.subr.bf16.mxu0 0
        %3169 = vmatpush1.bf16.msra.mxu0 0
        %3170 = vmatprep.subr.bf16.mxu0 0
        %3171 = vmatpush1.bf16.msra.mxu0 0
        %3172 = vmatprep.subr.bf16.mxu0 0
        %3173 = vmatpush1.bf16.msra.mxu0 0
        %3174 = vmatprep.subr.bf16.mxu0 0
        %3175 = vmatpush1.bf16.msra.mxu0 0
        %3176 = vmatprep.subr.bf16.mxu0 %v3095
        %3177 = vmatpush1.bf16.msra.mxu0 %v3098
        %3178 = vmatprep.subr.bf16.mxu0 0
        %3179 = vmatpush2.bf16.msra.mxu0 0
        %3180 = vmatprep.subr.bf16.mxu0 0
        %3181 = vmatpush2.bf16.msra.mxu0 0
        %3182 = vmatprep.subr.bf16.mxu0 0
        %3183 = vmatpush2.bf16.msra.mxu0 0
        %3184 = vmatprep.subr.bf16.mxu0 0
        %3185 = vmatpush2.bf16.msra.mxu0 0
        %3186 = vmatprep.subr.bf16.mxu0 0
        %3187 = vmatpush2.bf16.msra.mxu0 0
        %3188 = vmatprep.subr.bf16.mxu0 0
        %3189 = vmatpush2.bf16.msra.mxu0 0
        %3190 = vmatprep.subr.bf16.mxu0 0
        %3191 = vmatpush2.bf16.msra.mxu0 0
        %3192 = vmatprep.subr.bf16.mxu0 0
        %3193 = vmatpush2.bf16.msra.mxu0 0
        %3194 = vmatprep.mubr.bf16.mxu0 0
        %3195 = vmatmul.mubr.bf16.gmra.mxu0 %v3104
        %v3196 = vpop.f32.mrf.mxu0
        %v3197 = vadd.f32 0.0, %v3196
        %v3198 = vpop.f32.mrf.mxu0
        %v3199 = vadd.f32 0.0, %v3198
        %v3200 = vpop.f32.mrf.mxu0
        %v3201 = vadd.f32 0.0, %v3200
        %v3202 = vpop.f32.mrf.mxu0
        %v3203 = vadd.f32 0.0, %v3202
        %3204 = vmatprep.mubr.bf16.mxu0 0
        %3205 = vmatmul.mubr.bf16.gmra.mxu0 %v3107
        %v3206 = vpop.f32.mrf.mxu0
        %v3207 = vadd.f32 0.0, %v3206
        %v3208 = vpop.f32.mrf.mxu0
        %v3209 = vadd.f32 0.0, %v3208
        %v3210 = vpop.f32.mrf.mxu0
        %v3211 = vadd.f32 0.0, %v3210
        %v3212 = vpop.f32.mrf.mxu0
        %v3213 = vadd.f32 0.0, %v3212
        %3214 = vdwg.mxu0
        %v3215 = vadd.f32 %v3057, %v3144
        %v3216 = vadd.f32 %v3058, %v3146
        %v3217 = vadd.f32 %v3059, %v3197
        %v3218 = vadd.f32 %v3060, %v3199
        %v3219 = vadd.f32 %v3061, %v3148
        %v3220 = vadd.f32 %v3062, %v3150
        %v3221 = vadd.f32 %v3063, %v3201
        %v3222 = vadd.f32 %v3064, %v3203
        %v3223 = vadd.f32 %v3065, %v3154
        %v3224 = vadd.f32 %v3066, %v3156
        %v3225 = vadd.f32 %v3067, %v3207
        %v3226 = vadd.f32 %v3068, %v3209
        %v3227 = vadd.f32 %v3069, %v3158
        %v3228 = vadd.f32 %v3070, %v3160
        %v3229 = vadd.f32 %v3071, %v3211
        %v3230 = vadd.f32 %v3072, %v3213
        %v3231 = vld [vmem:[%s4] sm:$0xff]
        %v3232 = vld [vmem:[%s4 + $0x8] sm:$0xff]
        %v3233 = vld [vmem:[%s4 + $0x10] sm:$0xff]
        %v3234 = vld [vmem:[%s4 + $0x18] sm:$0xff]
        %3236 = vset.pattern.permute.xlu0 0
        %3237 = vperm.xlu0 %3236, %v3231
        %v3238 = vpop.permute.xlu0 %3237
        %3241 = vset.pattern.permute.xlu0 0
        %3242 = vperm.xlu0 %3241, %v3232
        %v3243 = vpop.permute.xlu0 %3242
        %3246 = vset.pattern.permute.xlu0 0
        %3247 = vperm.xlu0 %3246, %v3233
        %v3248 = vpop.permute.xlu0 %3247
        %3251 = vset.pattern.permute.xlu0 0
        %3252 = vperm.xlu0 %3251, %v3234
        %v3253 = vpop.permute.xlu0 %3252
        %v3255 = vadd.f32 %v3215, %v3238
        %v3256 = vadd.f32 %v3216, %v3238
        %v3257 = vadd.f32 %v3217, %v3238
        %v3258 = vadd.f32 %v3218, %v3238
        %v3259 = vadd.f32 %v3219, %v3243
        %v3260 = vadd.f32 %v3220, %v3243
        %v3261 = vadd.f32 %v3221, %v3243
        %v3262 = vadd.f32 %v3222, %v3243
        %v3263 = vadd.f32 %v3223, %v3248
        %v3264 = vadd.f32 %v3224, %v3248
        %v3265 = vadd.f32 %v3225, %v3248
        %v3266 = vadd.f32 %v3226, %v3248
        %v3267 = vadd.f32 %v3227, %v3253
        %v3268 = vadd.f32 %v3228, %v3253
        %v3269 = vadd.f32 %v3229, %v3253
        %v3270 = vadd.f32 %v3230, %v3253
        %v3271 = vmax.f32 %v3255, 0.0
        %v3272 = vmax.f32 %v3256, 0.0
        %v3273 = vmax.f32 %v3257, 0.0
        %v3274 = vmax.f32 %v3258, 0.0
        %v3275 = vmax.f32 %v3259, 0.0
        %v3276 = vmax.f32 %v3260, 0.0
        %v3277 = vmax.f32 %v3261, 0.0
        %v3278 = vmax.f32 %v3262, 0.0
        %v3279 = vmax.f32 %v3263, 0.0
        %v3280 = vmax.f32 %v3264, 0.0
        %v3281 = vmax.f32 %v3265, 0.0
        %v3282 = vmax.f32 %v3266, 0.0
        %v3283 = vmax.f32 %v3267, 0.0
        %v3284 = vmax.f32 %v3268, 0.0
        %v3285 = vmax.f32 %v3269, 0.0
        %v3286 = vmax.f32 %v3270, 0.0
        %v3287 = vld [vmem:[%s6] sm:$0xff]
        %v3288 = vld [vmem:[%s6 + $0x8] sm:$0xff]
        %v3289 = vld [vmem:[%s6 + $0x10] sm:$0xff]
        %v3290 = vld [vmem:[%s6 + $0x18] sm:$0xff]
        %v3291 = vld [vmem:[%s6 + $0x20] sm:$0xff]
        %v3292 = vld [vmem:[%s6 + $0x28] sm:$0xff]
        %v3293 = vld [vmem:[%s6 + $0x30] sm:$0xff]
        %v3294 = vld [vmem:[%s6 + $0x38] sm:$0xff]
        %v3295 = vld [vmem:[%s6 + $0x40] sm:$0xff]
        %v3296 = vld [vmem:[%s6 + $0x48] sm:$0xff]
        %v3297 = vld [vmem:[%s6 + $0x50] sm:$0xff]
        %v3298 = vld [vmem:[%s6 + $0x58] sm:$0xff]
        %v3299 = vld [vmem:[%s6 + $0x60] sm:$0xff]
        %v3300 = vld [vmem:[%s6 + $0x68] sm:$0xff]
        %v3301 = vld [vmem:[%s6 + $0x70] sm:$0xff]
        %v3302 = vld [vmem:[%s6 + $0x78] sm:$0xff]
        %v3303 = vld [vmem:[%s6 + $0x80] sm:$0xff]
        %v3304 = vld [vmem:[%s6 + $0x88] sm:$0xff]
        %v3305 = vld [vmem:[%s6 + $0x90] sm:$0xff]
        %v3306 = vld [vmem:[%s6 + $0x98] sm:$0xff]
        %v3307 = vld [vmem:[%s6 + $0xa0] sm:$0xff]
        %v3308 = vld [vmem:[%s6 + $0xa8] sm:$0xff]
        %v3309 = vld [vmem:[%s6 + $0xb0] sm:$0xff]
        %v3310 = vld [vmem:[%s6 + $0xb8] sm:$0xff]
        %v3311 = vld [vmem:[%s6 + $0xc0] sm:$0xff]
        %v3312 = vld [vmem:[%s6 + $0xc8] sm:$0xff]
        %v3313 = vld [vmem:[%s6 + $0xd0] sm:$0xff]
        %v3314 = vld [vmem:[%s6 + $0xd8] sm:$0xff]
        %v3315 = vld [vmem:[%s6 + $0xe0] sm:$0xff]
        %v3316 = vld [vmem:[%s6 + $0xe8] sm:$0xff]
        %v3317 = vld [vmem:[%s6 + $0xf0] sm:$0xff]
        %v3318 = vld [vmem:[%s6 + $0xf8] sm:$0xff]
        %v3319 = vld [vmem:[%s6 + $0x100] sm:$0xff]
        %v3320 = vld [vmem:[%s6 + $0x108] sm:$0xff]
        %v3321 = vld [vmem:[%s6 + $0x110] sm:$0xff]
        %v3322 = vld [vmem:[%s6 + $0x118] sm:$0xff]
        %v3323 = vld [vmem:[%s6 + $0x120] sm:$0xff]
        %v3324 = vld [vmem:[%s6 + $0x128] sm:$0xff]
        %v3325 = vld [vmem:[%s6 + $0x130] sm:$0xff]
        %v3326 = vld [vmem:[%s6 + $0x138] sm:$0xff]
        %v3327 = vld [vmem:[%s6 + $0x140] sm:$0xff]
        %v3328 = vld [vmem:[%s6 + $0x148] sm:$0xff]
        %v3329 = vld [vmem:[%s6 + $0x150] sm:$0xff]
        %v3330 = vld [vmem:[%s6 + $0x158] sm:$0xff]
        %v3331 = vld [vmem:[%s6 + $0x160] sm:$0xff]
        %v3332 = vld [vmem:[%s6 + $0x168] sm:$0xff]
        %v3333 = vld [vmem:[%s6 + $0x170] sm:$0xff]
        %v3334 = vld [vmem:[%s6 + $0x178] sm:$0xff]
        %v3335 = vld [vmem:[%s6 + $0x180] sm:$0xff]
        %v3336 = vld [vmem:[%s6 + $0x188] sm:$0xff]
        %v3337 = vld [vmem:[%s6 + $0x190] sm:$0xff]
        %v3338 = vld [vmem:[%s6 + $0x198] sm:$0xff]
        %v3339 = vld [vmem:[%s6 + $0x1a0] sm:$0xff]
        %v3340 = vld [vmem:[%s6 + $0x1a8] sm:$0xff]
        %v3341 = vld [vmem:[%s6 + $0x1b0] sm:$0xff]
        %vm3342 = vcmask 457728
        %v3344 = vsel %vm3342, %v3274, 0
        %v3347 = vsel %vm3342, %v3278, 0
        %v3350 = vsel %vm3342, %v3282, 0
        %v3353 = vsel %vm3342, %v3286, 0
        %3355 = vmatprep.subr.mxu0 0.0
        %3356 = vmatpush1.msra.mxu0 %v3302
        %3357 = vmatprep.subr.mxu0 0.0
        %3358 = vmatpush1.msra.mxu0 %v3301
        %3359 = vmatprep.subr.mxu0 0.0
        %3360 = vmatpush1.msra.mxu0 %v3300
        %3361 = vmatprep.subr.mxu0 0.0
        %3362 = vmatpush1.msra.mxu0 %v3299
        %3363 = vmatprep.subr.mxu0 0.0
        %3364 = vmatpush1.msra.mxu0 %v3298
        %3365 = vmatprep.subr.mxu0 0.0
        %3366 = vmatpush1.msra.mxu0 %v3297
        %3367 = vmatprep.subr.mxu0 0.0
        %3368 = vmatpush1.msra.mxu0 %v3296
        %3369 = vmatprep.subr.mxu0 0.0
        %3370 = vmatpush1.msra.mxu0 %v3295
        %3371 = vmatprep.subr.mxu0 0.0
        %3372 = vmatpush1.msra.mxu0 %v3294
        %3373 = vmatprep.subr.mxu0 0.0
        %3374 = vmatpush1.msra.mxu0 %v3293
        %3375 = vmatprep.subr.mxu0 0.0
        %3376 = vmatpush1.msra.mxu0 %v3292
        %3377 = vmatprep.subr.mxu0 0.0
        %3378 = vmatpush1.msra.mxu0 %v3291
        %3379 = vmatprep.subr.mxu0 0.0
        %3380 = vmatpush1.msra.mxu0 %v3290
        %3381 = vmatprep.subr.mxu0 0.0
        %3382 = vmatpush1.msra.mxu0 %v3289
        %3383 = vmatprep.subr.mxu0 0.0
        %3384 = vmatpush1.msra.mxu0 %v3288
        %3385 = vmatprep.subr.mxu0 0.0
        %3386 = vmatpush1.msra.mxu0 %v3287
        %3387 = vmatprep.subr.mxu0 0.0
        %3388 = vmatpush2.msra.mxu0 %v3318
        %3389 = vmatprep.subr.mxu0 0.0
        %3390 = vmatpush2.msra.mxu0 %v3317
        %3391 = vmatprep.subr.mxu0 0.0
        %3392 = vmatpush2.msra.mxu0 %v3316
        %3393 = vmatprep.subr.mxu0 0.0
        %3394 = vmatpush2.msra.mxu0 %v3315
        %3395 = vmatprep.subr.mxu0 0.0
        %3396 = vmatpush2.msra.mxu0 %v3314
        %3397 = vmatprep.subr.mxu0 0.0
        %3398 = vmatpush2.msra.mxu0 %v3313
        %3399 = vmatprep.subr.mxu0 0.0
        %3400 = vmatpush2.msra.mxu0 %v3312
        %3401 = vmatprep.subr.mxu0 0.0
        %3402 = vmatpush2.msra.mxu0 %v3311
        %3403 = vmatprep.subr.mxu0 0.0
        %3404 = vmatpush2.msra.mxu0 %v3310
        %3405 = vmatprep.subr.mxu0 0.0
        %3406 = vmatpush2.msra.mxu0 %v3309
        %3407 = vmatprep.subr.mxu0 0.0
        %3408 = vmatpush2.msra.mxu0 %v3308
        %3409 = vmatprep.subr.mxu0 0.0
        %3410 = vmatpush2.msra.mxu0 %v3307
        %3411 = vmatprep.subr.mxu0 0.0
        %3412 = vmatpush2.msra.mxu0 %v3306
        %3413 = vmatprep.subr.mxu0 0.0
        %3414 = vmatpush2.msra.mxu0 %v3305
        %3415 = vmatprep.subr.mxu0 0.0
        %3416 = vmatpush2.msra.mxu0 %v3304
        %3417 = vmatprep.subr.mxu0 0.0
        %3418 = vmatpush2.msra.mxu0 %v3303
        %3419 = vmatprep.mubr.f32.mxu0 %v3272
        %3420 = vmatmul.mubr.f32.gmra.mxu0 %v3271
        %v3421 = vpop.f32.mrf.mxu0
        %v3422 = vadd.f32 0.0, %v3421
        %v3423 = vpop.f32.mrf.mxu0
        %3424 = vmatprep.mubr.f32.mxu0 %v3276
        %3425 = vmatmul.mubr.f32.gmra.mxu0 %v3275
        %v3426 = vpop.f32.mrf.mxu0
        %v3427 = vadd.f32 0.0, %v3426
        %v3428 = vpop.f32.mrf.mxu0
        %3429 = vmatprep.mubr.f32.mxu0 %v3280
        %3430 = vmatmul.mubr.f32.gmra.mxu0 %v3279
        %v3431 = vpop.f32.mrf.mxu0
        %v3432 = vadd.f32 0.0, %v3431
        %v3433 = vpop.f32.mrf.mxu0
        %3434 = vmatprep.mubr.f32.mxu0 %v3284
        %3435 = vmatmul.mubr.f32.gmra.mxu0 %v3283
        %v3436 = vpop.f32.mrf.mxu0
        %v3437 = vadd.f32 0.0, %v3436
        %v3438 = vpop.f32.mrf.mxu0
        %3439 = vdwg.mxu0
        %3440 = vmatprep.subr.mxu0 0.0
        %3441 = vmatpush1.msra.mxu0 %v3334
        %3442 = vmatprep.subr.mxu0 0.0
        %3443 = vmatpush1.msra.mxu0 %v3333
        %3444 = vmatprep.subr.mxu0 0.0
        %3445 = vmatpush1.msra.mxu0 %v3332
        %3446 = vmatprep.subr.mxu0 0.0
        %3447 = vmatpush1.msra.mxu0 %v3331
        %3448 = vmatprep.subr.mxu0 0.0
        %3449 = vmatpush1.msra.mxu0 %v3330
        %3450 = vmatprep.subr.mxu0 0.0
        %3451 = vmatpush1.msra.mxu0 %v3329
        %3452 = vmatprep.subr.mxu0 0.0
        %3453 = vmatpush1.msra.mxu0 %v3328
        %3454 = vmatprep.subr.mxu0 0.0
        %3455 = vmatpush1.msra.mxu0 %v3327
        %3456 = vmatprep.subr.mxu0 0.0
        %3457 = vmatpush1.msra.mxu0 %v3326
        %3458 = vmatprep.subr.mxu0 0.0
        %3459 = vmatpush1.msra.mxu0 %v3325
        %3460 = vmatprep.subr.mxu0 0.0
        %3461 = vmatpush1.msra.mxu0 %v3324
        %3462 = vmatprep.subr.mxu0 0.0
        %3463 = vmatpush1.msra.mxu0 %v3323
        %3464 = vmatprep.subr.mxu0 0.0
        %3465 = vmatpush1.msra.mxu0 %v3322
        %3466 = vmatprep.subr.mxu0 0.0
        %3467 = vmatpush1.msra.mxu0 %v3321
        %3468 = vmatprep.subr.mxu0 0.0
        %3469 = vmatpush1.msra.mxu0 %v3320
        %3470 = vmatprep.subr.mxu0 0.0
        %3471 = vmatpush1.msra.mxu0 %v3319
        %3472 = vmatprep.subr.mxu0 0.0
        %3473 = vmatpush2.msra.mxu0 0.0
        %3474 = vmatprep.subr.mxu0 0.0
        %3475 = vmatpush2.msra.mxu0 0.0
        %3476 = vmatprep.subr.mxu0 0.0
        %3477 = vmatpush2.msra.mxu0 0.0
        %3478 = vmatprep.subr.mxu0 0.0
        %3479 = vmatpush2.msra.mxu0 0.0
        %3480 = vmatprep.subr.mxu0 0.0
        %3481 = vmatpush2.msra.mxu0 0.0
        %3482 = vmatprep.subr.mxu0 0.0
        %3483 = vmatpush2.msra.mxu0 0.0
        %3484 = vmatprep.subr.mxu0 0.0
        %3485 = vmatpush2.msra.mxu0 0.0
        %3486 = vmatprep.subr.mxu0 0.0
        %3487 = vmatpush2.msra.mxu0 0.0
        %3488 = vmatprep.subr.mxu0 0.0
        %3489 = vmatpush2.msra.mxu0 0.0
        %3490 = vmatprep.subr.mxu0 0.0
        %3491 = vmatpush2.msra.mxu0 %v3341
        %3492 = vmatprep.subr.mxu0 0.0
        %3493 = vmatpush2.msra.mxu0 %v3340
        %3494 = vmatprep.subr.mxu0 0.0
        %3495 = vmatpush2.msra.mxu0 %v3339
        %3496 = vmatprep.subr.mxu0 0.0
        %3497 = vmatpush2.msra.mxu0 %v3338
        %3498 = vmatprep.subr.mxu0 0.0
        %3499 = vmatpush2.msra.mxu0 %v3337
        %3500 = vmatprep.subr.mxu0 0.0
        %3501 = vmatpush2.msra.mxu0 %v3336
        %3502 = vmatprep.subr.mxu0 0.0
        %3503 = vmatpush2.msra.mxu0 %v3335
        %3504 = vmatprep.mubr.f32.mxu0 %v3344
        %3505 = vmatmul.mubr.f32.gmra.mxu0 %v3273
        %v3506 = vpop.f32.mrf.mxu0
        %v3507 = vadd.f32 %v3422, %v3506
        %v3508 = vpop.f32.mrf.mxu0
        %3509 = vmatprep.mubr.f32.mxu0 %v3347
        %3510 = vmatmul.mubr.f32.gmra.mxu0 %v3277
        %v3511 = vpop.f32.mrf.mxu0
        %v3512 = vadd.f32 %v3427, %v3511
        %v3513 = vpop.f32.mrf.mxu0
        %3514 = vmatprep.mubr.f32.mxu0 %v3350
        %3515 = vmatmul.mubr.f32.gmra.mxu0 %v3281
        %v3516 = vpop.f32.mrf.mxu0
        %v3517 = vadd.f32 %v3432, %v3516
        %v3518 = vpop.f32.mrf.mxu0
        %3519 = vmatprep.mubr.f32.mxu0 %v3353
        %3520 = vmatmul.mubr.f32.gmra.mxu0 %v3285
        %v3521 = vpop.f32.mrf.mxu0
        %v3522 = vadd.f32 %v3437, %v3521
        %v3523 = vpop.f32.mrf.mxu0
        %3524 = vdwg.mxu0
        %3525 = vxpose.xlu0.b32.start [1/16] %v3507, 128
        %3526 = vxpose.xlu0.b32.cont [2/16] %v3512, 128
        %3527 = vxpose.xlu0.b32.cont [3/16] %v3517, 128
        %3528 = vxpose.xlu0.b32.cont [4/16] %v3522, 128
        %3529 = vxpose.xlu0.b32.cont [5/16] 0.0, 128
        %3530 = vxpose.xlu0.b32.cont [6/16] 0.0, 128
        %3531 = vxpose.xlu0.b32.cont [7/16] 0.0, 128
        %3532 = vxpose.xlu0.b32.cont [8/16] 0.0, 128
        %3533 = vxpose.xlu0.b32.cont [9/16] 0.0, 128
        %3534 = vxpose.xlu0.b32.cont [10/16] 0.0, 128
        %3535 = vxpose.xlu0.b32.cont [11/16] 0.0, 128
        %3536 = vxpose.xlu0.b32.cont [12/16] 0.0, 128
        %3537 = vxpose.xlu0.b32.cont [13/16] 0.0, 128
        %3538 = vxpose.xlu0.b32.cont [14/16] 0.0, 128
        %3539 = vxpose.xlu0.b32.cont [15/16] 0.0, 128
        %3540 = vxpose.xlu0.b32.end [16/16] 0.0, 128
        %v3541 = vpop.trf.xlu0
        %v3542 = vpop.trf.xlu0
        %v3543 = vpop.trf.xlu0
        %v3544 = vpop.trf.xlu0
        %v3545 = vpop.trf.xlu0
        %v3546 = vpop.trf.xlu0
        %v3547 = vpop.trf.xlu0
        %v3548 = vpop.trf.xlu0
        %v3549 = vpop.trf.xlu0
        %v3550 = vpop.trf.xlu0
        %v3551 = vpop.trf.xlu0
        %v3552 = vpop.trf.xlu0
        %v3553 = vpop.trf.xlu0
        %v3554 = vpop.trf.xlu0
        %v3555 = vpop.trf.xlu0
        %v3556 = vpop.trf.xlu0
        %v3557 = vld [vmem:[%s7] sm:$0xff]
        %v3558 = vld [vmem:[%s7 + $0x8] sm:$0xff]
        %v3559 = vld [vmem:[%s7 + $0x10] sm:$0xff]
        %v3560 = vld [vmem:[%s7 + $0x18] sm:$0xff]
        %v3561 = vld [vmem:[%s8] sm:$0x1]
        %vm3562 = vcmask 261120
        %v3564 = vsel %vm3562, %v3541, 0
        %3566 = vmatprep.subr.mxu0 0.0
        %3567 = vmatpush1.msra.mxu0 0.0
        %3568 = vmatprep.subr.mxu0 0.0
        %3569 = vmatpush1.msra.mxu0 0.0
        %3570 = vmatprep.subr.mxu0 0.0
        %3571 = vmatpush1.msra.mxu0 0.0
        %3572 = vmatprep.subr.mxu0 0.0
        %3573 = vmatpush1.msra.mxu0 0.0
        %3574 = vmatprep.subr.mxu0 0.0
        %3575 = vmatpush1.msra.mxu0 0.0
        %3576 = vmatprep.subr.mxu0 0.0
        %3577 = vmatpush1.msra.mxu0 0.0
        %3578 = vmatprep.subr.mxu0 0.0
        %3579 = vmatpush1.msra.mxu0 0.0
        %3580 = vmatprep.subr.mxu0 0.0
        %3581 = vmatpush1.msra.mxu0 0.0
        %3582 = vmatprep.subr.mxu0 0.0
        %3583 = vmatpush1.msra.mxu0 0.0
        %3584 = vmatprep.subr.mxu0 0.0
        %3585 = vmatpush1.msra.mxu0 0.0
        %3586 = vmatprep.subr.mxu0 0.0
        %3587 = vmatpush1.msra.mxu0 0.0
        %3588 = vmatprep.subr.mxu0 0.0
        %3589 = vmatpush1.msra.mxu0 0.0
        %3590 = vmatprep.subr.mxu0 0.0
        %3591 = vmatpush1.msra.mxu0 %v3560
        %3592 = vmatprep.subr.mxu0 0.0
        %3593 = vmatpush1.msra.mxu0 %v3559
        %3594 = vmatprep.subr.mxu0 0.0
        %3595 = vmatpush1.msra.mxu0 %v3558
        %3596 = vmatprep.subr.mxu0 0.0
        %3597 = vmatpush1.msra.mxu0 %v3557
        %3598 = vmatprep.subr.mxu0 0.0
        %3599 = vmatpush2.msra.mxu0 0.0
        %3600 = vmatprep.subr.mxu0 0.0
        %3601 = vmatpush2.msra.mxu0 0.0
        %3602 = vmatprep.subr.mxu0 0.0
        %3603 = vmatpush2.msra.mxu0 0.0
        %3604 = vmatprep.subr.mxu0 0.0
        %3605 = vmatpush2.msra.mxu0 0.0
        %3606 = vmatprep.subr.mxu0 0.0
        %3607 = vmatpush2.msra.mxu0 0.0
        %3608 = vmatprep.subr.mxu0 0.0
        %3609 = vmatpush2.msra.mxu0 0.0
        %3610 = vmatprep.subr.mxu0 0.0
        %3611 = vmatpush2.msra.mxu0 0.0
        %3612 = vmatprep.subr.mxu0 0.0
        %3613 = vmatpush2.msra.mxu0 0.0
        %3614 = vmatprep.subr.mxu0 0.0
        %3615 = vmatpush2.msra.mxu0 0.0
        %3616 = vmatprep.subr.mxu0 0.0
        %3617 = vmatpush2.msra.mxu0 0.0
        %3618 = vmatprep.subr.mxu0 0.0
        %3619 = vmatpush2.msra.mxu0 0.0
        %3620 = vmatprep.subr.mxu0 0.0
        %3621 = vmatpush2.msra.mxu0 0.0
        %3622 = vmatprep.subr.mxu0 0.0
        %3623 = vmatpush2.msra.mxu0 0.0
        %3624 = vmatprep.subr.mxu0 0.0
        %3625 = vmatpush2.msra.mxu0 0.0
        %3626 = vmatprep.subr.mxu0 0.0
        %3627 = vmatpush2.msra.mxu0 0.0
        %3628 = vmatprep.subr.mxu0 0.0
        %3629 = vmatpush2.msra.mxu0 0.0
        %3630 = vmatprep.mubr.f32.mxu0 0.0
        %3631 = vmatmul.mubr.f32.gmra.mxu0 %v3564
        %v3632 = vpop.f32.mrf.mxu0
        %v3633 = vadd.f32 %v3561, %v3632
        %v3634 = vpop.f32.mrf.mxu0
        %3635 = vdwg.mxu0
        %v3636 = vmax.f32 %v3633, 0.0
        %v3637 = vld [vmem:[%s9] sm:$0xff]
        %v3638 = vld [vmem:[%s9 + $0x8] sm:$0xff]
        %v3639 = vld [vmem:[%s9 + $0x10] sm:$0xff]
        %v3640 = vld [vmem:[%s9 + $0x18] sm:$0xff]
        %v3641 = vld [vmem:[%s10] sm:$0x1]
        %v3643 = vsel %vm3562, %v3636, 0
        %3645 = vmatprep.subr.mxu0 0.0
        %3646 = vmatpush1.msra.mxu0 0.0
        %3647 = vmatprep.subr.mxu0 0.0
        %3648 = vmatpush1.msra.mxu0 0.0
        %3649 = vmatprep.subr.mxu0 0.0
        %3650 = vmatpush1.msra.mxu0 0.0
        %3651 = vmatprep.subr.mxu0 0.0
        %3652 = vmatpush1.msra.mxu0 0.0
        %3653 = vmatprep.subr.mxu0 0.0
        %3654 = vmatpush1.msra.mxu0 0.0
        %3655 = vmatprep.subr.mxu0 0.0
        %3656 = vmatpush1.msra.mxu0 0.0
        %3657 = vmatprep.subr.mxu0 0.0
        %3658 = vmatpush1.msra.mxu0 0.0
        %3659 = vmatprep.subr.mxu0 0.0
        %3660 = vmatpush1.msra.mxu0 0.0
        %3661 = vmatprep.subr.mxu0 0.0
        %3662 = vmatpush1.msra.mxu0 0.0
        %3663 = vmatprep.subr.mxu0 0.0
        %3664 = vmatpush1.msra.mxu0 0.0
        %3665 = vmatprep.subr.mxu0 0.0
        %3666 = vmatpush1.msra.mxu0 0.0
        %3667 = vmatprep.subr.mxu0 0.0
        %3668 = vmatpush1.msra.mxu0 0.0
        %3669 = vmatprep.subr.mxu0 0.0
        %3670 = vmatpush1.msra.mxu0 %v3640
        %3671 = vmatprep.subr.mxu0 0.0
        %3672 = vmatpush1.msra.mxu0 %v3639
        %3673 = vmatprep.subr.mxu0 0.0
        %3674 = vmatpush1.msra.mxu0 %v3638
        %3675 = vmatprep.subr.mxu0 0.0
        %3676 = vmatpush1.msra.mxu0 %v3637
        %3677 = vmatprep.subr.mxu0 0.0
        %3678 = vmatpush2.msra.mxu0 0.0
        %3679 = vmatprep.subr.mxu0 0.0
        %3680 = vmatpush2.msra.mxu0 0.0
        %3681 = vmatprep.subr.mxu0 0.0
        %3682 = vmatpush2.msra.mxu0 0.0
        %3683 = vmatprep.subr.mxu0 0.0
        %3684 = vmatpush2.msra.mxu0 0.0
        %3685 = vmatprep.subr.mxu0 0.0
        %3686 = vmatpush2.msra.mxu0 0.0
        %3687 = vmatprep.subr.mxu0 0.0
        %3688 = vmatpush2.msra.mxu0 0.0
        %3689 = vmatprep.subr.mxu0 0.0
        %3690 = vmatpush2.msra.mxu0 0.0
        %3691 = vmatprep.subr.mxu0 0.0
        %3692 = vmatpush2.msra.mxu0 0.0
        %3693 = vmatprep.subr.mxu0 0.0
        %3694 = vmatpush2.msra.mxu0 0.0
        %3695 = vmatprep.subr.mxu0 0.0
        %3696 = vmatpush2.msra.mxu0 0.0
        %3697 = vmatprep.subr.mxu0 0.0
        %3698 = vmatpush2.msra.mxu0 0.0
        %3699 = vmatprep.subr.mxu0 0.0
        %3700 = vmatpush2.msra.mxu0 0.0
        %3701 = vmatprep.subr.mxu0 0.0
        %3702 = vmatpush2.msra.mxu0 0.0
        %3703 = vmatprep.subr.mxu0 0.0
        %3704 = vmatpush2.msra.mxu0 0.0
        %3705 = vmatprep.subr.mxu0 0.0
        %3706 = vmatpush2.msra.mxu0 0.0
        %3707 = vmatprep.subr.mxu0 0.0
        %3708 = vmatpush2.msra.mxu0 0.0
        %3709 = vmatprep.mubr.f32.mxu0 0.0
        %3710 = vmatmul.mubr.f32.gmra.mxu0 %v3643
        %v3711 = vpop.f32.mrf.mxu0
        %v3712 = vadd.f32 %v3641, %v3711
        %v3713 = vpop.f32.mrf.mxu0
        %3714 = vdwg.mxu0
        %3715 = vst [vmem:[%s378] sm:$0x1] %v3712
        %s3716 = sand.u32 %s269, 1
        %s3717 = scalar_lea.sflag [#allocation4], %s3716
        %s3718 = sand.u32 %s269, 1
        %s3719 = scalar_lea.vmem [#allocation3], %s3718
        // Predicated region
        $region65: #{dqn_forward.1} parent=63 // pred_check
          %p3720 = pneg %p279
        $region66: #{dqn_forward.1} parent=63 // pred_check_branch
          %3722 = sbr.rel (%p3720) target = $region68
        $region67: #{dqn_forward.1} parent=63 // pred_region
          %s3724 = ssub.s32 16, 16
          %3725 = vsyncadd %s3717, %s3724
          %s3726 = smul.addr %s25, 16
          %s3727 = scalar_lea.hbm %s11, %s3726
          %s3729 = sshll.u32 %s3719, 4
          %s3730 = int_to_ptr.vmem [resolvable:$true] %s3729
          %3732 = dma.vmem_to_hbm [thread:$0]  %s3730, 16, %s3727, %s3717
        $region68: #{dqn_forward.1} parent=63 // pred_fallthru
          _
      $region64: #{dqn_forward.1} parent=5 // pred_fallthru
        _
      %p3733 = scmp.le.s32.totalorder 2, %s20
      // Predicated region
      $region69: #{dqn_forward.1} parent=5 // pred_check
        %p3734 = pneg %p3733
      $region70: #{dqn_forward.1} parent=5 // pred_check_branch
        %3736 = sbr.rel (%p3734) target = $region72
      $region71: #{dqn_forward.1} parent=5 // pred_region
        %s3737 = ssub.s32 %s20, 2
        // Predicated region
        $region73: #{dqn_forward.1} parent=71 // pred_check
          %p3738 = pneg %p285
        $region74: #{dqn_forward.1} parent=71 // pred_check_branch
          %3740 = sbr.rel (%p3738) target = $region76
        $region75: #{dqn_forward.1} parent=71 // pred_region
          %s3741 = sand.u32 %s270, 1
          %s3742 = scalar_lea.sflag [#allocation4], %s3741
          %s3743 = sand.u32 %s270, 1
          %s3744 = scalar_lea.vmem [#allocation3], %s3743
          %3745 = dma.done %s3742, 16
        $region76: #{dqn_forward.1} parent=71 // pred_fallthru
          _
      $region72: #{dqn_forward.1} parent=5 // pred_fallthru
        _
    $region6: #{dqn_forward.1} parent=1 // loop_footer
      %s24 = sadd.s32 1, %s20
    $region7: #{dqn_forward.1} parent=1 // loop_footer_branch
      %19 = sbr.rel target = $region3
    $region8: #{dqn_forward.1} parent=1 // loop_exit
      _
    %3746 = vsyncpa [#allocation4], 1
    %s3747 = scalar_lea.sflag [#allocation4], 1
    %3748 = vsyncpa %s3747, 1

</llo_original>
